<compile_context>
chip_gen: v7x
topology: tpu7x:2x2x1
jax: 0.10.0
libtpu: 0.0.40
codegen_flags: <defaults>
</compile_context>

<pallas_src>
import math
import numpy as np
import jax
import jax.numpy as jnp
from jax import lax
from jax.experimental import pallas as pl
from jax.experimental.pallas import tpu as pltpu

BN_EPS = 1e-5

# MXU operand dtype and inter-stage HBM storage dtype.  bf16 unlocks the fast
# MXU path on v5e/v6e/v7x and halves inter-stage HBM traffic; BN / statistics /
# epilogue math is always f32 and matmuls accumulate in f32.
COMPUTE_DTYPE = jnp.bfloat16
STORE_DTYPE = jnp.bfloat16


def _default_vmem_limit():
    """Per-chip scoped-VMEM limit: ~3/4 of physical, capped at 100 MiB.
    -> ~48 MiB on v7x (64 MiB physical), ~96 MiB on v5e/v6e (128 MiB)."""
    try:
        cap = int(pltpu.get_tpu_info().vmem_capacity_bytes)
    except Exception:
        cap = 128 * 1024 * 1024
    return max(32 * 1024 * 1024, min((cap * 3) // 4, 100 * 1024 * 1024))


_VMEM_LIMIT = _default_vmem_limit()


def _cparams(semantics):
    return pltpu.CompilerParams(dimension_semantics=semantics,
                                vmem_limit_bytes=_VMEM_LIMIT)


def _pick_block_rows(rows, cap):
    """Largest multiple-of-16 row tile <= cap that divides `rows` (or `rows`
    itself if it already fits).  Falls back to a ragged (masked) last tile.
    Multiples of 16 keep bf16 sublane packing clean."""
    cap = max(16, cap)
    if rows <= cap:
        return rows
    for tm in range(cap - cap % 16, 15, -16):
        if rows % tm == 0:
            return tm
    return cap - cap % 16          # ragged last tile; masked inside the kernel


def _pick_row_tile(n, cap):
    """Largest divisor of n that is <= cap (output-row tile for the 3x3 conv)."""
    cap = max(1, min(cap, n))
    for t in range(cap, 0, -1):
        if n % t == 0:
            return t
    return n


def _bn_affine(ch_sum, ch_sumsq, count, eps=BN_EPS):
    """Train-mode BN (gamma=1, beta=0) as y*scale + offset, from sum/sumsq.
    Single-pass variance (E[y^2]-mean^2) with f32 partials; fine at these
    activation scales (post-conv activations are near zero-mean)."""
    mean = ch_sum / count
    var = jnp.maximum(ch_sumsq / count - mean * mean, 0.0)
    scale = lax.rsqrt(var + eps)
    return scale, -mean * scale


# ------------------ kernel A: [BN+ReLU] -> 1x1 conv -> stats ---------------- #

def _matmul_stats_kernel(apply_bn, ragged, rows_total, tile_rows, compute_dtype):
    def kernel(*refs):
        i = 0
        x_ref = refs[i]; i += 1
        w_ref = refs[i]; i += 1
        scale_ref = off_ref = None
        if apply_bn:
            scale_ref, off_ref = refs[i], refs[i + 1]; i += 2
        y_ref, sum_ref, ssq_ref = refs[i], refs[i + 1], refs[i + 2]

        x = x_ref[...].astype(jnp.float32)
        if apply_bn:                               # fused BN(prev stage) + ReLU
            x = jnp.maximum(x * scale_ref[...] + off_ref[...], 0.0)
        if ragged:
            # mask AFTER the prologue so padded tail rows are exactly 0 and
            # contribute nothing to either the matmul output or the stats.
            row = (pl.program_id(0) * tile_rows
                   + lax.broadcasted_iota(jnp.int32, (tile_rows, 1), 0))
            x = jnp.where(row < rows_total, x, 0.0)
        y = jnp.dot(x.astype(compute_dtype), w_ref[...],
                    preferred_element_type=jnp.float32)
        y_ref[...] = y.astype(y_ref.dtype)
        sum_ref[0] = jnp.sum(y, axis=0, keepdims=True)
        ssq_ref[0] = jnp.sum(y * y, axis=0, keepdims=True)
    return kernel


def matmul_bn_stats(x, w, scale=None, offset=None, *, block_rows=512,
                    compute_dtype=COMPUTE_DTYPE, store_dtype=STORE_DTYPE):
    """y = [relu(x*scale+offset)] @ w, row-tiled, plus per-tile sum / sumsq."""
    rows, k = x.shape
    w = w.astype(compute_dtype)
    cout = w.shape[1]
    tm = _pick_block_rows(rows, block_rows)
    nt = pl.cdiv(rows, tm)
    ragged = (rows % tm) != 0
    apply_bn = scale is not None

    inputs = [x, w]
    in_specs = [pl.BlockSpec((tm, k), lambda i: (i, 0)),
                pl.BlockSpec((k, cout), lambda i: (0, 0))]
    if apply_bn:
        inputs += [scale.reshape(1, k).astype(jnp.float32),
                   offset.reshape(1, k).astype(jnp.float32)]
        in_specs += [pl.BlockSpec((1, k), lambda i: (0, 0)),
                     pl.BlockSpec((1, k), lambda i: (0, 0))]

    out_shape = (jax.ShapeDtypeStruct((rows, cout), store_dtype),
                 jax.ShapeDtypeStruct((nt, 1, cout), jnp.float32),
                 jax.ShapeDtypeStruct((nt, 1, cout), jnp.float32))
    out_specs = (pl.BlockSpec((tm, cout), lambda i: (i, 0)),
                 pl.BlockSpec((1, 1, cout), lambda i: (i, 0, 0)),
                 pl.BlockSpec((1, 1, cout), lambda i: (i, 0, 0)))

    cost = pl.CostEstimate(
        flops=2 * rows * k * cout,
        transcendentals=0,
        bytes_accessed=int(x.size * x.dtype.itemsize + w.size * w.dtype.itemsize
                           + rows * cout * jnp.dtype(store_dtype).itemsize
                           + 2 * nt * cout * 4 + (8 * k if apply_bn else 0)))

    y, s, ss = pl.pallas_call(
        _matmul_stats_kernel(apply_bn, ragged, rows, tm, compute_dtype),
        grid=(nt,),
        in_specs=in_specs,
        out_specs=out_specs,
        out_shape=out_shape,
        compiler_params=_cparams(("parallel",)),
        cost_estimate=cost,
    )(*inputs)
    return y, jnp.sum(s, axis=0)[0], jnp.sum(ss, axis=0)[0]


# ------------- kernel B: BN1+ReLU -> 3x3 conv (stride 1/2) -> stats --------- #

def _conv3x3_stats_kernel(stride, H, W, ho, wo, th, c, cout, compute_dtype):
    H2, W2 = H // 2, W // 2

    def kernel(x_ref, scale_ref, off_ref, w_ref, y_ref, sum_ref, ssq_ref,
               plane_ref):
        r = pl.program_id(1)
        scale = scale_ref[...]                     # (1, c) f32
        off = off_ref[...]

        # Build the BN1+ReLU-normalized, zero-padded plane ONCE per image; it
        # persists in VMEM scratch across the output-row-tile grid axis, so the
        # prologue is not recomputed per tap or per row tile.
        @pl.when(r == 0)
        def _():
            plane_ref[...] = jnp.zeros_like(plane_ref)   # zero padding border
            if stride == 1:
                xin = x_ref[0].astype(jnp.float32)       # (H, W, c)
                plane_ref[1:H + 1, 1:W + 1, :] = jnp.maximum(
                    xin * scale + off, 0.0).astype(plane_ref.dtype)
            else:
                # parity-split (space-to-depth) padded plane so every stride-2
                # tap is a contiguous static/dynamic slice.
                for a in range(2):          # padded-plane row parity
                    for b_ in range(2):     # padded-plane col parity
                        src = x_ref[0, 1 - a, 1 - b_].astype(jnp.float32)
                        v = jnp.maximum(src * scale + off,
                                        0.0).astype(plane_ref.dtype)
                        plane_ref[a, b_,
                                  1 - a:1 - a + H2,
                                  1 - b_:1 - b_ + W2, :] = v

        # Stacked-patch (in-VMEM im2col): one (th*wo, 9c) @ (9c, cout) matmul
        # per row tile instead of 9 K=c matmuls with a live accumulator.
        row0 = r * th
        taps = []
        for dh in range(3):
            for dw in range(3):
                if stride == 1:
                    t = plane_ref[pl.ds(row0 + dh, th), dw:dw + wo, :]
                else:
                    t = plane_ref[dh % 2, dw % 2,
                                  pl.ds(row0 + dh // 2, th),
                                  dw // 2:dw // 2 + wo, :]
                taps.append(t)                     # (th, wo, c) compute_dtype
        patch = jnp.concatenate(taps, axis=-1).reshape(th * wo, 9 * c)
        y = jnp.dot(patch.astype(compute_dtype), w_ref[...],
                    preferred_element_type=jnp.float32)
        y_ref[0] = y.astype(y_ref.dtype)
        sum_ref[0] = jnp.sum(y, axis=0, keepdims=True)
        ssq_ref[0] = jnp.sum(y * y, axis=0, keepdims=True)
    return kernel


def conv3x3_bn_stats(x_planes, scale, offset, w_packed, *, stride, H, W, ho, wo,
                     c, cout, row_tile=8, compute_dtype=COMPUTE_DTYPE,
                     store_dtype=STORE_DTYPE):
    """BN1+ReLU + zero-pad fused into a 3x3 conv, grid = (batch, row tiles).

    x_planes: stride==1 -> (B, H, W, c) unpadded plane;
              stride==2 -> (B, 2, 2, H/2, W/2, c) parity-split unpadded plane.
    Output is (B*ho*wo, c) plus per-(image, row-tile) sum / sumsq partials."""
    B = x_planes.shape[0]
    th = _pick_row_tile(ho, row_tile)
    R = ho // th
    nd = x_planes.ndim
    blk_in = (1,) + tuple(x_planes.shape[1:])
    w_packed = w_packed.astype(compute_dtype)

    # The per-image plane block index is constant along the row-tile axis, so
    # Pallas DMAs it only once per image while r advances (double-buffered
    # across images).
    in_specs = [pl.BlockSpec(blk_in, lambda b, r: (b,) + (0,) * (nd - 1)),
                pl.BlockSpec((1, c), lambda b, r: (0, 0)),
                pl.BlockSpec((1, c), lambda b, r: (0, 0)),
                pl.BlockSpec((9 * c, cout), lambda b, r: (0, 0))]
    out_shape = (jax.ShapeDtypeStruct((B * R, th * wo, cout), store_dtype),
                 jax.ShapeDtypeStruct((B * R, 1, cout), jnp.float32),
                 jax.ShapeDtypeStruct((B * R, 1, cout), jnp.float32))
    out_specs = (pl.BlockSpec((1, th * wo, cout), lambda b, r: (b * R + r, 0, 0)),
                 pl.BlockSpec((1, 1, cout), lambda b, r: (b * R + r, 0, 0)),
                 pl.BlockSpec((1, 1, cout), lambda b, r: (b * R + r, 0, 0)))
    if stride == 1:
        plane_scratch = pltpu.VMEM((H + 2, W + 2, c), compute_dtype)
    else:
        plane_scratch = pltpu.VMEM((2, 2, H // 2 + 1, W // 2 + 1, c),
                                   compute_dtype)

    cost = pl.CostEstimate(
        flops=2 * B * ho * wo * 9 * c * cout,
        transcendentals=0,
        bytes_accessed=int(x_planes.size * x_planes.dtype.itemsize
                           + w_packed.size * w_packed.dtype.itemsize
                           + B * ho * wo * cout * jnp.dtype(store_dtype).itemsize
                           + 2 * B * R * cout * 4 + 8 * c))

    y, s, ss = pl.pallas_call(
        _conv3x3_stats_kernel(stride, H, W, ho, wo, th, c, cout, compute_dtype),
        grid=(B, R),
        in_specs=in_specs,
        out_specs=out_specs,
        out_shape=out_shape,
        scratch_shapes=[plane_scratch],
        # B is independent ("parallel", megacore/2-TC friendly); the row-tile
        # axis reuses the per-image scratch plane -> must stay "arbitrary".
        compiler_params=_cparams(("parallel", "arbitrary")),
        cost_estimate=cost,
    )(x_planes, scale.reshape(1, c).astype(jnp.float32),
      offset.reshape(1, c).astype(jnp.float32), w_packed)
    return (y.reshape(B * ho * wo, cout),
            jnp.sum(s, axis=0)[0], jnp.sum(ss, axis=0)[0])


# ------------ kernel C: BN3 + shortcut(1x1 conv | identity) + ReLU ---------- #

def _bn_residual_relu_kernel(has_sc_conv, compute_dtype):
    def kernel(*refs):
        if has_sc_conv:
            y_ref, scale_ref, off_ref, s_ref, wsc_ref, o_ref = refs
        else:
            y_ref, scale_ref, off_ref, s_ref, o_ref = refs
        y = y_ref[...].astype(jnp.float32) * scale_ref[...] + off_ref[...]  # BN3
        if has_sc_conv:                            # fused 1x1 shortcut conv
            short = jnp.dot(s_ref[...].astype(compute_dtype), wsc_ref[...],
                            preferred_element_type=jnp.float32)
        else:                                      # identity shortcut
            short = s_ref[...].astype(jnp.float32)
        o_ref[...] = jnp.maximum(y + short, 0.0).astype(o_ref.dtype)
    return kernel


def bn_residual_relu(y, scale, offset, short_in, wsc=None, *, block_rows=512,
                     compute_dtype=COMPUTE_DTYPE):
    rows, cout = y.shape
    cs = short_in.shape[1]
    tm = _pick_block_rows(rows, block_rows)
    nt = pl.cdiv(rows, tm)
    has_sc_conv = wsc is not None

    inputs = [y, scale.reshape(1, cout).astype(jnp.float32),
              offset.reshape(1, cout).astype(jnp.float32), short_in]
    in_specs = [pl.BlockSpec((tm, cout), lambda i: (i, 0)),
                pl.BlockSpec((1, cout), lambda i: (0, 0)),
                pl.BlockSpec((1, cout), lambda i: (0, 0)),
                pl.BlockSpec((tm, cs), lambda i: (i, 0))]
    if has_sc_conv:
        wsc = wsc.astype(compute_dtype)
        inputs.append(wsc)
        in_specs.append(pl.BlockSpec((cs, cout), lambda i: (0, 0)))

    cost = pl.CostEstimate(
        flops=(2 * rows * cs * cout if has_sc_conv else 0) + 3 * rows * cout,
        transcendentals=0,
        bytes_accessed=int(y.size * y.dtype.itemsize
                           + short_in.size * short_in.dtype.itemsize
                           + rows * cout * 4
                           + (cs * cout * jnp.dtype(compute_dtype).itemsize
                              if has_sc_conv else 0) + 8 * cout))

    return pl.pallas_call(
        _bn_residual_relu_kernel(has_sc_conv, compute_dtype),
        grid=(nt,),
        in_specs=in_specs,
        out_specs=pl.BlockSpec((tm, cout), lambda i: (i, 0)),
        out_shape=jax.ShapeDtypeStruct((rows, cout), jnp.float32),
        compiler_params=_cparams(("parallel",)),
        cost_estimate=cost,
    )(*inputs)


# --------------------------------- forward ---------------------------------- #

def bottleneck_block_forward(x_nchw, params, half_res, *, block_rows=512,
                             conv_row_tile=8, compute_dtype=COMPUTE_DTYPE,
                             store_dtype=STORE_DTYPE):
    """Forward pass matching BottleneckBlock.forward (training-mode BN,
    gamma=1 / beta=0 as set by init_layer)."""
    w1, w2, b2, w3, wsc = params                  # PyTorch OIHW conv weights
    # b2 (the 3x3-conv bias) is folded away: a per-channel bias immediately
    # followed by train-mode BatchNorm (per-channel mean subtraction) is a
    # mathematical no-op.
    del b2

    B, cin, H, W = x_nchw.shape
    cmid = w1.shape[0]
    cout = w3.shape[0]
    stride = 2 if half_res else 1
    ho = (H + 2 - 3) // stride + 1
    wo = (W + 2 - 3) // stride + 1
    r0 = B * H * W
    r2 = B * ho * wo

    x = jnp.transpose(x_nchw, (0, 2, 3, 1)).astype(jnp.float32)   # NHWC
    x_flat = x.reshape(r0, cin)

    # ---- stage 1: C1 (1x1 conv, no bias) + BN1 statistics ------------------
    w1m = jnp.transpose(w1.reshape(cmid, cin), (1, 0))            # (cin, cmid)
    h1_flat, s1, ss1 = matmul_bn_stats(x_flat, w1m, block_rows=block_rows,
                                       compute_dtype=compute_dtype,
                                       store_dtype=store_dtype)
    scale1, off1 = _bn_affine(s1, ss1, r0)

    # ---- stage 2: BN1+ReLU + zero-pad (in-kernel) + 3x3 conv + BN2 stats ----
    if stride == 1:
        x2 = h1_flat.reshape(B, H, W, cmid)
    else:
        if H % 2 or W % 2:
            raise ValueError("half_res path expects even spatial dims")
        # Parity split (space-to-depth) of the *unpadded* plane so the stride-2
        # taps are contiguous slices in the kernel (padding happens in-kernel).
        # TODO(synk): fold this transpose into stage 1's out_specs index_map so
        # the downsample block avoids this extra HBM roundtrip too.
        x2 = h1_flat.reshape(B, H // 2, 2, W // 2, 2, cmid)
        x2 = jnp.transpose(x2, (0, 2, 4, 1, 3, 5))    # (B, 2, 2, H/2, W/2, c)
    w2m = jnp.transpose(w2, (2, 3, 1, 0)).reshape(9 * cmid, cmid)  # (9*cin, cout)
    h2_flat, s2, ss2 = conv3x3_bn_stats(
        x2, scale1, off1, w2m, stride=stride, H=H, W=W, ho=ho, wo=wo,
        c=cmid, cout=cmid, row_tile=conv_row_tile,
        compute_dtype=compute_dtype, store_dtype=store_dtype)
    scale2, off2 = _bn_affine(s2, ss2, r2)

    # ---- stage 3: BN2+ReLU (fused) + C3 (1x1 conv, no bias) + BN3 stats ----
    w3m = jnp.transpose(w3.reshape(cout, cmid), (1, 0))           # (cmid, cout)
    y3, s3, ss3 = matmul_bn_stats(h2_flat, w3m, scale=scale2, offset=off2,
                                  block_rows=block_rows,
                                  compute_dtype=compute_dtype,
                                  store_dtype=store_dtype)
    scale3, off3 = _bn_affine(s3, ss3, r2)

    # ---- stage 4: BN3 + shortcut (+1x1 conv) + residual add + ReLU ---------
    if wsc is not None:
        wscm = jnp.transpose(wsc.reshape(cout, cin), (1, 0))      # (cin, cout)
        if stride == 2:
            # TODO(synk): express this subsample via the shortcut input's
            # BlockSpec index_map (H stride) + in-kernel W subsample instead of
            # an XLA-level strided gather.
            x_short = x[:, ::2, ::2, :].reshape(r2, cin)
        else:
            x_short = x_flat
        out = bn_residual_relu(y3, scale3, off3, x_short, wscm,
                               block_rows=block_rows, compute_dtype=compute_dtype)
    else:
        if stride != 1:
            raise ValueError("identity shortcut with half_res is invalid "
                             "(the PyTorch module would shape-error too)")
        out = bn_residual_relu(y3, scale3, off3, x_flat, None,
                               block_rows=block_rows, compute_dtype=compute_dtype)

    return jnp.transpose(out.reshape(B, ho, wo, cout), (0, 3, 1, 2))  # NCHW


# ----------------------------- pure-JAX reference --------------------------- #

def _ref_conv(x, w, b=None, stride=1, padding=0):
    out = lax.conv_general_dilated(
        x, w, window_strides=(stride, stride),
        padding=[(padding, padding), (padding, padding)],
        dimension_numbers=("NCHW", "OIHW", "NCHW"))
    if b is not None:
        out = out + b[None, :, None, None]
    return out


def _ref_bn(x):
    mean = x.mean(axis=(0, 2, 3), keepdims=True)
    var = x.var(axis=(0, 2, 3), keepdims=True)   # biased, like F.batch_norm training
    return (x - mean) / jnp.sqrt(var + BN_EPS)


def bottleneck_block_reference(x, params, half_res):
    w1, w2, b2, w3, wsc = params
    stride = 2 if half_res else 1
    short = x if wsc is None else _ref_conv(x, wsc, stride=stride)
    out = jax.nn.relu(_ref_bn(_ref_conv(x, w1)))
    out = jax.nn.relu(_ref_bn(_ref_conv(out, w2, b2, stride=stride, padding=1)))
    out = _ref_bn(_ref_conv(out, w3))
    return jax.nn.relu(out + short)


# ----------------------------------- main ----------------------------------- #

def _make_params(key, indim, outdim):
    """init_layer: conv weights ~ N(0, sqrt(2 / (kh*kw*out_channels)))."""
    bdim = outdim // 4
    k1, k2, kb2, k3, ksc = jax.random.split(key, 5)
    w1 = jax.random.normal(k1, (bdim, indim, 1, 1), jnp.float32) * math.sqrt(2.0 / bdim)
    w2 = jax.random.normal(k2, (bdim, bdim, 3, 3), jnp.float32) * math.sqrt(2.0 / (9 * bdim))
    b2 = jax.random.normal(kb2, (bdim,), jnp.float32) * 0.1
    w3 = jax.random.normal(k3, (outdim, bdim, 1, 1), jnp.float32) * math.sqrt(2.0 / outdim)
    wsc = None
    if indim != outdim:
        wsc = (jax.random.normal(ksc, (outdim, indim, 1, 1), jnp.float32)
               * math.sqrt(2.0 / outdim))
    return (w1, w2, b2, w3, wsc)


def _rel_l2(a, b):
    a = np.asarray(a, np.float64)
    b = np.asarray(b, np.float64)
    return float(np.linalg.norm(a - b) / max(np.linalg.norm(b), 1e-12))


if __name__ == "__main__":
    key = jax.random.PRNGKey(0)
    kx1, kp1, kx2, kp2 = jax.random.split(key, 4)

    # config 1: stage-transition block (1x1-conv shortcut, half_res / stride 2)
    B, indim, H, W, outdim = 2, 4, 16, 16, 16
    x1 = jax.random.normal(kx1, (B, indim, H, W), jnp.float32)
    p1 = _make_params(kp1, indim, outdim)
    ref1 = jax.block_until_ready(bottleneck_block_reference(x1, p1, half_res=True))

    # f32 operands / f32 intermediates: strict check against the reference
    fwd1 = jax.jit(lambda xx, pp: bottleneck_block_forward(
        xx, pp, half_res=True,
        compute_dtype=jnp.float32, store_dtype=jnp.float32))
    out1 = jax.block_until_ready(fwd1(x1, p1))
    np.testing.assert_allclose(np.asarray(out1), np.asarray(ref1),
                               rtol=1e-4, atol=1e-4)

    # same, with small tiles to exercise multi-step grids, the row-tile axis of
    # the 3x3 kernel and the cross-tile statistics reduction
    fwd1b = jax.jit(lambda xx, pp: bottleneck_block_forward(
        xx, pp, half_res=True, block_rows=64, conv_row_tile=4,
        compute_dtype=jnp.float32, store_dtype=jnp.float32))
    out1b = jax.block_until_ready(fwd1b(x1, p1))
    np.testing.assert_allclose(np.asarray(out1b), np.asarray(ref1),
                               rtol=1e-4, atol=1e-4)

    # default production config: bf16 MXU operands + bf16 inter-stage storage
    fwd1c = jax.jit(lambda xx, pp: bottleneck_block_forward(xx, pp, half_res=True))
    out1c = jax.block_until_ready(fwd1c(x1, p1))
    assert np.isfinite(np.asarray(out1c)).all()
    rel1 = _rel_l2(out1c, ref1)
    assert rel1 < 0.1, f"bf16 path rel-L2 error too large: {rel1}"

    # config 2: identity shortcut, stride 1
    indim2 = outdim2 = 16
    x2 = jax.random.normal(kx2, (B, indim2, H, W), jnp.float32)
    p2 = _make_params(kp2, indim2, outdim2)
    ref2 = jax.block_until_ready(bottleneck_block_reference(x2, p2, half_res=False))

    fwd2 = jax.jit(lambda xx, pp: bottleneck_block_forward(
        xx, pp, half_res=False,
        compute_dtype=jnp.float32, store_dtype=jnp.float32))
    out2 = jax.block_until_ready(fwd2(x2, p2))
    np.testing.assert_allclose(np.asarray(out2), np.asarray(ref2),
                               rtol=1e-4, atol=1e-4)

    fwd2c = jax.jit(lambda xx, pp: bottleneck_block_forward(xx, pp, half_res=False))
    out2c = jax.block_until_ready(fwd2c(x2, p2))
    assert np.isfinite(np.asarray(out2c)).all()
    rel2 = _rel_l2(out2c, ref2)
    assert rel2 < 0.1, f"bf16 path rel-L2 error too large: {rel2}"

    print("KERNEL_OK")
</pallas_src>

<mosaic_0001>
module attributes {stable_mosaic.version = 11 : i64} {
  func.func @kernel(%arg0: i32, %arg1: memref<512x4xf32, #tpu.memory_space<vmem>>, %arg2: memref<4x4xf32, #tpu.memory_space<vmem>>, %arg3: memref<512x4xf32, #tpu.memory_space<vmem>>, %arg4: memref<1x1x4xf32, #tpu.memory_space<vmem>>, %arg5: memref<1x1x4xf32, #tpu.memory_space<vmem>>) attributes {dimension_semantics = [#tpu.dimension_semantics<parallel>], iteration_bounds = array<i64: 1>, scalar_prefetch = 0 : i64, scratch_operands = 0 : i64, tpu.core_type = #tpu.core_type<tc>, window_params = [{transform_indices = @transform_0, window_bounds = array<i64: 512, 4>}, {pipeline_mode = #tpu.pipeline_mode<synchronous>, transform_indices = @transform_1, window_bounds = array<i64: 4, 4>}, {transform_indices = @transform_2, window_bounds = array<i64: 512, 4>}, {transform_indices = @transform_3, window_bounds = array<i64: 1, 1, 4>}, {transform_indices = @transform_4, window_bounds = array<i64: 1, 1, 4>}]} {
    %c0 = arith.constant 0 : index
    %c0_0 = arith.constant 0 : index
    %0 = vector.load %arg1[%c0, %c0_0] : memref<512x4xf32, #tpu.memory_space<vmem>>, vector<512x4xf32>
    %c0_1 = arith.constant 0 : index
    %c0_2 = arith.constant 0 : index
    %1 = vector.load %arg2[%c0_1, %c0_2] : memref<4x4xf32, #tpu.memory_space<vmem>>, vector<4x4xf32>
    %cst = arith.constant dense<0.000000e+00> : vector<512x4xf32>
    %2 = tpu.matmul %0, %1, %cst {dimension_numbers = #tpu.dot_dimension_numbers<[1], [0], [0], [1], [0, 0, 1, 1], [], []>} : vector<512x4xf32>, vector<4x4xf32>, vector<512x4xf32> -> vector<512x4xf32>
    %c0_3 = arith.constant 0 : index
    %c0_4 = arith.constant 0 : index
    %3 = vector.load %arg3[%c0_3, %c0_4] : memref<512x4xf32, #tpu.memory_space<vmem>>, vector<512x4xf32>
    tpu.vector_store %arg3[%c0_3, %c0_4], %2 {strides = array<i32>} : memref<512x4xf32, #tpu.memory_space<vmem>>, vector<512x4xf32>,
    %cst_5 = arith.constant dense<0.000000e+00> : vector<4xf32>
    %4 = vector.multi_reduction <add>, %2, %cst_5 [0] : vector<512x4xf32> to vector<4xf32>
    %5 = vector.shape_cast %4 : vector<4xf32> to vector<1x4xf32>
    %c0_6 = arith.constant 0 : index
    %c0_7 = arith.constant 0 : index
    %c0_8 = arith.constant 0 : index
    %6 = vector.load %arg4[%c0_6, %c0_7, %c0_8] : memref<1x1x4xf32, #tpu.memory_space<vmem>>, vector<1x1x4xf32>
    %7 = vector.shape_cast %6 : vector<1x1x4xf32> to vector<1x4xf32>
    %8 = vector.shape_cast %5 : vector<1x4xf32> to vector<1x1x4xf32>
    tpu.vector_store %arg4[%c0_6, %c0_7, %c0_8], %8 {strides = array<i32>} : memref<1x1x4xf32, #tpu.memory_space<vmem>>, vector<1x1x4xf32>,
    %9 = arith.mulf %2, %2 : vector<512x4xf32>
    %cst_9 = arith.constant dense<0.000000e+00> : vector<4xf32>
    %10 = vector.multi_reduction <add>, %9, %cst_9 [0] : vector<512x4xf32> to vector<4xf32>
    %11 = vector.shape_cast %10 : vector<4xf32> to vector<1x4xf32>
    %c0_10 = arith.constant 0 : index
    %c0_11 = arith.constant 0 : index
    %c0_12 = arith.constant 0 : index
    %12 = vector.load %arg5[%c0_10, %c0_11, %c0_12] : memref<1x1x4xf32, #tpu.memory_space<vmem>>, vector<1x1x4xf32>
    %13 = vector.shape_cast %12 : vector<1x1x4xf32> to vector<1x4xf32>
    %14 = vector.shape_cast %11 : vector<1x4xf32> to vector<1x1x4xf32>
    tpu.vector_store %arg5[%c0_10, %c0_11, %c0_12], %14 {strides = array<i32>} : memref<1x1x4xf32, #tpu.memory_space<vmem>>, vector<1x1x4xf32>,
    return
  }
  func.func @transform_0(%arg0: i32) -> (i32, i32) {
    %c0_i32 = arith.constant 0 : i32
    %c0_i32_0 = arith.constant 0 : i32
    return %arg0, %c0_i32 : i32, i32
  }
  func.func @transform_1(%arg0: i32) -> (i32, i32) {
    %c0_i32 = arith.constant 0 : i32
    %c0_i32_0 = arith.constant 0 : i32
    %c0_i32_1 = arith.constant 0 : i32
    return %c0_i32, %c0_i32_0 : i32, i32
  }
  func.func @transform_2(%arg0: i32) -> (i32, i32) {
    %c0_i32 = arith.constant 0 : i32
    %c0_i32_0 = arith.constant 0 : i32
    return %arg0, %c0_i32 : i32, i32
  }
  func.func @transform_3(%arg0: i32) -> (i32, i32, i32) {
    %c0_i32 = arith.constant 0 : i32
    %c0_i32_0 = arith.constant 0 : i32
    %c0_i32_1 = arith.constant 0 : i32
    return %arg0, %c0_i32, %c0_i32_0 : i32, i32, i32
  }
  func.func @transform_4(%arg0: i32) -> (i32, i32, i32) {
    %c0_i32 = arith.constant 0 : i32
    %c0_i32_0 = arith.constant 0 : i32
    %c0_i32_1 = arith.constant 0 : i32
    return %arg0, %c0_i32, %c0_i32_0 : i32, i32, i32
  }
}

module attributes {stable_mosaic.version = 11 : i64} {
  func.func @kernel(%arg0: i32, %arg1: i32, %arg2: memref<1x2x2x8x8x4xf32, #tpu.memory_space<vmem>>, %arg3: memref<1x4xf32, #tpu.memory_space<vmem>>, %arg4: memref<1x4xf32, #tpu.memory_space<vmem>>, %arg5: memref<36x4xf32, #tpu.memory_space<vmem>>, %arg6: memref<1x64x4xf32, #tpu.memory_space<vmem>>, %arg7: memref<1x1x4xf32, #tpu.memory_space<vmem>>, %arg8: memref<1x1x4xf32, #tpu.memory_space<vmem>>, %arg9: memref<2x2x9x9x4xf32, #tpu.memory_space<vmem>>) attributes {dimension_semantics = [#tpu.dimension_semantics<parallel>, #tpu.dimension_semantics<arbitrary>], iteration_bounds = array<i64: 2, 1>, scalar_prefetch = 0 : i64, scratch_operands = 1 : i64, tpu.core_type = #tpu.core_type<tc>, window_params = [{transform_indices = @transform_0, window_bounds = array<i64: 1, 2, 2, 8, 8, 4>}, {pipeline_mode = #tpu.pipeline_mode<synchronous>, transform_indices = @transform_1, window_bounds = array<i64: 1, 4>}, {pipeline_mode = #tpu.pipeline_mode<synchronous>, transform_indices = @transform_2, window_bounds = array<i64: 1, 4>}, {pipeline_mode = #tpu.pipeline_mode<synchronous>, transform_indices = @transform_3, window_bounds = array<i64: 36, 4>}, {transform_indices = @transform_4, window_bounds = array<i64: 1, 64, 4>}, {transform_indices = @transform_5, window_bounds = array<i64: 1, 1, 4>}, {transform_indices = @transform_6, window_bounds = array<i64: 1, 1, 4>}]} {
    %c0 = arith.constant 0 : index
    %c0_0 = arith.constant 0 : index
    %0 = vector.load %arg3[%c0, %c0_0] : memref<1x4xf32, #tpu.memory_space<vmem>>, vector<1x4xf32>
    %c0_1 = arith.constant 0 : index
    %c0_2 = arith.constant 0 : index
    %1 = vector.load %arg4[%c0_1, %c0_2] : memref<1x4xf32, #tpu.memory_space<vmem>>, vector<1x4xf32>
    %c0_i32 = arith.constant 0 : i32
    %2 = arith.cmpi eq, %arg1, %c0_i32 : i32
    %3 = arith.extui %2 : i1 to i32
    %c0_i32_3 = arith.constant 0 : i32
    %4 = arith.cmpi ne, %3, %c0_i32_3 : i32
    scf.if %4 {
      %cst_60 = arith.constant 0.000000e+00 : f32
      %60 = vector.broadcast %cst_60 : f32 to vector<2x2x9x9x4xf32>
      %c0_61 = arith.constant 0 : index
      %c0_62 = arith.constant 0 : index
      %c0_63 = arith.constant 0 : index
      %c0_64 = arith.constant 0 : index
      %c0_65 = arith.constant 0 : index
      %61 = vector.load %arg9[%c0_61, %c0_62, %c0_63, %c0_64, %c0_65] : memref<2x2x9x9x4xf32, #tpu.memory_space<vmem>>, vector<2x2x9x9x4xf32>
      tpu.vector_store %arg9[%c0_61, %c0_62, %c0_63, %c0_64, %c0_65], %60 {strides = array<i32>} : memref<2x2x9x9x4xf32, #tpu.memory_space<vmem>>, vector<2x2x9x9x4xf32>,
      %c0_66 = arith.constant 0 : index
      %c1_67 = arith.constant 1 : index
      %c1_68 = arith.constant 1 : index
      %c0_69 = arith.constant 0 : index
      %c0_70 = arith.constant 0 : index
      %c0_71 = arith.constant 0 : index
      %62 = vector.load %arg2[%c0_66, %c1_67, %c1_68, %c0_69, %c0_70, %c0_71] : memref<1x2x2x8x8x4xf32, #tpu.memory_space<vmem>>, vector<1x1x1x8x8x4xf32>
      %63 = vector.shape_cast %62 : vector<1x1x1x8x8x4xf32> to vector<8x8x4xf32>
      %64 = vector.shape_cast %0 : vector<1x4xf32> to vector<1x1x4xf32>
      %65 = vector.broadcast %64 : vector<1x1x4xf32> to vector<8x8x4xf32>
      %66 = arith.mulf %63, %65 : vector<8x8x4xf32>
      %67 = vector.shape_cast %1 : vector<1x4xf32> to vector<1x1x4xf32>
      %68 = vector.broadcast %67 : vector<1x1x4xf32> to vector<8x8x4xf32>
      %69 = arith.addf %66, %68 : vector<8x8x4xf32>
      %cst_72 = arith.constant 0.000000e+00 : f32
      %70 = vector.broadcast %cst_72 : f32 to vector<8x8x4xf32>
      %71 = arith.maximumf %69, %70 : vector<8x8x4xf32>
      %c0_73 = arith.constant 0 : index
      %c0_74 = arith.constant 0 : index
      %c1_75 = arith.constant 1 : index
      %c1_76 = arith.constant 1 : index
      %c0_77 = arith.constant 0 : index
      %72 = vector.load %arg9[%c0_73, %c0_74, %c1_75, %c1_76, %c0_77] : memref<2x2x9x9x4xf32, #tpu.memory_space<vmem>>, vector<1x1x8x8x4xf32>
      %73 = vector.shape_cast %72 : vector<1x1x8x8x4xf32> to vector<8x8x4xf32>
      %74 = vector.shape_cast %71 : vector<8x8x4xf32> to vector<1x1x8x8x4xf32>
      tpu.vector_store %arg9[%c0_73, %c0_74, %c1_75, %c1_76, %c0_77], %74 {strides = array<i32>} : memref<2x2x9x9x4xf32, #tpu.memory_space<vmem>>, vector<1x1x8x8x4xf32>,
      %c0_78 = arith.constant 0 : index
      %c1_79 = arith.constant 1 : index
      %c0_80 = arith.constant 0 : index
      %c0_81 = arith.constant 0 : index
      %c0_82 = arith.constant 0 : index
      %c0_83 = arith.constant 0 : index
      %75 = vector.load %arg2[%c0_78, %c1_79, %c0_80, %c0_81, %c0_82, %c0_83] : memref<1x2x2x8x8x4xf32, #tpu.memory_space<vmem>>, vector<1x1x1x8x8x4xf32>
      %76 = vector.shape_cast %75 : vector<1x1x1x8x8x4xf32> to vector<8x8x4xf32>
      %77 = vector.shape_cast %0 : vector<1x4xf32> to vector<1x1x4xf32>
      %78 = vector.broadcast %77 : vector<1x1x4xf32> to vector<8x8x4xf32>
      %79 = arith.mulf %76, %78 : vector<8x8x4xf32>
      %80 = vector.shape_cast %1 : vector<1x4xf32> to vector<1x1x4xf32>
      %81 = vector.broadcast %80 : vector<1x1x4xf32> to vector<8x8x4xf32>
      %82 = arith.addf %79, %81 : vector<8x8x4xf32>
      %cst_84 = arith.constant 0.000000e+00 : f32
      %83 = vector.broadcast %cst_84 : f32 to vector<8x8x4xf32>
      %84 = arith.maximumf %82, %83 : vector<8x8x4xf32>
      %c0_85 = arith.constant 0 : index
      %c1_86 = arith.constant 1 : index
      %c1_87 = arith.constant 1 : index
      %c0_88 = arith.constant 0 : index
      %c0_89 = arith.constant 0 : index
      %85 = vector.load %arg9[%c0_85, %c1_86, %c1_87, %c0_88, %c0_89] : memref<2x2x9x9x4xf32, #tpu.memory_space<vmem>>, vector<1x1x8x8x4xf32>
      %86 = vector.shape_cast %85 : vector<1x1x8x8x4xf32> to vector<8x8x4xf32>
      %87 = vector.shape_cast %84 : vector<8x8x4xf32> to vector<1x1x8x8x4xf32>
      tpu.vector_store %arg9[%c0_85, %c1_86, %c1_87, %c0_88, %c0_89], %87 {strides = array<i32>} : memref<2x2x9x9x4xf32, #tpu.memory_space<vmem>>, vector<1x1x8x8x4xf32>,
      %c0_90 = arith.constant 0 : index
      %c0_91 = arith.constant 0 : index
      %c1_92 = arith.constant 1 : index
      %c0_93 = arith.constant 0 : index
      %c0_94 = arith.constant 0 : index
      %c0_95 = arith.constant 0 : index
      %88 = vector.load %arg2[%c0_90, %c0_91, %c1_92, %c0_93, %c0_94, %c0_95] : memref<1x2x2x8x8x4xf32, #tpu.memory_space<vmem>>, vector<1x1x1x8x8x4xf32>
      %89 = vector.shape_cast %88 : vector<1x1x1x8x8x4xf32> to vector<8x8x4xf32>
      %90 = vector.shape_cast %0 : vector<1x4xf32> to vector<1x1x4xf32>
      %91 = vector.broadcast %90 : vector<1x1x4xf32> to vector<8x8x4xf32>
      %92 = arith.mulf %89, %91 : vector<8x8x4xf32>
      %93 = vector.shape_cast %1 : vector<1x4xf32> to vector<1x1x4xf32>
      %94 = vector.broadcast %93 : vector<1x1x4xf32> to vector<8x8x4xf32>
      %95 = arith.addf %92, %94 : vector<8x8x4xf32>
      %cst_96 = arith.constant 0.000000e+00 : f32
      %96 = vector.broadcast %cst_96 : f32 to vector<8x8x4xf32>
      %97 = arith.maximumf %95, %96 : vector<8x8x4xf32>
      %c1_97 = arith.constant 1 : index
      %c0_98 = arith.constant 0 : index
      %c0_99 = arith.constant 0 : index
      %c1_100 = arith.constant 1 : index
      %c0_101 = arith.constant 0 : index
      %98 = vector.load %arg9[%c1_97, %c0_98, %c0_99, %c1_100, %c0_101] : memref<2x2x9x9x4xf32, #tpu.memory_space<vmem>>, vector<1x1x8x8x4xf32>
      %99 = vector.shape_cast %98 : vector<1x1x8x8x4xf32> to vector<8x8x4xf32>
      %100 = vector.shape_cast %97 : vector<8x8x4xf32> to vector<1x1x8x8x4xf32>
      tpu.vector_store %arg9[%c1_97, %c0_98, %c0_99, %c1_100, %c0_101], %100 {strides = array<i32>} : memref<2x2x9x9x4xf32, #tpu.memory_space<vmem>>, vector<1x1x8x8x4xf32>,
      %c0_102 = arith.constant 0 : index
      %c0_103 = arith.constant 0 : index
      %c0_104 = arith.constant 0 : index
      %c0_105 = arith.constant 0 : index
      %c0_106 = arith.constant 0 : index
      %c0_107 = arith.constant 0 : index
      %101 = vector.load %arg2[%c0_102, %c0_103, %c0_104, %c0_105, %c0_106, %c0_107] : memref<1x2x2x8x8x4xf32, #tpu.memory_space<vmem>>, vector<1x1x1x8x8x4xf32>
      %102 = vector.shape_cast %101 : vector<1x1x1x8x8x4xf32> to vector<8x8x4xf32>
      %103 = vector.shape_cast %0 : vector<1x4xf32> to vector<1x1x4xf32>
      %104 = vector.broadcast %103 : vector<1x1x4xf32> to vector<8x8x4xf32>
      %105 = arith.mulf %102, %104 : vector<8x8x4xf32>
      %106 = vector.shape_cast %1 : vector<1x4xf32> to vector<1x1x4xf32>
      %107 = vector.broadcast %106 : vector<1x1x4xf32> to vector<8x8x4xf32>
      %108 = arith.addf %105, %107 : vector<8x8x4xf32>
      %cst_108 = arith.constant 0.000000e+00 : f32
      %109 = vector.broadcast %cst_108 : f32 to vector<8x8x4xf32>
      %110 = arith.maximumf %108, %109 : vector<8x8x4xf32>
      %c1_109 = arith.constant 1 : index
      %c1_110 = arith.constant 1 : index
      %c0_111 = arith.constant 0 : index
      %c0_112 = arith.constant 0 : index
      %c0_113 = arith.constant 0 : index
      %111 = vector.load %arg9[%c1_109, %c1_110, %c0_111, %c0_112, %c0_113] : memref<2x2x9x9x4xf32, #tpu.memory_space<vmem>>, vector<1x1x8x8x4xf32>
      %112 = vector.shape_cast %111 : vector<1x1x8x8x4xf32> to vector<8x8x4xf32>
      %113 = vector.shape_cast %110 : vector<8x8x4xf32> to vector<1x1x8x8x4xf32>
      tpu.vector_store %arg9[%c1_109, %c1_110, %c0_111, %c0_112, %c0_113], %113 {strides = array<i32>} : memref<2x2x9x9x4xf32, #tpu.memory_space<vmem>>, vector<1x1x8x8x4xf32>,
    } else {
    }
    %c8_i32 = arith.constant 8 : i32
    %5 = arith.muli %arg1, %c8_i32 : i32
    %c0_i32_4 = arith.constant 0 : i32
    %6 = arith.addi %5, %c0_i32_4 : i32
    %c0_5 = arith.constant 0 : index
    %c0_6 = arith.constant 0 : index
    %7 = arith.index_cast %6 : i32 to index
    %c0_7 = arith.constant 0 : index
    %c0_8 = arith.constant 0 : index
    %8 = vector.load %arg9[%c0_5, %c0_6, %7, %c0_7, %c0_8] : memref<2x2x9x9x4xf32, #tpu.memory_space<vmem>>, vector<1x1x8x8x4xf32>
    %9 = vector.shape_cast %8 : vector<1x1x8x8x4xf32> to vector<8x8x4xf32>
    %c0_i32_9 = arith.constant 0 : i32
    %10 = arith.addi %5, %c0_i32_9 : i32
    %c0_10 = arith.constant 0 : index
    %c1 = arith.constant 1 : index
    %11 = arith.index_cast %10 : i32 to index
    %c0_11 = arith.constant 0 : index
    %c0_12 = arith.constant 0 : index
    %12 = vector.load %arg9[%c0_10, %c1, %11, %c0_11, %c0_12] : memref<2x2x9x9x4xf32, #tpu.memory_space<vmem>>, vector<1x1x8x8x4xf32>
    %13 = vector.shape_cast %12 : vector<1x1x8x8x4xf32> to vector<8x8x4xf32>
    %c0_i32_13 = arith.constant 0 : i32
    %14 = arith.addi %5, %c0_i32_13 : i32
    %c0_14 = arith.constant 0 : index
    %c0_15 = arith.constant 0 : index
    %15 = arith.index_cast %14 : i32 to index
    %c1_16 = arith.constant 1 : index
    %c0_17 = arith.constant 0 : index
    %16 = vector.load %arg9[%c0_14, %c0_15, %15, %c1_16, %c0_17] : memref<2x2x9x9x4xf32, #tpu.memory_space<vmem>>, vector<1x1x8x8x4xf32>
    %17 = vector.shape_cast %16 : vector<1x1x8x8x4xf32> to vector<8x8x4xf32>
    %c0_i32_18 = arith.constant 0 : i32
    %18 = arith.addi %5, %c0_i32_18 : i32
    %c1_19 = arith.constant 1 : index
    %c0_20 = arith.constant 0 : index
    %19 = arith.index_cast %18 : i32 to index
    %c0_21 = arith.constant 0 : index
    %c0_22 = arith.constant 0 : index
    %20 = vector.load %arg9[%c1_19, %c0_20, %19, %c0_21, %c0_22] : memref<2x2x9x9x4xf32, #tpu.memory_space<vmem>>, vector<1x1x8x8x4xf32>
    %21 = vector.shape_cast %20 : vector<1x1x8x8x4xf32> to vector<8x8x4xf32>
    %c0_i32_23 = arith.constant 0 : i32
    %22 = arith.addi %5, %c0_i32_23 : i32
    %c1_24 = arith.constant 1 : index
    %c1_25 = arith.constant 1 : index
    %23 = arith.index_cast %22 : i32 to index
    %c0_26 = arith.constant 0 : index
    %c0_27 = arith.constant 0 : index
    %24 = vector.load %arg9[%c1_24, %c1_25, %23, %c0_26, %c0_27] : memref<2x2x9x9x4xf32, #tpu.memory_space<vmem>>, vector<1x1x8x8x4xf32>
    %25 = vector.shape_cast %24 : vector<1x1x8x8x4xf32> to vector<8x8x4xf32>
    %c0_i32_28 = arith.constant 0 : i32
    %26 = arith.addi %5, %c0_i32_28 : i32
    %c1_29 = arith.constant 1 : index
    %c0_30 = arith.constant 0 : index
    %27 = arith.index_cast %26 : i32 to index
    %c1_31 = arith.constant 1 : index
    %c0_32 = arith.constant 0 : index
    %28 = vector.load %arg9[%c1_29, %c0_30, %27, %c1_31, %c0_32] : memref<2x2x9x9x4xf32, #tpu.memory_space<vmem>>, vector<1x1x8x8x4xf32>
    %29 = vector.shape_cast %28 : vector<1x1x8x8x4xf32> to vector<8x8x4xf32>
    %c1_i32 = arith.constant 1 : i32
    %30 = arith.addi %5, %c1_i32 : i32
    %c0_33 = arith.constant 0 : index
    %c0_34 = arith.constant 0 : index
    %31 = arith.index_cast %30 : i32 to index
    %c0_35 = arith.constant 0 : index
    %c0_36 = arith.constant 0 : index
    %32 = vector.load %arg9[%c0_33, %c0_34, %31, %c0_35, %c0_36] : memref<2x2x9x9x4xf32, #tpu.memory_space<vmem>>, vector<1x1x8x8x4xf32>
    %33 = vector.shape_cast %32 : vector<1x1x8x8x4xf32> to vector<8x8x4xf32>
    %c1_i32_37 = arith.constant 1 : i32
    %34 = arith.addi %5, %c1_i32_37 : i32
    %c0_38 = arith.constant 0 : index
    %c1_39 = arith.constant 1 : index
    %35 = arith.index_cast %34 : i32 to index
    %c0_40 = arith.constant 0 : index
    %c0_41 = arith.constant 0 : index
    %36 = vector.load %arg9[%c0_38, %c1_39, %35, %c0_40, %c0_41] : memref<2x2x9x9x4xf32, #tpu.memory_space<vmem>>, vector<1x1x8x8x4xf32>
    %37 = vector.shape_cast %36 : vector<1x1x8x8x4xf32> to vector<8x8x4xf32>
    %c1_i32_42 = arith.constant 1 : i32
    %38 = arith.addi %5, %c1_i32_42 : i32
    %c0_43 = arith.constant 0 : index
    %c0_44 = arith.constant 0 : index
    %39 = arith.index_cast %38 : i32 to index
    %c1_45 = arith.constant 1 : index
    %c0_46 = arith.constant 0 : index
    %40 = vector.load %arg9[%c0_43, %c0_44, %39, %c1_45, %c0_46] : memref<2x2x9x9x4xf32, #tpu.memory_space<vmem>>, vector<1x1x8x8x4xf32>
    %41 = vector.shape_cast %40 : vector<1x1x8x8x4xf32> to vector<8x8x4xf32>
    %42 = tpu.concatenate %9, %13, %17, %21, %25, %29, %33, %37, %41 in 2 : vector<8x8x4xf32>, vector<8x8x4xf32>, vector<8x8x4xf32>, vector<8x8x4xf32>, vector<8x8x4xf32>, vector<8x8x4xf32>, vector<8x8x4xf32>, vector<8x8x4xf32>, vector<8x8x4xf32> -> vector<8x8x36xf32>
    %43 = vector.shape_cast %42 : vector<8x8x36xf32> to vector<64x36xf32>
    %c0_47 = arith.constant 0 : index
    %c0_48 = arith.constant 0 : index
    %44 = vector.load %arg5[%c0_47, %c0_48] : memref<36x4xf32, #tpu.memory_space<vmem>>, vector<36x4xf32>
    %cst = arith.constant dense<0.000000e+00> : vector<64x4xf32>
    %45 = tpu.matmul %43, %44, %cst {dimension_numbers = #tpu.dot_dimension_numbers<[1], [0], [0], [1], [0, 0, 1, 1], [], []>} : vector<64x36xf32>, vector<36x4xf32>, vector<64x4xf32> -> vector<64x4xf32>
    %c0_49 = arith.constant 0 : index
    %c0_50 = arith.constant 0 : index
    %c0_51 = arith.constant 0 : index
    %46 = vector.load %arg6[%c0_49, %c0_50, %c0_51] : memref<1x64x4xf32, #tpu.memory_space<vmem>>, vector<1x64x4xf32>
    %47 = vector.shape_cast %46 : vector<1x64x4xf32> to vector<64x4xf32>
    %48 = vector.shape_cast %45 : vector<64x4xf32> to vector<1x64x4xf32>
    tpu.vector_store %arg6[%c0_49, %c0_50, %c0_51], %48 {strides = array<i32>} : memref<1x64x4xf32, #tpu.memory_space<vmem>>, vector<1x64x4xf32>,
    %cst_52 = arith.constant dense<0.000000e+00> : vector<4xf32>
    %49 = vector.multi_reduction <add>, %45, %cst_52 [0] : vector<64x4xf32> to vector<4xf32>
    %50 = vector.shape_cast %49 : vector<4xf32> to vector<1x4xf32>
    %c0_53 = arith.constant 0 : index
    %c0_54 = arith.constant 0 : index
    %c0_55 = arith.constant 0 : index
    %51 = vector.load %arg7[%c0_53, %c0_54, %c0_55] : memref<1x1x4xf32, #tpu.memory_space<vmem>>, vector<1x1x4xf32>
    %52 = vector.shape_cast %51 : vector<1x1x4xf32> to vector<1x4xf32>
    %53 = vector.shape_cast %50 : vector<1x4xf32> to vector<1x1x4xf32>
    tpu.vector_store %arg7[%c0_53, %c0_54, %c0_55], %53 {strides = array<i32>} : memref<1x1x4xf32, #tpu.memory_space<vmem>>, vector<1x1x4xf32>,
    %54 = arith.mulf %45, %45 : vector<64x4xf32>
    %cst_56 = arith.constant dense<0.000000e+00> : vector<4xf32>
    %55 = vector.multi_reduction <add>, %54, %cst_56 [0] : vector<64x4xf32> to vector<4xf32>
    %56 = vector.shape_cast %55 : vector<4xf32> to vector<1x4xf32>
    %c0_57 = arith.constant 0 : index
    %c0_58 = arith.constant 0 : index
    %c0_59 = arith.constant 0 : index
    %57 = vector.load %arg8[%c0_57, %c0_58, %c0_59] : memref<1x1x4xf32, #tpu.memory_space<vmem>>, vector<1x1x4xf32>
    %58 = vector.shape_cast %57 : vector<1x1x4xf32> to vector<1x4xf32>
    %59 = vector.shape_cast %56 : vector<1x4xf32> to vector<1x1x4xf32>
    tpu.vector_store %arg8[%c0_57, %c0_58, %c0_59], %59 {strides = array<i32>} : memref<1x1x4xf32, #tpu.memory_space<vmem>>, vector<1x1x4xf32>,
    return
  }
  func.func @transform_0(%arg0: i32, %arg1: i32) -> (i32, i32, i32, i32, i32, i32) {
    %c0_i32 = arith.constant 0 : i32
    %c0_i32_0 = arith.constant 0 : i32
    %c0_i32_1 = arith.constant 0 : i32
    %c0_i32_2 = arith.constant 0 : i32
    %c0_i32_3 = arith.constant 0 : i32
    %c0_i32_4 = arith.constant 0 : i32
    return %arg0, %c0_i32, %c0_i32_0, %c0_i32_1, %c0_i32_2, %c0_i32_3 : i32, i32, i32, i32, i32, i32
  }
  func.func @transform_1(%arg0: i32, %arg1: i32) -> (i32, i32) {
    %c0_i32 = arith.constant 0 : i32
    %c0_i32_0 = arith.constant 0 : i32
    %c0_i32_1 = arith.constant 0 : i32
    return %c0_i32, %c0_i32_0 : i32, i32
  }
  func.func @transform_2(%arg0: i32, %arg1: i32) -> (i32, i32) {
    %c0_i32 = arith.constant 0 : i32
    %c0_i32_0 = arith.constant 0 : i32
    %c0_i32_1 = arith.constant 0 : i32
    return %c0_i32, %c0_i32_0 : i32, i32
  }
  func.func @transform_3(%arg0: i32, %arg1: i32) -> (i32, i32) {
    %c0_i32 = arith.constant 0 : i32
    %c0_i32_0 = arith.constant 0 : i32
    %c0_i32_1 = arith.constant 0 : i32
    return %c0_i32, %c0_i32_0 : i32, i32
  }
  func.func @transform_4(%arg0: i32, %arg1: i32) -> (i32, i32, i32) {
    %c1_i32 = arith.constant 1 : i32
    %0 = arith.muli %arg0, %c1_i32 : i32
    %1 = arith.addi %0, %arg1 : i32
    %c0_i32 = arith.constant 0 : i32
    %c0_i32_0 = arith.constant 0 : i32
    %c0_i32_1 = arith.constant 0 : i32
    return %1, %c0_i32, %c0_i32_0 : i32, i32, i32
  }
  func.func @transform_5(%arg0: i32, %arg1: i32) -> (i32, i32, i32) {
    %c1_i32 = arith.constant 1 : i32
    %0 = arith.muli %arg0, %c1_i32 : i32
    %1 = arith.addi %0, %arg1 : i32
    %c0_i32 = arith.constant 0 : i32
    %c0_i32_0 = arith.constant 0 : i32
    %c0_i32_1 = arith.constant 0 : i32
    return %1, %c0_i32, %c0_i32_0 : i32, i32, i32
  }
  func.func @transform_6(%arg0: i32, %arg1: i32) -> (i32, i32, i32) {
    %c1_i32 = arith.constant 1 : i32
    %0 = arith.muli %arg0, %c1_i32 : i32
    %1 = arith.addi %0, %arg1 : i32
    %c0_i32 = arith.constant 0 : i32
    %c0_i32_0 = arith.constant 0 : i32
    %c0_i32_1 = arith.constant 0 : i32
    return %1, %c0_i32, %c0_i32_0 : i32, i32, i32
  }
}

module attributes {stable_mosaic.version = 11 : i64} {
  func.func @kernel(%arg0: i32, %arg1: memref<128x4xf32, #tpu.memory_space<vmem>>, %arg2: memref<4x16xf32, #tpu.memory_space<vmem>>, %arg3: memref<1x4xf32, #tpu.memory_space<vmem>>, %arg4: memref<1x4xf32, #tpu.memory_space<vmem>>, %arg5: memref<128x16xf32, #tpu.memory_space<vmem>>, %arg6: memref<1x1x16xf32, #tpu.memory_space<vmem>>, %arg7: memref<1x1x16xf32, #tpu.memory_space<vmem>>) attributes {dimension_semantics = [#tpu.dimension_semantics<parallel>], iteration_bounds = array<i64: 1>, scalar_prefetch = 0 : i64, scratch_operands = 0 : i64, tpu.core_type = #tpu.core_type<tc>, window_params = [{transform_indices = @transform_0, window_bounds = array<i64: 128, 4>}, {pipeline_mode = #tpu.pipeline_mode<synchronous>, transform_indices = @transform_1, window_bounds = array<i64: 4, 16>}, {pipeline_mode = #tpu.pipeline_mode<synchronous>, transform_indices = @transform_2, window_bounds = array<i64: 1, 4>}, {pipeline_mode = #tpu.pipeline_mode<synchronous>, transform_indices = @transform_3, window_bounds = array<i64: 1, 4>}, {transform_indices = @transform_4, window_bounds = array<i64: 128, 16>}, {transform_indices = @transform_5, window_bounds = array<i64: 1, 1, 16>}, {transform_indices = @transform_6, window_bounds = array<i64: 1, 1, 16>}]} {
    %c0 = arith.constant 0 : index
    %c0_0 = arith.constant 0 : index
    %0 = vector.load %arg1[%c0, %c0_0] : memref<128x4xf32, #tpu.memory_space<vmem>>, vector<128x4xf32>
    %c0_1 = arith.constant 0 : index
    %c0_2 = arith.constant 0 : index
    %1 = vector.load %arg3[%c0_1, %c0_2] : memref<1x4xf32, #tpu.memory_space<vmem>>, vector<1x4xf32>
    %2 = vector.broadcast %1 : vector<1x4xf32> to vector<128x4xf32>
    %3 = arith.mulf %0, %2 : vector<128x4xf32>
    %c0_3 = arith.constant 0 : index
    %c0_4 = arith.constant 0 : index
    %4 = vector.load %arg4[%c0_3, %c0_4] : memref<1x4xf32, #tpu.memory_space<vmem>>, vector<1x4xf32>
    %5 = vector.broadcast %4 : vector<1x4xf32> to vector<128x4xf32>
    %6 = arith.addf %3, %5 : vector<128x4xf32>
    %cst = arith.constant 0.000000e+00 : f32
    %7 = vector.broadcast %cst : f32 to vector<128x4xf32>
    %8 = arith.maximumf %6, %7 : vector<128x4xf32>
    %c0_5 = arith.constant 0 : index
    %c0_6 = arith.constant 0 : index
    %9 = vector.load %arg2[%c0_5, %c0_6] : memref<4x16xf32, #tpu.memory_space<vmem>>, vector<4x16xf32>
    %cst_7 = arith.constant dense<0.000000e+00> : vector<128x16xf32>
    %10 = tpu.matmul %8, %9, %cst_7 {dimension_numbers = #tpu.dot_dimension_numbers<[1], [0], [0], [1], [0, 0, 1, 1], [], []>} : vector<128x4xf32>, vector<4x16xf32>, vector<128x16xf32> -> vector<128x16xf32>
    %c0_8 = arith.constant 0 : index
    %c0_9 = arith.constant 0 : index
    %11 = vector.load %arg5[%c0_8, %c0_9] : memref<128x16xf32, #tpu.memory_space<vmem>>, vector<128x16xf32>
    tpu.vector_store %arg5[%c0_8, %c0_9], %10 {strides = array<i32>} : memref<128x16xf32, #tpu.memory_space<vmem>>, vector<128x16xf32>,
    %cst_10 = arith.constant dense<0.000000e+00> : vector<16xf32>
    %12 = vector.multi_reduction <add>, %10, %cst_10 [0] : vector<128x16xf32> to vector<16xf32>
    %13 = vector.shape_cast %12 : vector<16xf32> to vector<1x16xf32>
    %c0_11 = arith.constant 0 : index
    %c0_12 = arith.constant 0 : index
    %c0_13 = arith.constant 0 : index
    %14 = vector.load %arg6[%c0_11, %c0_12, %c0_13] : memref<1x1x16xf32, #tpu.memory_space<vmem>>, vector<1x1x16xf32>
    %15 = vector.shape_cast %14 : vector<1x1x16xf32> to vector<1x16xf32>
    %16 = vector.shape_cast %13 : vector<1x16xf32> to vector<1x1x16xf32>
    tpu.vector_store %arg6[%c0_11, %c0_12, %c0_13], %16 {strides = array<i32>} : memref<1x1x16xf32, #tpu.memory_space<vmem>>, vector<1x1x16xf32>,
    %17 = arith.mulf %10, %10 : vector<128x16xf32>
    %cst_14 = arith.constant dense<0.000000e+00> : vector<16xf32>
    %18 = vector.multi_reduction <add>, %17, %cst_14 [0] : vector<128x16xf32> to vector<16xf32>
    %19 = vector.shape_cast %18 : vector<16xf32> to vector<1x16xf32>
    %c0_15 = arith.constant 0 : index
    %c0_16 = arith.constant 0 : index
    %c0_17 = arith.constant 0 : index
    %20 = vector.load %arg7[%c0_15, %c0_16, %c0_17] : memref<1x1x16xf32, #tpu.memory_space<vmem>>, vector<1x1x16xf32>
    %21 = vector.shape_cast %20 : vector<1x1x16xf32> to vector<1x16xf32>
    %22 = vector.shape_cast %19 : vector<1x16xf32> to vector<1x1x16xf32>
    tpu.vector_store %arg7[%c0_15, %c0_16, %c0_17], %22 {strides = array<i32>} : memref<1x1x16xf32, #tpu.memory_space<vmem>>, vector<1x1x16xf32>,
    return
  }
  func.func @transform_0(%arg0: i32) -> (i32, i32) {
    %c0_i32 = arith.constant 0 : i32
    %c0_i32_0 = arith.constant 0 : i32
    return %arg0, %c0_i32 : i32, i32
  }
  func.func @transform_1(%arg0: i32) -> (i32, i32) {
    %c0_i32 = arith.constant 0 : i32
    %c0_i32_0 = arith.constant 0 : i32
    %c0_i32_1 = arith.constant 0 : i32
    return %c0_i32, %c0_i32_0 : i32, i32
  }
  func.func @transform_2(%arg0: i32) -> (i32, i32) {
    %c0_i32 = arith.constant 0 : i32
    %c0_i32_0 = arith.constant 0 : i32
    %c0_i32_1 = arith.constant 0 : i32
    return %c0_i32, %c0_i32_0 : i32, i32
  }
  func.func @transform_3(%arg0: i32) -> (i32, i32) {
    %c0_i32 = arith.constant 0 : i32
    %c0_i32_0 = arith.constant 0 : i32
    %c0_i32_1 = arith.constant 0 : i32
    return %c0_i32, %c0_i32_0 : i32, i32
  }
  func.func @transform_4(%arg0: i32) -> (i32, i32) {
    %c0_i32 = arith.constant 0 : i32
    %c0_i32_0 = arith.constant 0 : i32
    return %arg0, %c0_i32 : i32, i32
  }
  func.func @transform_5(%arg0: i32) -> (i32, i32, i32) {
    %c0_i32 = arith.constant 0 : i32
    %c0_i32_0 = arith.constant 0 : i32
    %c0_i32_1 = arith.constant 0 : i32
    return %arg0, %c0_i32, %c0_i32_0 : i32, i32, i32
  }
  func.func @transform_6(%arg0: i32) -> (i32, i32, i32) {
    %c0_i32 = arith.constant 0 : i32
    %c0_i32_0 = arith.constant 0 : i32
    %c0_i32_1 = arith.constant 0 : i32
    return %arg0, %c0_i32, %c0_i32_0 : i32, i32, i32
  }
}

module attributes {stable_mosaic.version = 11 : i64} {
  func.func @kernel(%arg0: i32, %arg1: memref<128x16xf32, #tpu.memory_space<vmem>>, %arg2: memref<1x16xf32, #tpu.memory_space<vmem>>, %arg3: memref<1x16xf32, #tpu.memory_space<vmem>>, %arg4: memref<128x4xf32, #tpu.memory_space<vmem>>, %arg5: memref<4x16xf32, #tpu.memory_space<vmem>>, %arg6: memref<128x16xf32, #tpu.memory_space<vmem>>) attributes {dimension_semantics = [#tpu.dimension_semantics<parallel>], iteration_bounds = array<i64: 1>, scalar_prefetch = 0 : i64, scratch_operands = 0 : i64, tpu.core_type = #tpu.core_type<tc>, window_params = [{transform_indices = @transform_0, window_bounds = array<i64: 128, 16>}, {pipeline_mode = #tpu.pipeline_mode<synchronous>, transform_indices = @transform_1, window_bounds = array<i64: 1, 16>}, {pipeline_mode = #tpu.pipeline_mode<synchronous>, transform_indices = @transform_2, window_bounds = array<i64: 1, 16>}, {transform_indices = @transform_3, window_bounds = array<i64: 128, 4>}, {pipeline_mode = #tpu.pipeline_mode<synchronous>, transform_indices = @transform_4, window_bounds = array<i64: 4, 16>}, {transform_indices = @transform_5, window_bounds = array<i64: 128, 16>}]} {
    %c0 = arith.constant 0 : index
    %c0_0 = arith.constant 0 : index
    %0 = vector.load %arg1[%c0, %c0_0] : memref<128x16xf32, #tpu.memory_space<vmem>>, vector<128x16xf32>
    %c0_1 = arith.constant 0 : index
    %c0_2 = arith.constant 0 : index
    %1 = vector.load %arg2[%c0_1, %c0_2] : memref<1x16xf32, #tpu.memory_space<vmem>>, vector<1x16xf32>
    %2 = vector.broadcast %1 : vector<1x16xf32> to vector<128x16xf32>
    %3 = arith.mulf %0, %2 : vector<128x16xf32>
    %c0_3 = arith.constant 0 : index
    %c0_4 = arith.constant 0 : index
    %4 = vector.load %arg3[%c0_3, %c0_4] : memref<1x16xf32, #tpu.memory_space<vmem>>, vector<1x16xf32>
    %5 = vector.broadcast %4 : vector<1x16xf32> to vector<128x16xf32>
    %6 = arith.addf %3, %5 : vector<128x16xf32>
    %c0_5 = arith.constant 0 : index
    %c0_6 = arith.constant 0 : index
    %7 = vector.load %arg4[%c0_5, %c0_6] : memref<128x4xf32, #tpu.memory_space<vmem>>, vector<128x4xf32>
    %c0_7 = arith.constant 0 : index
    %c0_8 = arith.constant 0 : index
    %8 = vector.load %arg5[%c0_7, %c0_8] : memref<4x16xf32, #tpu.memory_space<vmem>>, vector<4x16xf32>
    %cst = arith.constant dense<0.000000e+00> : vector<128x16xf32>
    %9 = tpu.matmul %7, %8, %cst {dimension_numbers = #tpu.dot_dimension_numbers<[1], [0], [0], [1], [0, 0, 1, 1], [], []>} : vector<128x4xf32>, vector<4x16xf32>, vector<128x16xf32> -> vector<128x16xf32>
    %10 = arith.addf %6, %9 : vector<128x16xf32>
    %cst_9 = arith.constant 0.000000e+00 : f32
    %11 = vector.broadcast %cst_9 : f32 to vector<128x16xf32>
    %12 = arith.maximumf %10, %11 : vector<128x16xf32>
    %c0_10 = arith.constant 0 : index
    %c0_11 = arith.constant 0 : index
    %13 = vector.load %arg6[%c0_10, %c0_11] : memref<128x16xf32, #tpu.memory_space<vmem>>, vector<128x16xf32>
    tpu.vector_store %arg6[%c0_10, %c0_11], %12 {strides = array<i32>} : memref<128x16xf32, #tpu.memory_space<vmem>>, vector<128x16xf32>,
    return
  }
  func.func @transform_0(%arg0: i32) -> (i32, i32) {
    %c0_i32 = arith.constant 0 : i32
    %c0_i32_0 = arith.constant 0 : i32
    return %arg0, %c0_i32 : i32, i32
  }
  func.func @transform_1(%arg0: i32) -> (i32, i32) {
    %c0_i32 = arith.constant 0 : i32
    %c0_i32_0 = arith.constant 0 : i32
    %c0_i32_1 = arith.constant 0 : i32
    return %c0_i32, %c0_i32_0 : i32, i32
  }
  func.func @transform_2(%arg0: i32) -> (i32, i32) {
    %c0_i32 = arith.constant 0 : i32
    %c0_i32_0 = arith.constant 0 : i32
    %c0_i32_1 = arith.constant 0 : i32
    return %c0_i32, %c0_i32_0 : i32, i32
  }
  func.func @transform_3(%arg0: i32) -> (i32, i32) {
    %c0_i32 = arith.constant 0 : i32
    %c0_i32_0 = arith.constant 0 : i32
    return %arg0, %c0_i32 : i32, i32
  }
  func.func @transform_4(%arg0: i32) -> (i32, i32) {
    %c0_i32 = arith.constant 0 : i32
    %c0_i32_0 = arith.constant 0 : i32
    %c0_i32_1 = arith.constant 0 : i32
    return %c0_i32, %c0_i32_0 : i32, i32
  }
  func.func @transform_5(%arg0: i32) -> (i32, i32) {
    %c0_i32 = arith.constant 0 : i32
    %c0_i32_0 = arith.constant 0 : i32
    return %arg0, %c0_i32 : i32, i32
  }
}

</mosaic_0001>

<llo_original>
// kernel: _lambda_.5
$region0: #{_lambda_.5}
  #allocation0 [shape = 'u32[]', space=smem, size = 0x4, offset = 0x4, fixed_abs, tag = 'smem constant byte address 0x4 - core index']
  #allocation1 [shape = 'u32[144,128]{1,0:T(1,128)}', space=vmem, size = 0x12000, scoped, tag = 'internal scratch']
  #allocation2 [shape = 'f32[2,2,9,9,4]{4,3,2,1,0:T(8,128)}', space=vmem, size = 0x48000, scoped, tag = 'scratch operand']
  %s0 = inlined_call_operand.hbm [shape: f32[2,2,2,8,8,4], index: 0, kind: input, shape index: {}]
  %s1 = inlined_call_operand.hbm [shape: f32[1,4], index: 1, kind: input, shape index: {}]
  %s2 = inlined_call_operand.hbm [shape: f32[1,4], index: 2, kind: input, shape index: {}]
  %s3 = inlined_call_operand.hbm [shape: f32[36,4], index: 3, kind: input, shape index: {}]
  %s4 = inlined_call_operand.hbm [shape: f32[2,64,4], index: 4, kind: output, shape index: {0}]
  %s5 = inlined_call_operand.hbm [shape: f32[2,1,4], index: 5, kind: output, shape index: {1}]
  %s6 = inlined_call_operand.hbm [shape: f32[2,1,4], index: 6, kind: output, shape index: {2}]
  %7 = xla_tuple %s4, %s5, %s6
  %s8 = sld [smem:[#allocation0]]
  $region85: #{_lambda_.5} parent=0
    _
  %s10 = ssub.s32 1, %s8
  %s11 = scalar_select 0, %s10, %s8
  $region1: #{_lambda_.5} parent=0
    #allocation3 [shape = 'u8[262144]{0}', space=vmem, size = 0x40000, scoped, tag = 'input window, operand 0']
    #allocation4 [shape = 's32[2]{0}', space=sflag, size = 0x8, scoped, tag = 'scoped memory for _lambda_.5']
    #allocation5 [shape = 's32[2]{0}', space=sflag, size = 0x8, scoped, tag = 'scoped memory for _lambda_.5']
    #allocation6 [shape = 'u8[512]{0}', space=vmem, size = 0x400, scoped, tag = 'input window, operand 1, single buffered']
    #allocation7 [shape = 's32[1]{0}', space=sflag, size = 0x4, scoped, tag = 'scoped memory for _lambda_.5']
    #allocation8 [shape = 'u8[512]{0}', space=vmem, size = 0x400, scoped, tag = 'input window, operand 2, single buffered']
    #allocation9 [shape = 'u8[20480]{0}', space=vmem, size = 0x5000, scoped, tag = 'input window, operand 3, single buffered']
    #allocation10 [shape = 's32[1]{0}', space=sflag, size = 0x4, scoped, tag = 'scoped memory for _lambda_.5']
    #allocation11 [shape = 'u8[65536]{0}', space=vmem, size = 0x10000, scoped, tag = 'output window, operand 0']
    #allocation12 [shape = 'u8[1024]{0}', space=vmem, size = 0x400, scoped, tag = 'output window, operand 1']
    #allocation13 [shape = 's32[2]{0}', space=sflag, size = 0x8, scoped, tag = 'scoped memory for _lambda_.5']
    #allocation14 [shape = 'u8[1024]{0}', space=vmem, size = 0x400, scoped, tag = 'output window, operand 2']
    %12 = vsyncpa [#allocation4], 0
    %s13 = scalar_lea.sflag [#allocation4], 1
    %14 = vsyncpa %s13, 0
    %15 = vsyncpa [#allocation7], 0
    %16 = vsyncpa [#allocation10], 0
    %17 = vsyncpa [#allocation5], 0
    %s18 = scalar_lea.sflag [#allocation5], 1
    %19 = vsyncpa %s18, 0
    %20 = vsyncpa [#allocation13], 0
    %s21 = scalar_lea.sflag [#allocation13], 1
    %22 = vsyncpa %s21, 0
    loop: start=0, step=1, limit=4
    $region2: #{_lambda_.5} parent=1 // loop_pre_header
      _
    $region3: #{_lambda_.5} parent=1 // loop_header
      %s24 = sphi 0, %s28
      %p25 = scmp.ge.s32.totalorder %s24, 4
      %s31 = sphi 0, %s43
      %s32 = sphi 0, %s39
      %s33 = sphi 0, %s31
      %s34 = sphi 0, %s32
      %s35 = sphi 0, %s33
      %s36 = sphi 0, %s34
      %s46 = sphi 0, %s48
      %s49 = sphi 0, %s46
      %s50 = sphi 0, %s49
      %s66 = sphi 0, %s50
      %s70 = sphi 0, %s70
      %s72 = sphi 0, %s70
      %s73 = sphi 0, %s72
      %s87 = sphi 0, %s73
      %s91 = sphi 0, %s91
      %s93 = sphi 0, %s91
      %s94 = sphi 0, %s93
      %s108 = sphi 0, %s94
      %s112 = sphi 0, %s112
      %s114 = sphi 0, %s112
      %s115 = sphi 0, %s114
      %s129 = sphi 0, %s115
      %s137 = sphi 0, %s139
      %s140 = sphi 0, %s137
      %s141 = sphi 0, %s140
      %s157 = sphi 0, %s141
      %s165 = sphi 0, %s167
      %s168 = sphi 0, %s165
      %s169 = sphi 0, %s168
      %s185 = sphi 0, %s169
      %s193 = sphi 0, %s195
      %s196 = sphi 0, %s193
      %s197 = sphi 0, %s196
      %s213 = sphi 0, %s197
    $region4: #{_lambda_.5} parent=1 // loop_header_branch
      %27 = sbr.rel (%p25) target = $region8
    $region5: #{_lambda_.5} parent=1 // loop_body
      %s29 = ssub.s32 %s24, 1
      %s30 = ssub.s32 %s24, 2
      %s37 = sadd.s32 1, %s32
      %p38 = scmp.ge.s32.totalorder %s37, 1
      %s39 = scalar_select %p38, 0, %s37
      %s40 = sadd.s32 1, %s31
      %s41 = scalar_select %p38, %s40, %s31
      %p42 = scmp.ge.s32.totalorder %s41, 2
      %s43 = scalar_select %p42, 0, %s41
      %s44 = ssub.s32 %s31, %s43
      %p45 = scmp.eq.s32.totalorder %s44, 0
      %s47 = sadd.s32 %s46, 1
      %s48 = scalar_select %p45, %s46, %s47
      %p51 = pneg %p45
      %p52 = scmp.eq.s32.totalorder %s24, 1
      %p53 = por %p51, %p52
      %p54 = scmp.ne.s32.totalorder %s46, %s49
      %p55 = scmp.eq.s32.totalorder %s24, 0
      %p56 = por %p54, %p55
      %p57 = scmp.ne.s32.totalorder %s46, %s49
      %p58 = scmp.eq.s32.totalorder %s29, 1
      %p59 = por %p57, %p58
      %p60 = scmp.ne.s32.totalorder %s49, %s50
      %p61 = scmp.eq.s32.totalorder %s29, 0
      %p62 = por %p60, %p61
      %p63 = scmp.ne.s32.totalorder %s49, %s50
      %p64 = scmp.eq.s32.totalorder %s30, 1
      %p65 = por %p63, %p64
      %p67 = scmp.ne.s32.totalorder %s50, %s66
      %p68 = scmp.eq.s32.totalorder %s30, 0
      %p69 = por %p67, %p68
      %s71 = sadd.s32 %s70, 1
      %p74 = scmp.eq.s32.totalorder %s24, 1
      %p75 = scmp.ne.s32.totalorder %s70, %s72
      %p76 = scmp.eq.s32.totalorder %s24, 0
      %p77 = por %p75, %p76
      %p78 = scmp.ne.s32.totalorder %s70, %s72
      %p79 = scmp.eq.s32.totalorder %s29, 1
      %p80 = por %p78, %p79
      %p81 = scmp.ne.s32.totalorder %s72, %s73
      %p82 = scmp.eq.s32.totalorder %s29, 0
      %p83 = por %p81, %p82
      %p84 = scmp.ne.s32.totalorder %s72, %s73
      %p85 = scmp.eq.s32.totalorder %s30, 1
      %p86 = por %p84, %p85
      %p88 = scmp.ne.s32.totalorder %s73, %s87
      %p89 = scmp.eq.s32.totalorder %s30, 0
      %p90 = por %p88, %p89
      %s92 = sadd.s32 %s91, 1
      %p95 = scmp.eq.s32.totalorder %s24, 1
      %p96 = scmp.ne.s32.totalorder %s91, %s93
      %p97 = scmp.eq.s32.totalorder %s24, 0
      %p98 = por %p96, %p97
      %p99 = scmp.ne.s32.totalorder %s91, %s93
      %p100 = scmp.eq.s32.totalorder %s29, 1
      %p101 = por %p99, %p100
      %p102 = scmp.ne.s32.totalorder %s93, %s94
      %p103 = scmp.eq.s32.totalorder %s29, 0
      %p104 = por %p102, %p103
      %p105 = scmp.ne.s32.totalorder %s93, %s94
      %p106 = scmp.eq.s32.totalorder %s30, 1
      %p107 = por %p105, %p106
      %p109 = scmp.ne.s32.totalorder %s94, %s108
      %p110 = scmp.eq.s32.totalorder %s30, 0
      %p111 = por %p109, %p110
      %s113 = sadd.s32 %s112, 1
      %p116 = scmp.eq.s32.totalorder %s24, 1
      %p117 = scmp.ne.s32.totalorder %s112, %s114
      %p118 = scmp.eq.s32.totalorder %s24, 0
      %p119 = por %p117, %p118
      %p120 = scmp.ne.s32.totalorder %s112, %s114
      %p121 = scmp.eq.s32.totalorder %s29, 1
      %p122 = por %p120, %p121
      %p123 = scmp.ne.s32.totalorder %s114, %s115
      %p124 = scmp.eq.s32.totalorder %s29, 0
      %p125 = por %p123, %p124
      %p126 = scmp.ne.s32.totalorder %s114, %s115
      %p127 = scmp.eq.s32.totalorder %s30, 1
      %p128 = por %p126, %p127
      %p130 = scmp.ne.s32.totalorder %s115, %s129
      %p131 = scmp.eq.s32.totalorder %s30, 0
      %p132 = por %p130, %p131
      %s133 = sadd.s32 %s31, %s32
      %s134 = sadd.s32 %s43, %s39
      %s135 = ssub.s32 %s133, %s134
      %p136 = scmp.eq.s32.totalorder %s135, 0
      %s138 = sadd.s32 %s137, 1
      %s139 = scalar_select %p136, %s137, %s138
      %p142 = pneg %p136
      %p143 = scmp.eq.s32.totalorder %s24, 1
      %p144 = por %p142, %p143
      %p145 = scmp.ne.s32.totalorder %s137, %s140
      %p146 = scmp.eq.s32.totalorder %s24, 0
      %p147 = por %p145, %p146
      %p148 = scmp.ne.s32.totalorder %s137, %s140
      %p149 = scmp.eq.s32.totalorder %s29, 1
      %p150 = por %p148, %p149
      %p151 = scmp.ne.s32.totalorder %s140, %s141
      %p152 = scmp.eq.s32.totalorder %s29, 0
      %p153 = por %p151, %p152
      %p154 = scmp.ne.s32.totalorder %s140, %s141
      %p155 = scmp.eq.s32.totalorder %s30, 1
      %p156 = por %p154, %p155
      %p158 = scmp.ne.s32.totalorder %s141, %s157
      %p159 = scmp.eq.s32.totalorder %s30, 0
      %p160 = por %p158, %p159
      %s161 = sadd.s32 %s31, %s32
      %s162 = sadd.s32 %s43, %s39
      %s163 = ssub.s32 %s161, %s162
      %p164 = scmp.eq.s32.totalorder %s163, 0
      %s166 = sadd.s32 %s165, 1
      %s167 = scalar_select %p164, %s165, %s166
      %p170 = pneg %p164
      %p171 = scmp.eq.s32.totalorder %s24, 1
      %p172 = por %p170, %p171
      %p173 = scmp.ne.s32.totalorder %s165, %s168
      %p174 = scmp.eq.s32.totalorder %s24, 0
      %p175 = por %p173, %p174
      %p176 = scmp.ne.s32.totalorder %s165, %s168
      %p177 = scmp.eq.s32.totalorder %s29, 1
      %p178 = por %p176, %p177
      %p179 = scmp.ne.s32.totalorder %s168, %s169
      %p180 = scmp.eq.s32.totalorder %s29, 0
      %p181 = por %p179, %p180
      %p182 = scmp.ne.s32.totalorder %s168, %s169
      %p183 = scmp.eq.s32.totalorder %s30, 1
      %p184 = por %p182, %p183
      %p186 = scmp.ne.s32.totalorder %s169, %s185
      %p187 = scmp.eq.s32.totalorder %s30, 0
      %p188 = por %p186, %p187
      %s189 = sadd.s32 %s31, %s32
      %s190 = sadd.s32 %s43, %s39
      %s191 = ssub.s32 %s189, %s190
      %p192 = scmp.eq.s32.totalorder %s191, 0
      %s194 = sadd.s32 %s193, 1
      %s195 = scalar_select %p192, %s193, %s194
      %p198 = pneg %p192
      %p199 = scmp.eq.s32.totalorder %s24, 1
      %p200 = por %p198, %p199
      %p201 = scmp.ne.s32.totalorder %s193, %s196
      %p202 = scmp.eq.s32.totalorder %s24, 0
      %p203 = por %p201, %p202
      %p204 = scmp.ne.s32.totalorder %s193, %s196
      %p205 = scmp.eq.s32.totalorder %s29, 1
      %p206 = por %p204, %p205
      %p207 = scmp.ne.s32.totalorder %s196, %s197
      %p208 = scmp.eq.s32.totalorder %s29, 0
      %p209 = por %p207, %p208
      %p210 = scmp.ne.s32.totalorder %s196, %s197
      %p211 = scmp.eq.s32.totalorder %s30, 1
      %p212 = por %p210, %p211
      %p214 = scmp.ne.s32.totalorder %s197, %s213
      %p215 = scmp.eq.s32.totalorder %s30, 0
      %p216 = por %p214, %p215
      %p217 = scmp.le.s32.totalorder 1, %s24
      %p218 = scmp.lt.s32.totalorder %s24, 3
      %p219 = pnand %p217, %p218
      %p220 = pneg %p219
      // Predicated region
      $region9: #{_lambda_.5} parent=5 // pred_check
        _
      $region10: #{_lambda_.5} parent=5 // pred_check_branch
        %222 = sbr.rel (%p219) target = $region12
      $region11: #{_lambda_.5} parent=5 // pred_region
        %s223 = ssub.s32 %s24, 1
        // Predicated region
        $region13: #{_lambda_.5} parent=11 // pred_check
          %p224 = pneg %p83
        $region14: #{_lambda_.5} parent=11 // pred_check_branch
          %226 = sbr.rel (%p224) target = $region16
        $region15: #{_lambda_.5} parent=11 // pred_region
          %s228 = ssub.s32 16, 16
          %229 = vsyncadd [#allocation7], %s228
          %s231 = sshll.u32 [#allocation6], 4
          %s232 = int_to_ptr.vmem [resolvable:$true] %s231
          %234 = dma.hbm_to_vmem [thread:$0]  %s1, 16, %s232, [#allocation7]
        $region16: #{_lambda_.5} parent=11 // pred_fallthru
          _
        // Predicated region
        $region17: #{_lambda_.5} parent=11 // pred_check
          %p235 = pneg %p104
        $region18: #{_lambda_.5} parent=11 // pred_check_branch
          %237 = sbr.rel (%p235) target = $region20
        $region19: #{_lambda_.5} parent=11 // pred_region
          %s239 = ssub.s32 16, 16
          %240 = vsyncadd [#allocation7], %s239
          %s242 = sshll.u32 [#allocation8], 4
          %s243 = int_to_ptr.vmem [resolvable:$true] %s242
          %245 = dma.hbm_to_vmem [thread:$0]  %s2, 16, %s243, [#allocation7]
        $region20: #{_lambda_.5} parent=11 // pred_fallthru
          _
        // Predicated region
        $region21: #{_lambda_.5} parent=11 // pred_check
          %p246 = pneg %p125
        $region22: #{_lambda_.5} parent=11 // pred_check_branch
          %248 = sbr.rel (%p246) target = $region24
        $region23: #{_lambda_.5} parent=11 // pred_region
          %s250 = ssub.s32 640, 640
          %251 = vsyncadd [#allocation10], %s250
          %s252 = sshll.u32 [#allocation9], 4
          %s253 = int_to_ptr.vmem [resolvable:$true] %s252
          %258 = dma.hbm_to_vmem [thread:$0]  %s3, 640, %s253, [#allocation10], 128, 128, 8
        $region24: #{_lambda_.5} parent=11 // pred_fallthru
          _
      $region12: #{_lambda_.5} parent=5 // pred_fallthru
        _
      %p259 = scmp.lt.s32.totalorder %s24, 2
      // Predicated region
      $region25: #{_lambda_.5} parent=5 // pred_check
        %p260 = pneg %p259
      $region26: #{_lambda_.5} parent=5 // pred_check_branch
        %262 = sbr.rel (%p260) target = $region28
      $region27: #{_lambda_.5} parent=5 // pred_region
        // Predicated region
        $region29: #{_lambda_.5} parent=27 // pred_check
          %p263 = pneg %p56
        $region30: #{_lambda_.5} parent=27 // pred_check_branch
          %265 = sbr.rel (%p263) target = $region32
        $region31: #{_lambda_.5} parent=27 // pred_region
          %s266 = sand.u32 %s46, 1
          %s267 = scalar_lea.sflag [#allocation4], %s266
          %s268 = sand.u32 %s46, 1
          %s269 = smul.addr %s268, 256
          %s270 = scalar_lea.vmem [#allocation3], %s269
          %s272 = ssub.s32 4096, 4096
          %273 = vsyncadd %s267, %s272
          %s274 = smul.addr %s31, 32
          %s275 = smul.addr %s274, 128
          %s276 = scalar_lea.hbm %s0, %s275
          %s277 = sshll.u32 %s270, 4
          %s278 = int_to_ptr.vmem [resolvable:$true] %s277
          %283 = dma.hbm_to_vmem [thread:$0]  %s276, 4096, %s278, %s267, 128, 128, 8
        $region32: #{_lambda_.5} parent=27 // pred_fallthru
          _
      $region28: #{_lambda_.5} parent=5 // pred_fallthru
        _
      %p284 = scmp.le.s32.totalorder 1, %s24
      %p285 = scmp.lt.s32.totalorder %s24, 3
      %p286 = pnand %p284, %p285
      %p287 = pneg %p286
      // Predicated region
      $region33: #{_lambda_.5} parent=5 // pred_check
        _
      $region34: #{_lambda_.5} parent=5 // pred_check_branch
        %289 = sbr.rel (%p286) target = $region36
      $region35: #{_lambda_.5} parent=5 // pred_region
        %s290 = ssub.s32 %s24, 1
        %s291 = sand.u32 %s49, 1
        %s292 = scalar_lea.sflag [#allocation4], %s291
        %s293 = sand.u32 %s49, 1
        %s294 = smul.addr %s293, 256
        %s295 = scalar_lea.vmem [#allocation3], %s294
        // Predicated region
        $region37: #{_lambda_.5} parent=35 // pred_check
          %p296 = pneg %p62
        $region38: #{_lambda_.5} parent=35 // pred_check_branch
          %298 = sbr.rel (%p296) target = $region40
        $region39: #{_lambda_.5} parent=35 // pred_region
          %299 = dma.done %s292, 4096
        $region40: #{_lambda_.5} parent=35 // pred_fallthru
          _
        // Predicated region
        $region41: #{_lambda_.5} parent=35 // pred_check
          %p300 = pneg %p83
        $region42: #{_lambda_.5} parent=35 // pred_check_branch
          %302 = sbr.rel (%p300) target = $region44
        $region43: #{_lambda_.5} parent=35 // pred_region
          %303 = dma.done [#allocation7], 16
        $region44: #{_lambda_.5} parent=35 // pred_fallthru
          _
        // Predicated region
        $region45: #{_lambda_.5} parent=35 // pred_check
          %p304 = pneg %p104
        $region46: #{_lambda_.5} parent=35 // pred_check_branch
          %306 = sbr.rel (%p304) target = $region48
        $region47: #{_lambda_.5} parent=35 // pred_region
          %307 = dma.done [#allocation7], 16
        $region48: #{_lambda_.5} parent=35 // pred_fallthru
          _
        // Predicated region
        $region49: #{_lambda_.5} parent=35 // pred_check
          %p308 = pneg %p125
        $region50: #{_lambda_.5} parent=35 // pred_check_branch
          %310 = sbr.rel (%p308) target = $region52
        $region51: #{_lambda_.5} parent=35 // pred_region
          %311 = dma.done [#allocation10], 640
        $region52: #{_lambda_.5} parent=35 // pred_fallthru
          _
        %s312 = sand.u32 %s49, 1
        %s313 = scalar_lea.sflag [#allocation4], %s312
        %s314 = sand.u32 %s49, 1
        %s315 = smul.addr %s314, 256
        %s316 = scalar_lea.vmem [#allocation3], %s315
        %p317 = pneg %p62
        %p318 = pneg %p59
        %p319 = pneg %p83
        %p320 = pneg %p80
        %p321 = pneg %p104
        %p322 = pneg %p101
        %p323 = pneg %p125
        %p324 = pneg %p122
        %p325 = pneg %p153
        %p326 = pneg %p150
        %s327 = sand.u32 %s140, 1
        %s328 = scalar_lea.sflag [#allocation5], %s327
        %s329 = sand.u32 %s140, 1
        %s330 = smul.addr %s329, 64
        %s331 = scalar_lea.vmem [#allocation11], %s330
        %p332 = pneg %p181
        %p333 = pneg %p178
        %s334 = sand.u32 %s29, 1
        %s335 = scalar_lea.sflag [#allocation13], %s334
        %s336 = sand.u32 %s168, 1
        %s337 = scalar_lea.vmem [#allocation12], %s336
        %p338 = pneg %p209
        %p339 = pneg %p206
        %s340 = sand.u32 %s29, 1
        %s341 = scalar_lea.sflag [#allocation13], %s340
        %s342 = sand.u32 %s196, 1
        %s343 = scalar_lea.vmem [#allocation14], %s342
        %s344 = sadd.s32 %s33, %s34
        %s345 = sadd.s32 %s33, %s34
        %s346 = sadd.s32 %s33, %s34
        %v347 = vld [vmem:[#allocation6] sm:$0x1]
        %v348 = vld [vmem:[#allocation8] sm:$0x1]
        %p349 = scmp.eq.s32.totalorder %s34, 0
        // Predicated region
        $region53: #{_lambda_.5} parent=35 // pred_check
          %p350 = pneg %p349
        $region54: #{_lambda_.5} parent=35 // pred_check_branch
          %352 = sbr.rel (%p350) target = $region56
        $region55: #{_lambda_.5} parent=35 // pred_region
          %vm353 = vcmask 31744
          %354 = vst.msk [vmem:[#allocation2] sm:$0xff] %vm353, 0.0
          %vm355 = vcmask 24576
          %356 = vst.msk [vmem:[#allocation2 + $0x8] sm:$0x1] %vm355, 0.0
          %357 = vst.msk [vmem:[#allocation2 + $0x10] sm:$0xff] %vm353, 0.0
          %358 = vst.msk [vmem:[#allocation2 + $0x18] sm:$0x1] %vm355, 0.0
          %359 = vst.msk [vmem:[#allocation2 + $0x20] sm:$0xff] %vm353, 0.0
          %360 = vst.msk [vmem:[#allocation2 + $0x28] sm:$0x1] %vm355, 0.0
          %361 = vst.msk [vmem:[#allocation2 + $0x30] sm:$0xff] %vm353, 0.0
          %362 = vst.msk [vmem:[#allocation2 + $0x38] sm:$0x1] %vm355, 0.0
          %363 = vst.msk [vmem:[#allocation2 + $0x40] sm:$0xff] %vm353, 0.0
          %364 = vst.msk [vmem:[#allocation2 + $0x48] sm:$0x1] %vm355, 0.0
          %365 = vst.msk [vmem:[#allocation2 + $0x50] sm:$0xff] %vm353, 0.0
          %366 = vst.msk [vmem:[#allocation2 + $0x58] sm:$0x1] %vm355, 0.0
          %367 = vst.msk [vmem:[#allocation2 + $0x60] sm:$0xff] %vm353, 0.0
          %368 = vst.msk [vmem:[#allocation2 + $0x68] sm:$0x1] %vm355, 0.0
          %369 = vst.msk [vmem:[#allocation2 + $0x70] sm:$0xff] %vm353, 0.0
          %370 = vst.msk [vmem:[#allocation2 + $0x78] sm:$0x1] %vm355, 0.0
          %371 = vst.msk [vmem:[#allocation2 + $0x80] sm:$0xff] %vm353, 0.0
          %372 = vst.msk [vmem:[#allocation2 + $0x88] sm:$0x1] %vm355, 0.0
          %373 = vst.msk [vmem:[#allocation2 + $0x90] sm:$0xff] %vm353, 0.0
          %374 = vst.msk [vmem:[#allocation2 + $0x98] sm:$0x1] %vm355, 0.0
          %375 = vst.msk [vmem:[#allocation2 + $0xa0] sm:$0xff] %vm353, 0.0
          %376 = vst.msk [vmem:[#allocation2 + $0xa8] sm:$0x1] %vm355, 0.0
          %377 = vst.msk [vmem:[#allocation2 + $0xb0] sm:$0xff] %vm353, 0.0
          %378 = vst.msk [vmem:[#allocation2 + $0xb8] sm:$0x1] %vm355, 0.0
          %379 = vst.msk [vmem:[#allocation2 + $0xc0] sm:$0xff] %vm353, 0.0
          %380 = vst.msk [vmem:[#allocation2 + $0xc8] sm:$0x1] %vm355, 0.0
          %381 = vst.msk [vmem:[#allocation2 + $0xd0] sm:$0xff] %vm353, 0.0
          %382 = vst.msk [vmem:[#allocation2 + $0xd8] sm:$0x1] %vm355, 0.0
          %383 = vst.msk [vmem:[#allocation2 + $0xe0] sm:$0xff] %vm353, 0.0
          %384 = vst.msk [vmem:[#allocation2 + $0xe8] sm:$0x1] %vm355, 0.0
          %385 = vst.msk [vmem:[#allocation2 + $0xf0] sm:$0xff] %vm353, 0.0
          %386 = vst.msk [vmem:[#allocation2 + $0xf8] sm:$0x1] %vm355, 0.0
          %387 = vst.msk [vmem:[#allocation2 + $0x100] sm:$0xff] %vm353, 0.0
          %388 = vst.msk [vmem:[#allocation2 + $0x108] sm:$0x1] %vm355, 0.0
          %389 = vst.msk [vmem:[#allocation2 + $0x110] sm:$0xff] %vm353, 0.0
          %390 = vst.msk [vmem:[#allocation2 + $0x118] sm:$0x1] %vm355, 0.0
          %391 = vst.msk [vmem:[#allocation2 + $0x120] sm:$0xff] %vm353, 0.0
          %392 = vst.msk [vmem:[#allocation2 + $0x128] sm:$0x1] %vm355, 0.0
          %393 = vst.msk [vmem:[#allocation2 + $0x130] sm:$0xff] %vm353, 0.0
          %394 = vst.msk [vmem:[#allocation2 + $0x138] sm:$0x1] %vm355, 0.0
          %395 = vst.msk [vmem:[#allocation2 + $0x140] sm:$0xff] %vm353, 0.0
          %396 = vst.msk [vmem:[#allocation2 + $0x148] sm:$0x1] %vm355, 0.0
          %397 = vst.msk [vmem:[#allocation2 + $0x150] sm:$0xff] %vm353, 0.0
          %398 = vst.msk [vmem:[#allocation2 + $0x158] sm:$0x1] %vm355, 0.0
          %399 = vst.msk [vmem:[#allocation2 + $0x160] sm:$0xff] %vm353, 0.0
          %400 = vst.msk [vmem:[#allocation2 + $0x168] sm:$0x1] %vm355, 0.0
          %401 = vst.msk [vmem:[#allocation2 + $0x170] sm:$0xff] %vm353, 0.0
          %402 = vst.msk [vmem:[#allocation2 + $0x178] sm:$0x1] %vm355, 0.0
          %403 = vst.msk [vmem:[#allocation2 + $0x180] sm:$0xff] %vm353, 0.0
          %404 = vst.msk [vmem:[#allocation2 + $0x188] sm:$0x1] %vm355, 0.0
          %405 = vst.msk [vmem:[#allocation2 + $0x190] sm:$0xff] %vm353, 0.0
          %406 = vst.msk [vmem:[#allocation2 + $0x198] sm:$0x1] %vm355, 0.0
          %407 = vst.msk [vmem:[#allocation2 + $0x1a0] sm:$0xff] %vm353, 0.0
          %408 = vst.msk [vmem:[#allocation2 + $0x1a8] sm:$0x1] %vm355, 0.0
          %409 = vst.msk [vmem:[#allocation2 + $0x1b0] sm:$0xff] %vm353, 0.0
          %410 = vst.msk [vmem:[#allocation2 + $0x1b8] sm:$0x1] %vm355, 0.0
          %411 = vst.msk [vmem:[#allocation2 + $0x1c0] sm:$0xff] %vm353, 0.0
          %412 = vst.msk [vmem:[#allocation2 + $0x1c8] sm:$0x1] %vm355, 0.0
          %413 = vst.msk [vmem:[#allocation2 + $0x1d0] sm:$0xff] %vm353, 0.0
          %414 = vst.msk [vmem:[#allocation2 + $0x1d8] sm:$0x1] %vm355, 0.0
          %415 = vst.msk [vmem:[#allocation2 + $0x1e0] sm:$0xff] %vm353, 0.0
          %416 = vst.msk [vmem:[#allocation2 + $0x1e8] sm:$0x1] %vm355, 0.0
          %417 = vst.msk [vmem:[#allocation2 + $0x1f0] sm:$0xff] %vm353, 0.0
          %418 = vst.msk [vmem:[#allocation2 + $0x1f8] sm:$0x1] %vm355, 0.0
          %419 = vst.msk [vmem:[#allocation2 + $0x200] sm:$0xff] %vm353, 0.0
          %420 = vst.msk [vmem:[#allocation2 + $0x208] sm:$0x1] %vm355, 0.0
          %421 = vst.msk [vmem:[#allocation2 + $0x210] sm:$0xff] %vm353, 0.0
          %422 = vst.msk [vmem:[#allocation2 + $0x218] sm:$0x1] %vm355, 0.0
          %423 = vst.msk [vmem:[#allocation2 + $0x220] sm:$0xff] %vm353, 0.0
          %424 = vst.msk [vmem:[#allocation2 + $0x228] sm:$0x1] %vm355, 0.0
          %425 = vst.msk [vmem:[#allocation2 + $0x230] sm:$0xff] %vm353, 0.0
          %426 = vst.msk [vmem:[#allocation2 + $0x238] sm:$0x1] %vm355, 0.0
          %s427 = scalar_lea.vmem %s295, 192 [#allocation3]
          %v428 = vld [vmem:[%s427] sm:$0xff]
          %v429 = vld [vmem:[%s427 + $0x8] sm:$0xff]
          %v430 = vld [vmem:[%s427 + $0x10] sm:$0xff]
          %v431 = vld [vmem:[%s427 + $0x18] sm:$0xff]
          %v432 = vld [vmem:[%s427 + $0x20] sm:$0xff]
          %v433 = vld [vmem:[%s427 + $0x28] sm:$0xff]
          %v434 = vld [vmem:[%s427 + $0x30] sm:$0xff]
          %v435 = vld [vmem:[%s427 + $0x38] sm:$0xff]
          %v437 = vlaneseq
          %v438 = vshrl.u32 %v437, 7
          %v439 = vsub.s32 0, %v438
          %v440 = vrot.slane %v347, %v439
          %v442 = vmul.f32 %v428, %v440
          %v443 = vmul.f32 %v429, %v440
          %v444 = vmul.f32 %v430, %v440
          %v445 = vmul.f32 %v431, %v440
          %v446 = vmul.f32 %v432, %v440
          %v447 = vmul.f32 %v433, %v440
          %v448 = vmul.f32 %v434, %v440
          %v449 = vmul.f32 %v435, %v440
          %v451 = vlaneseq
          %v452 = vshrl.u32 %v451, 7
          %v453 = vsub.s32 0, %v452
          %v454 = vrot.slane %v348, %v453
          %v456 = vadd.f32 %v442, %v454
          %v457 = vadd.f32 %v443, %v454
          %v458 = vadd.f32 %v444, %v454
          %v459 = vadd.f32 %v445, %v454
          %v460 = vadd.f32 %v446, %v454
          %v461 = vadd.f32 %v447, %v454
          %v462 = vadd.f32 %v448, %v454
          %v463 = vadd.f32 %v449, %v454
          %v464 = vmax.f32 %v456, 0.0
          %v465 = vmax.f32 %v457, 0.0
          %v466 = vmax.f32 %v458, 0.0
          %v467 = vmax.f32 %v459, 0.0
          %v468 = vmax.f32 %v460, 0.0
          %v469 = vmax.f32 %v461, 0.0
          %v470 = vmax.f32 %v462, 0.0
          %v471 = vmax.f32 %v463, 0.0
          %s472 = scalar_lea.vmem [#allocation2], 16
          %473 = vst.msk [vmem:[%s472 + $0x1] sm:$0xff] %vm353, %v464
          %474 = vst.msk [vmem:[%s472 + $0x11] sm:$0xff] %vm353, %v465
          %475 = vst.msk [vmem:[%s472 + $0x21] sm:$0xff] %vm353, %v466
          %476 = vst.msk [vmem:[%s472 + $0x31] sm:$0xff] %vm353, %v467
          %477 = vst.msk [vmem:[%s472 + $0x41] sm:$0xff] %vm353, %v468
          %478 = vst.msk [vmem:[%s472 + $0x51] sm:$0xff] %vm353, %v469
          %479 = vst.msk [vmem:[%s472 + $0x61] sm:$0xff] %vm353, %v470
          %480 = vst.msk [vmem:[%s472 + $0x71] sm:$0xff] %vm353, %v471
          %s481 = scalar_lea.vmem %s295, 128 [#allocation3]
          %v482 = vld [vmem:[%s481] sm:$0xff]
          %v483 = vld [vmem:[%s481 + $0x8] sm:$0xff]
          %v484 = vld [vmem:[%s481 + $0x10] sm:$0xff]
          %v485 = vld [vmem:[%s481 + $0x18] sm:$0xff]
          %v486 = vld [vmem:[%s481 + $0x20] sm:$0xff]
          %v487 = vld [vmem:[%s481 + $0x28] sm:$0xff]
          %v488 = vld [vmem:[%s481 + $0x30] sm:$0xff]
          %v489 = vld [vmem:[%s481 + $0x38] sm:$0xff]
          %v490 = vmul.f32 %v482, %v440
          %v491 = vmul.f32 %v483, %v440
          %v492 = vmul.f32 %v484, %v440
          %v493 = vmul.f32 %v485, %v440
          %v494 = vmul.f32 %v486, %v440
          %v495 = vmul.f32 %v487, %v440
          %v496 = vmul.f32 %v488, %v440
          %v497 = vmul.f32 %v489, %v440
          %v498 = vadd.f32 %v490, %v454
          %v499 = vadd.f32 %v491, %v454
          %v500 = vadd.f32 %v492, %v454
          %v501 = vadd.f32 %v493, %v454
          %v502 = vadd.f32 %v494, %v454
          %v503 = vadd.f32 %v495, %v454
          %v504 = vadd.f32 %v496, %v454
          %v505 = vadd.f32 %v497, %v454
          %v506 = vmax.f32 %v498, 0.0
          %v507 = vmax.f32 %v499, 0.0
          %v508 = vmax.f32 %v500, 0.0
          %v509 = vmax.f32 %v501, 0.0
          %v510 = vmax.f32 %v502, 0.0
          %v511 = vmax.f32 %v503, 0.0
          %v512 = vmax.f32 %v504, 0.0
          %v513 = vmax.f32 %v505, 0.0
          %s514 = scalar_lea.vmem [#allocation2], 160
          %515 = vst.msk [vmem:[%s514] sm:$0xff] %vm353, %v506
          %516 = vst.msk [vmem:[%s514 + $0x10] sm:$0xff] %vm353, %v507
          %517 = vst.msk [vmem:[%s514 + $0x20] sm:$0xff] %vm353, %v508
          %518 = vst.msk [vmem:[%s514 + $0x30] sm:$0xff] %vm353, %v509
          %519 = vst.msk [vmem:[%s514 + $0x40] sm:$0xff] %vm353, %v510
          %520 = vst.msk [vmem:[%s514 + $0x50] sm:$0xff] %vm353, %v511
          %521 = vst.msk [vmem:[%s514 + $0x60] sm:$0xff] %vm353, %v512
          %522 = vst.msk [vmem:[%s514 + $0x70] sm:$0xff] %vm353, %v513
          %s523 = scalar_lea.vmem %s295, 64 [#allocation3]
          %v524 = vld [vmem:[%s523] sm:$0xff]
          %v525 = vld [vmem:[%s523 + $0x8] sm:$0xff]
          %v526 = vld [vmem:[%s523 + $0x10] sm:$0xff]
          %v527 = vld [vmem:[%s523 + $0x18] sm:$0xff]
          %v528 = vld [vmem:[%s523 + $0x20] sm:$0xff]
          %v529 = vld [vmem:[%s523 + $0x28] sm:$0xff]
          %v530 = vld [vmem:[%s523 + $0x30] sm:$0xff]
          %v531 = vld [vmem:[%s523 + $0x38] sm:$0xff]
          %v532 = vmul.f32 %v524, %v440
          %v533 = vmul.f32 %v525, %v440
          %v534 = vmul.f32 %v526, %v440
          %v535 = vmul.f32 %v527, %v440
          %v536 = vmul.f32 %v528, %v440
          %v537 = vmul.f32 %v529, %v440
          %v538 = vmul.f32 %v530, %v440
          %v539 = vmul.f32 %v531, %v440
          %v540 = vadd.f32 %v532, %v454
          %v541 = vadd.f32 %v533, %v454
          %v542 = vadd.f32 %v534, %v454
          %v543 = vadd.f32 %v535, %v454
          %v544 = vadd.f32 %v536, %v454
          %v545 = vadd.f32 %v537, %v454
          %v546 = vadd.f32 %v538, %v454
          %v547 = vadd.f32 %v539, %v454
          %v548 = vmax.f32 %v540, 0.0
          %v549 = vmax.f32 %v541, 0.0
          %v550 = vmax.f32 %v542, 0.0
          %v551 = vmax.f32 %v543, 0.0
          %v552 = vmax.f32 %v544, 0.0
          %v553 = vmax.f32 %v545, 0.0
          %v554 = vmax.f32 %v546, 0.0
          %v555 = vmax.f32 %v547, 0.0
          %s556 = scalar_lea.vmem [#allocation2], 288
          %557 = vst.msk [vmem:[%s556 + $0x1] sm:$0xff] %vm353, %v548
          %558 = vst.msk [vmem:[%s556 + $0x11] sm:$0xff] %vm353, %v549
          %559 = vst.msk [vmem:[%s556 + $0x21] sm:$0xff] %vm353, %v550
          %560 = vst.msk [vmem:[%s556 + $0x31] sm:$0xff] %vm353, %v551
          %561 = vst.msk [vmem:[%s556 + $0x41] sm:$0xff] %vm353, %v552
          %562 = vst.msk [vmem:[%s556 + $0x51] sm:$0xff] %vm353, %v553
          %563 = vst.msk [vmem:[%s556 + $0x61] sm:$0xff] %vm353, %v554
          %564 = vst.msk [vmem:[%s556 + $0x71] sm:$0xff] %vm353, %v555
          %v565 = vld [vmem:[%s295] sm:$0xff]
          %v566 = vld [vmem:[%s295 + $0x8] sm:$0xff]
          %v567 = vld [vmem:[%s295 + $0x10] sm:$0xff]
          %v568 = vld [vmem:[%s295 + $0x18] sm:$0xff]
          %v569 = vld [vmem:[%s295 + $0x20] sm:$0xff]
          %v570 = vld [vmem:[%s295 + $0x28] sm:$0xff]
          %v571 = vld [vmem:[%s295 + $0x30] sm:$0xff]
          %v572 = vld [vmem:[%s295 + $0x38] sm:$0xff]
          %v573 = vmul.f32 %v565, %v440
          %v574 = vmul.f32 %v566, %v440
          %v575 = vmul.f32 %v567, %v440
          %v576 = vmul.f32 %v568, %v440
          %v577 = vmul.f32 %v569, %v440
          %v578 = vmul.f32 %v570, %v440
          %v579 = vmul.f32 %v571, %v440
          %v580 = vmul.f32 %v572, %v440
          %v581 = vadd.f32 %v573, %v454
          %v582 = vadd.f32 %v574, %v454
          %v583 = vadd.f32 %v575, %v454
          %v584 = vadd.f32 %v576, %v454
          %v585 = vadd.f32 %v577, %v454
          %v586 = vadd.f32 %v578, %v454
          %v587 = vadd.f32 %v579, %v454
          %v588 = vadd.f32 %v580, %v454
          %v589 = vmax.f32 %v581, 0.0
          %v590 = vmax.f32 %v582, 0.0
          %v591 = vmax.f32 %v583, 0.0
          %v592 = vmax.f32 %v584, 0.0
          %v593 = vmax.f32 %v585, 0.0
          %v594 = vmax.f32 %v586, 0.0
          %v595 = vmax.f32 %v587, 0.0
          %v596 = vmax.f32 %v588, 0.0
          %s597 = scalar_lea.vmem [#allocation2], 432
          %598 = vst.msk [vmem:[%s597] sm:$0xff] %vm353, %v589
          %599 = vst.msk [vmem:[%s597 + $0x10] sm:$0xff] %vm353, %v590
          %600 = vst.msk [vmem:[%s597 + $0x20] sm:$0xff] %vm353, %v591
          %601 = vst.msk [vmem:[%s597 + $0x30] sm:$0xff] %vm353, %v592
          %602 = vst.msk [vmem:[%s597 + $0x40] sm:$0xff] %vm353, %v593
          %603 = vst.msk [vmem:[%s597 + $0x50] sm:$0xff] %vm353, %v594
          %604 = vst.msk [vmem:[%s597 + $0x60] sm:$0xff] %vm353, %v595
          %605 = vst.msk [vmem:[%s597 + $0x70] sm:$0xff] %vm353, %v596
        $region56: #{_lambda_.5} parent=35 // pred_fallthru
          _
        %s606 = smul.u32 %s34, 8
        %s607 = smul.u32 %s606, 16
        %s608 = scalar_lea.vmem [#allocation2], %s607
        %v609 = vld [vmem:[%s608] sm:$0xff]
        %v610 = vld [vmem:[%s608 + $0x10] sm:$0xff]
        %v611 = vld [vmem:[%s608 + $0x20] sm:$0xff]
        %v612 = vld [vmem:[%s608 + $0x30] sm:$0xff]
        %v613 = vld [vmem:[%s608 + $0x40] sm:$0xff]
        %v614 = vld [vmem:[%s608 + $0x50] sm:$0xff]
        %v615 = vld [vmem:[%s608 + $0x60] sm:$0xff]
        %v616 = vld [vmem:[%s608 + $0x70] sm:$0xff]
        %s617 = sadd.s32 %s607, 144
        %s618 = scalar_lea.vmem [#allocation2], %s617
        %v619 = vld [vmem:[%s618] sm:$0xff]
        %v620 = vld [vmem:[%s618 + $0x10] sm:$0xff]
        %v621 = vld [vmem:[%s618 + $0x20] sm:$0xff]
        %v622 = vld [vmem:[%s618 + $0x30] sm:$0xff]
        %v623 = vld [vmem:[%s618 + $0x40] sm:$0xff]
        %v624 = vld [vmem:[%s618 + $0x50] sm:$0xff]
        %v625 = vld [vmem:[%s618 + $0x60] sm:$0xff]
        %v626 = vld [vmem:[%s618 + $0x70] sm:$0xff]
        %v627 = vld [vmem:[%s608 + $0x1] sm:$0xff]
        %v628 = vld [vmem:[%s608 + $0x11] sm:$0xff]
        %v629 = vld [vmem:[%s608 + $0x21] sm:$0xff]
        %v630 = vld [vmem:[%s608 + $0x31] sm:$0xff]
        %v631 = vld [vmem:[%s608 + $0x41] sm:$0xff]
        %v632 = vld [vmem:[%s608 + $0x51] sm:$0xff]
        %v633 = vld [vmem:[%s608 + $0x61] sm:$0xff]
        %v634 = vld [vmem:[%s608 + $0x71] sm:$0xff]
        %s635 = sadd.s32 %s607, 288
        %s636 = scalar_lea.vmem [#allocation2], %s635
        %v637 = vld [vmem:[%s636] sm:$0xff]
        %v638 = vld [vmem:[%s636 + $0x10] sm:$0xff]
        %v639 = vld [vmem:[%s636 + $0x20] sm:$0xff]
        %v640 = vld [vmem:[%s636 + $0x30] sm:$0xff]
        %v641 = vld [vmem:[%s636 + $0x40] sm:$0xff]
        %v642 = vld [vmem:[%s636 + $0x50] sm:$0xff]
        %v643 = vld [vmem:[%s636 + $0x60] sm:$0xff]
        %v644 = vld [vmem:[%s636 + $0x70] sm:$0xff]
        %s645 = sadd.s32 %s617, 288
        %s646 = scalar_lea.vmem [#allocation2], %s645
        %v647 = vld [vmem:[%s646] sm:$0xff]
        %v648 = vld [vmem:[%s646 + $0x10] sm:$0xff]
        %v649 = vld [vmem:[%s646 + $0x20] sm:$0xff]
        %v650 = vld [vmem:[%s646 + $0x30] sm:$0xff]
        %v651 = vld [vmem:[%s646 + $0x40] sm:$0xff]
        %v652 = vld [vmem:[%s646 + $0x50] sm:$0xff]
        %v653 = vld [vmem:[%s646 + $0x60] sm:$0xff]
        %v654 = vld [vmem:[%s646 + $0x70] sm:$0xff]
        %v655 = vld [vmem:[%s636 + $0x1] sm:$0xff]
        %v656 = vld [vmem:[%s636 + $0x11] sm:$0xff]
        %v657 = vld [vmem:[%s636 + $0x21] sm:$0xff]
        %v658 = vld [vmem:[%s636 + $0x31] sm:$0xff]
        %v659 = vld [vmem:[%s636 + $0x41] sm:$0xff]
        %v660 = vld [vmem:[%s636 + $0x51] sm:$0xff]
        %v661 = vld [vmem:[%s636 + $0x61] sm:$0xff]
        %v662 = vld [vmem:[%s636 + $0x71] sm:$0xff]
        %s663 = sadd.s32 %s606, 1
        %s664 = smul.u32 %s663, 16
        %s665 = scalar_lea.vmem [#allocation2], %s664
        %v666 = vld [vmem:[%s665] sm:$0xff]
        %v667 = vld [vmem:[%s665 + $0x10] sm:$0xff]
        %v668 = vld [vmem:[%s665 + $0x20] sm:$0xff]
        %v669 = vld [vmem:[%s665 + $0x30] sm:$0xff]
        %v670 = vld [vmem:[%s665 + $0x40] sm:$0xff]
        %v671 = vld [vmem:[%s665 + $0x50] sm:$0xff]
        %v672 = vld [vmem:[%s665 + $0x60] sm:$0xff]
        %v673 = vld [vmem:[%s665 + $0x70] sm:$0xff]
        %s674 = sadd.s32 %s664, 144
        %s675 = scalar_lea.vmem [#allocation2], %s674
        %v676 = vld [vmem:[%s675] sm:$0xff]
        %v677 = vld [vmem:[%s675 + $0x10] sm:$0xff]
        %v678 = vld [vmem:[%s675 + $0x20] sm:$0xff]
        %v679 = vld [vmem:[%s675 + $0x30] sm:$0xff]
        %v680 = vld [vmem:[%s675 + $0x40] sm:$0xff]
        %v681 = vld [vmem:[%s675 + $0x50] sm:$0xff]
        %v682 = vld [vmem:[%s675 + $0x60] sm:$0xff]
        %v683 = vld [vmem:[%s675 + $0x70] sm:$0xff]
        %v684 = vld [vmem:[%s665 + $0x1] sm:$0xff]
        %v685 = vld [vmem:[%s665 + $0x11] sm:$0xff]
        %v686 = vld [vmem:[%s665 + $0x21] sm:$0xff]
        %v687 = vld [vmem:[%s665 + $0x31] sm:$0xff]
        %v688 = vld [vmem:[%s665 + $0x41] sm:$0xff]
        %v689 = vld [vmem:[%s665 + $0x51] sm:$0xff]
        %v690 = vld [vmem:[%s665 + $0x61] sm:$0xff]
        %v691 = vld [vmem:[%s665 + $0x71] sm:$0xff]
        %700 = vrot.lane.b32.xlu0 %v619, 4
        %v701 = vpop.permute.xlu0 %700
        %702 = vrot.lane.b32.xlu0 %v620, 4
        %v703 = vpop.permute.xlu0 %702
        %704 = vrot.lane.b32.xlu0 %v621, 4
        %v705 = vpop.permute.xlu0 %704
        %706 = vrot.lane.b32.xlu0 %v622, 4
        %v707 = vpop.permute.xlu0 %706
        %708 = vrot.lane.b32.xlu0 %v623, 4
        %v709 = vpop.permute.xlu0 %708
        %710 = vrot.lane.b32.xlu0 %v624, 4
        %v711 = vpop.permute.xlu0 %710
        %712 = vrot.lane.b32.xlu0 %v625, 4
        %v713 = vpop.permute.xlu0 %712
        %714 = vrot.lane.b32.xlu0 %v626, 4
        %v715 = vpop.permute.xlu0 %714
        %732 = vrot.lane.b32.xlu0 %v627, 8
        %v733 = vpop.permute.xlu0 %732
        %734 = vrot.lane.b32.xlu0 %v628, 8
        %v735 = vpop.permute.xlu0 %734
        %736 = vrot.lane.b32.xlu0 %v629, 8
        %v737 = vpop.permute.xlu0 %736
        %738 = vrot.lane.b32.xlu0 %v630, 8
        %v739 = vpop.permute.xlu0 %738
        %740 = vrot.lane.b32.xlu0 %v631, 8
        %v741 = vpop.permute.xlu0 %740
        %742 = vrot.lane.b32.xlu0 %v632, 8
        %v743 = vpop.permute.xlu0 %742
        %744 = vrot.lane.b32.xlu0 %v633, 8
        %v745 = vpop.permute.xlu0 %744
        %746 = vrot.lane.b32.xlu0 %v634, 8
        %v747 = vpop.permute.xlu0 %746
        %764 = vrot.lane.b32.xlu0 %v637, 12
        %v765 = vpop.permute.xlu0 %764
        %766 = vrot.lane.b32.xlu0 %v638, 12
        %v767 = vpop.permute.xlu0 %766
        %768 = vrot.lane.b32.xlu0 %v639, 12
        %v769 = vpop.permute.xlu0 %768
        %770 = vrot.lane.b32.xlu0 %v640, 12
        %v771 = vpop.permute.xlu0 %770
        %772 = vrot.lane.b32.xlu0 %v641, 12
        %v773 = vpop.permute.xlu0 %772
        %774 = vrot.lane.b32.xlu0 %v642, 12
        %v775 = vpop.permute.xlu0 %774
        %776 = vrot.lane.b32.xlu0 %v643, 12
        %v777 = vpop.permute.xlu0 %776
        %778 = vrot.lane.b32.xlu0 %v644, 12
        %v779 = vpop.permute.xlu0 %778
        %796 = vrot.lane.b32.xlu0 %v647, 16
        %v797 = vpop.permute.xlu0 %796
        %798 = vrot.lane.b32.xlu0 %v648, 16
        %v799 = vpop.permute.xlu0 %798
        %800 = vrot.lane.b32.xlu0 %v649, 16
        %v801 = vpop.permute.xlu0 %800
        %802 = vrot.lane.b32.xlu0 %v650, 16
        %v803 = vpop.permute.xlu0 %802
        %804 = vrot.lane.b32.xlu0 %v651, 16
        %v805 = vpop.permute.xlu0 %804
        %806 = vrot.lane.b32.xlu0 %v652, 16
        %v807 = vpop.permute.xlu0 %806
        %808 = vrot.lane.b32.xlu0 %v653, 16
        %v809 = vpop.permute.xlu0 %808
        %810 = vrot.lane.b32.xlu0 %v654, 16
        %v811 = vpop.permute.xlu0 %810
        %828 = vrot.lane.b32.xlu0 %v655, 20
        %v829 = vpop.permute.xlu0 %828
        %830 = vrot.lane.b32.xlu0 %v656, 20
        %v831 = vpop.permute.xlu0 %830
        %832 = vrot.lane.b32.xlu0 %v657, 20
        %v833 = vpop.permute.xlu0 %832
        %834 = vrot.lane.b32.xlu0 %v658, 20
        %v835 = vpop.permute.xlu0 %834
        %836 = vrot.lane.b32.xlu0 %v659, 20
        %v837 = vpop.permute.xlu0 %836
        %838 = vrot.lane.b32.xlu0 %v660, 20
        %v839 = vpop.permute.xlu0 %838
        %840 = vrot.lane.b32.xlu0 %v661, 20
        %v841 = vpop.permute.xlu0 %840
        %842 = vrot.lane.b32.xlu0 %v662, 20
        %v843 = vpop.permute.xlu0 %842
        %860 = vrot.lane.b32.xlu0 %v666, 24
        %v861 = vpop.permute.xlu0 %860
        %862 = vrot.lane.b32.xlu0 %v667, 24
        %v863 = vpop.permute.xlu0 %862
        %864 = vrot.lane.b32.xlu0 %v668, 24
        %v865 = vpop.permute.xlu0 %864
        %866 = vrot.lane.b32.xlu0 %v669, 24
        %v867 = vpop.permute.xlu0 %866
        %868 = vrot.lane.b32.xlu0 %v670, 24
        %v869 = vpop.permute.xlu0 %868
        %870 = vrot.lane.b32.xlu0 %v671, 24
        %v871 = vpop.permute.xlu0 %870
        %872 = vrot.lane.b32.xlu0 %v672, 24
        %v873 = vpop.permute.xlu0 %872
        %874 = vrot.lane.b32.xlu0 %v673, 24
        %v875 = vpop.permute.xlu0 %874
        %892 = vrot.lane.b32.xlu0 %v676, 28
        %v893 = vpop.permute.xlu0 %892
        %894 = vrot.lane.b32.xlu0 %v677, 28
        %v895 = vpop.permute.xlu0 %894
        %896 = vrot.lane.b32.xlu0 %v678, 28
        %v897 = vpop.permute.xlu0 %896
        %898 = vrot.lane.b32.xlu0 %v679, 28
        %v899 = vpop.permute.xlu0 %898
        %900 = vrot.lane.b32.xlu0 %v680, 28
        %v901 = vpop.permute.xlu0 %900
        %902 = vrot.lane.b32.xlu0 %v681, 28
        %v903 = vpop.permute.xlu0 %902
        %904 = vrot.lane.b32.xlu0 %v682, 28
        %v905 = vpop.permute.xlu0 %904
        %906 = vrot.lane.b32.xlu0 %v683, 28
        %v907 = vpop.permute.xlu0 %906
        %924 = vrot.lane.b32.xlu0 %v684, 32
        %v925 = vpop.permute.xlu0 %924
        %926 = vrot.lane.b32.xlu0 %v685, 32
        %v927 = vpop.permute.xlu0 %926
        %928 = vrot.lane.b32.xlu0 %v686, 32
        %v929 = vpop.permute.xlu0 %928
        %930 = vrot.lane.b32.xlu0 %v687, 32
        %v931 = vpop.permute.xlu0 %930
        %932 = vrot.lane.b32.xlu0 %v688, 32
        %v933 = vpop.permute.xlu0 %932
        %934 = vrot.lane.b32.xlu0 %v689, 32
        %v935 = vpop.permute.xlu0 %934
        %936 = vrot.lane.b32.xlu0 %v690, 32
        %v937 = vpop.permute.xlu0 %936
        %938 = vrot.lane.b32.xlu0 %v691, 32
        %v939 = vpop.permute.xlu0 %938
        %vm948 = vcmask 31744
        %v949 = vsel %vm948, %v609, %v701
        %v950 = vsel %vm948, %v610, %v703
        %v951 = vsel %vm948, %v611, %v705
        %v952 = vsel %vm948, %v612, %v707
        %v953 = vsel %vm948, %v613, %v709
        %v954 = vsel %vm948, %v614, %v711
        %v955 = vsel %vm948, %v615, %v713
        %v956 = vsel %vm948, %v616, %v715
        %vm957 = vcmask 64512
        %v958 = vsel %vm957, %v949, %v733
        %v959 = vsel %vm957, %v950, %v735
        %v960 = vsel %vm957, %v951, %v737
        %v961 = vsel %vm957, %v952, %v739
        %v962 = vsel %vm957, %v953, %v741
        %v963 = vsel %vm957, %v954, %v743
        %v964 = vsel %vm957, %v955, %v745
        %v965 = vsel %vm957, %v956, %v747
        %vm966 = vcmask 97280
        %v967 = vsel %vm966, %v958, %v765
        %v968 = vsel %vm966, %v959, %v767
        %v969 = vsel %vm966, %v960, %v769
        %v970 = vsel %vm966, %v961, %v771
        %v971 = vsel %vm966, %v962, %v773
        %v972 = vsel %vm966, %v963, %v775
        %v973 = vsel %vm966, %v964, %v777
        %v974 = vsel %vm966, %v965, %v779
        %vm975 = vcmask 130048
        %v976 = vsel %vm975, %v967, %v797
        %v977 = vsel %vm975, %v968, %v799
        %v978 = vsel %vm975, %v969, %v801
        %v979 = vsel %vm975, %v970, %v803
        %v980 = vsel %vm975, %v971, %v805
        %v981 = vsel %vm975, %v972, %v807
        %v982 = vsel %vm975, %v973, %v809
        %v983 = vsel %vm975, %v974, %v811
        %vm984 = vcmask 162816
        %v985 = vsel %vm984, %v976, %v829
        %v986 = vsel %vm984, %v977, %v831
        %v987 = vsel %vm984, %v978, %v833
        %v988 = vsel %vm984, %v979, %v835
        %v989 = vsel %vm984, %v980, %v837
        %v990 = vsel %vm984, %v981, %v839
        %v991 = vsel %vm984, %v982, %v841
        %v992 = vsel %vm984, %v983, %v843
        %vm993 = vcmask 195584
        %v994 = vsel %vm993, %v985, %v861
        %v995 = vsel %vm993, %v986, %v863
        %v996 = vsel %vm993, %v987, %v865
        %v997 = vsel %vm993, %v988, %v867
        %v998 = vsel %vm993, %v989, %v869
        %v999 = vsel %vm993, %v990, %v871
        %v1000 = vsel %vm993, %v991, %v873
        %v1001 = vsel %vm993, %v992, %v875
        %vm1002 = vcmask 228352
        %v1003 = vsel %vm1002, %v994, %v893
        %v1004 = vsel %vm1002, %v995, %v895
        %v1005 = vsel %vm1002, %v996, %v897
        %v1006 = vsel %vm1002, %v997, %v899
        %v1007 = vsel %vm1002, %v998, %v901
        %v1008 = vsel %vm1002, %v999, %v903
        %v1009 = vsel %vm1002, %v1000, %v905
        %v1010 = vsel %vm1002, %v1001, %v907
        %vm1011 = vcmask 261120
        %v1012 = vsel %vm1011, %v1003, %v925
        %v1013 = vsel %vm1011, %v1004, %v927
        %v1014 = vsel %vm1011, %v1005, %v929
        %v1015 = vsel %vm1011, %v1006, %v931
        %v1016 = vsel %vm1011, %v1007, %v933
        %v1017 = vsel %vm1011, %v1008, %v935
        %v1018 = vsel %vm1011, %v1009, %v937
        %v1019 = vsel %vm1011, %v1010, %v939
        %v1020 = vld [vmem:[#allocation9] sm:$0xff]
        %v1021 = vld [vmem:[#allocation9 + $0x8] sm:$0xff]
        %v1022 = vld [vmem:[#allocation9 + $0x10] sm:$0xff]
        %v1023 = vld [vmem:[#allocation9 + $0x18] sm:$0xff]
        %v1024 = vld [vmem:[#allocation9 + $0x20] sm:$0xf]
        %vm1025 = vcmask 293888
        %v1027 = vsel %vm1025, %v1012, 0
        %v1030 = vsel %vm1025, %v1013, 0
        %v1033 = vsel %vm1025, %v1014, 0
        %v1036 = vsel %vm1025, %v1015, 0
        %v1039 = vsel %vm1025, %v1016, 0
        %v1042 = vsel %vm1025, %v1017, 0
        %v1045 = vsel %vm1025, %v1018, 0
        %v1048 = vsel %vm1025, %v1019, 0
        %vm1050 = vcmask 1043456
        %v1052 = vsel %vm1050, %v1024, 0
        %1054 = vmatprep.subr.mxu0 0.0
        %1055 = vmatpush1.msra.mxu0 %v1020
        %1056 = vmatprep.subr.mxu0 0.0
        %1057 = vmatpush1.msra.mxu0 %v1021
        %1058 = vmatprep.subr.mxu0 0.0
        %1059 = vmatpush1.msra.mxu0 %v1022
        %1060 = vmatprep.subr.mxu0 0.0
        %1061 = vmatpush1.msra.mxu0 %v1023
        %1062 = vmatprep.subr.mxu0 0.0
        %1063 = vmatpush1.msra.mxu0 %v1052
        %1064 = vmatprep.subr.mxu0 0.0
        %1065 = vmatpush1.msra.mxu0 0.0
        %1066 = vmatprep.subr.mxu0 0.0
        %1067 = vmatpush1.msra.mxu0 0.0
        %1068 = vmatprep.subr.mxu0 0.0
        %1069 = vmatpush1.msra.mxu0 0.0
        %1070 = vmatprep.subr.mxu0 0.0
        %1071 = vmatpush1.msra.mxu0 0.0
        %1072 = vmatprep.subr.mxu0 0.0
        %1073 = vmatpush1.msra.mxu0 0.0
        %1074 = vmatprep.subr.mxu0 0.0
        %1075 = vmatpush1.msra.mxu0 0.0
        %1076 = vmatprep.subr.mxu0 0.0
        %1077 = vmatpush1.msra.mxu0 0.0
        %1078 = vmatprep.subr.mxu0 0.0
        %1079 = vmatpush1.msra.mxu0 0.0
        %1080 = vmatprep.subr.mxu0 0.0
        %1081 = vmatpush1.msra.mxu0 0.0
        %1082 = vmatprep.subr.mxu0 0.0
        %1083 = vmatpush1.msra.mxu0 0.0
        %1084 = vmatprep.subr.mxu0 0.0
        %1085 = vmatpush1.msra.mxu0 0.0
        %1086 = vmatprep.subr.mxu0 0.0
        %1087 = vmatpush1.msra.mxu0 0.0
        %1088 = vmatprep.subr.mxu0 0.0
        %1089 = vmatpush1.msra.mxu0 0.0
        %1090 = vmatprep.subr.mxu0 0.0
        %1091 = vmatpush1.msra.mxu0 0.0
        %1092 = vmatprep.subr.mxu0 0.0
        %1093 = vmatpush1.msra.mxu0 0.0
        %1094 = vmatprep.subr.mxu0 0.0
        %1095 = vmatpush1.msra.mxu0 0.0
        %1096 = vmatprep.subr.mxu0 0.0
        %1097 = vmatpush1.msra.mxu0 0.0
        %1098 = vmatprep.subr.mxu0 0.0
        %1099 = vmatpush1.msra.mxu0 0.0
        %1100 = vmatprep.subr.mxu0 0.0
        %1101 = vmatpush1.msra.mxu0 0.0
        %1102 = vmatprep.subr.mxu0 0.0
        %1103 = vmatpush1.msra.mxu0 0.0
        %1104 = vmatprep.subr.mxu0 0.0
        %1105 = vmatpush1.msra.mxu0 0.0
        %1106 = vmatprep.subr.mxu0 0.0
        %1107 = vmatpush1.msra.mxu0 0.0
        %1108 = vmatprep.subr.mxu0 0.0
        %1109 = vmatpush1.msra.mxu0 0.0
        %1110 = vmatprep.subr.mxu0 0.0
        %1111 = vmatpush1.msra.mxu0 0.0
        %1112 = vmatprep.subr.mxu0 0.0
        %1113 = vmatpush1.msra.mxu0 0.0
        %1114 = vmatprep.subr.mxu0 0.0
        %1115 = vmatpush1.msra.mxu0 0.0
        %1116 = vmatprep.subr.mxu0 0.0
        %1117 = vmatpush1.msra.mxu0 0.0
        %1118 = vmatprep.mubr.f32.mxu0 0.0
        %1119 = vmatmul.mubr.f32.gmra.mrb[0].mxu0 %v1027
        %v1120 = vpop.f32.mrb[0].mxu0
        %v1121 = vadd.f32 0.0, %v1120
        %v1122 = vpop.f32.mrb[0].mxu0
        %1123 = vmatprep.mubr.f32.mxu0 0.0
        %1124 = vmatmul.mubr.f32.gmra.mrb[0].mxu0 %v1030
        %v1125 = vpop.f32.mrb[0].mxu0
        %v1126 = vadd.f32 0.0, %v1125
        %v1127 = vpop.f32.mrb[0].mxu0
        %1128 = vmatprep.mubr.f32.mxu0 0.0
        %1129 = vmatmul.mubr.f32.gmra.mrb[0].mxu0 %v1033
        %v1130 = vpop.f32.mrb[0].mxu0
        %v1131 = vadd.f32 0.0, %v1130
        %v1132 = vpop.f32.mrb[0].mxu0
        %1133 = vmatprep.mubr.f32.mxu0 0.0
        %1134 = vmatmul.mubr.f32.gmra.mrb[0].mxu0 %v1036
        %v1135 = vpop.f32.mrb[0].mxu0
        %v1136 = vadd.f32 0.0, %v1135
        %v1137 = vpop.f32.mrb[0].mxu0
        %1138 = vmatprep.mubr.f32.mxu0 0.0
        %1139 = vmatmul.mubr.f32.gmra.mrb[0].mxu0 %v1039
        %v1140 = vpop.f32.mrb[0].mxu0
        %v1141 = vadd.f32 0.0, %v1140
        %v1142 = vpop.f32.mrb[0].mxu0
        %1143 = vmatprep.mubr.f32.mxu0 0.0
        %1144 = vmatmul.mubr.f32.gmra.mrb[0].mxu0 %v1042
        %v1145 = vpop.f32.mrb[0].mxu0
        %v1146 = vadd.f32 0.0, %v1145
        %v1147 = vpop.f32.mrb[0].mxu0
        %1148 = vmatprep.mubr.f32.mxu0 0.0
        %1149 = vmatmul.mubr.f32.gmra.mrb[0].mxu0 %v1045
        %v1150 = vpop.f32.mrb[0].mxu0
        %v1151 = vadd.f32 0.0, %v1150
        %v1152 = vpop.f32.mrb[0].mxu0
        %1153 = vmatprep.mubr.f32.mxu0 0.0
        %1154 = vmatmul.mubr.f32.gmra.mrb[0].mxu0 %v1048
        %v1155 = vpop.f32.mrb[0].mxu0
        %v1156 = vadd.f32 0.0, %v1155
        %v1157 = vpop.f32.mrb[0].mxu0
        %1158 = vdwg.mxu0
        %1159 = vst.msk [vmem:[%s331] sm:$0xff] %vm948, %v1121
        %1160 = vst.msk [vmem:[%s331 + $0x8] sm:$0xff] %vm948, %v1126
        %1161 = vst.msk [vmem:[%s331 + $0x10] sm:$0xff] %vm948, %v1131
        %1162 = vst.msk [vmem:[%s331 + $0x18] sm:$0xff] %vm948, %v1136
        %1163 = vst.msk [vmem:[%s331 + $0x20] sm:$0xff] %vm948, %v1141
        %1164 = vst.msk [vmem:[%s331 + $0x28] sm:$0xff] %vm948, %v1146
        %1165 = vst.msk [vmem:[%s331 + $0x30] sm:$0xff] %vm948, %v1151
        %1166 = vst.msk [vmem:[%s331 + $0x38] sm:$0xff] %vm948, %v1156
        %v1167 = vsel %vm948, %v1121, 0.0
        %v1168 = vsel %vm948, %v1126, 0.0
        %v1169 = vadd.f32 %v1167, %v1168
        %v1170 = vsel %vm948, %v1131, 0.0
        %v1171 = vadd.f32 %v1169, %v1170
        %v1172 = vsel %vm948, %v1136, 0.0
        %v1173 = vadd.f32 %v1171, %v1172
        %v1174 = vsel %vm948, %v1141, 0.0
        %v1175 = vadd.f32 %v1173, %v1174
        %v1176 = vsel %vm948, %v1146, 0.0
        %v1177 = vadd.f32 %v1175, %v1176
        %v1178 = vsel %vm948, %v1151, 0.0
        %v1179 = vadd.f32 %v1177, %v1178
        %v1180 = vsel %vm948, %v1156, 0.0
        %v1181 = vadd.f32 %v1179, %v1180
        %v1182 = vrot.slane %v1181, 4
        %v1183 = vadd.f32 %v1181, %v1182
        %v1184 = vrot.slane %v1183, 2
        %v1185 = vadd.f32 %v1183, %v1184
        %v1186 = vrot.slane %v1185, 1
        %v1187 = vadd.f32 %v1185, %v1186
        %vm1188 = vcmask 24576
        %1189 = vst.msk [vmem:[%s337] sm:$0x1] %vm1188, %v1187
        %v1190 = vmul.f32 %v1121, %v1121
        %v1191 = vmul.f32 %v1126, %v1126
        %v1192 = vmul.f32 %v1131, %v1131
        %v1193 = vmul.f32 %v1136, %v1136
        %v1194 = vmul.f32 %v1141, %v1141
        %v1195 = vmul.f32 %v1146, %v1146
        %v1196 = vmul.f32 %v1151, %v1151
        %v1197 = vmul.f32 %v1156, %v1156
        %v1198 = vsel %vm948, %v1190, 0.0
        %v1199 = vsel %vm948, %v1191, 0.0
        %v1200 = vadd.f32 %v1198, %v1199
        %v1201 = vsel %vm948, %v1192, 0.0
        %v1202 = vadd.f32 %v1200, %v1201
        %v1203 = vsel %vm948, %v1193, 0.0
        %v1204 = vadd.f32 %v1202, %v1203
        %v1205 = vsel %vm948, %v1194, 0.0
        %v1206 = vadd.f32 %v1204, %v1205
        %v1207 = vsel %vm948, %v1195, 0.0
        %v1208 = vadd.f32 %v1206, %v1207
        %v1209 = vsel %vm948, %v1196, 0.0
        %v1210 = vadd.f32 %v1208, %v1209
        %v1211 = vsel %vm948, %v1197, 0.0
        %v1212 = vadd.f32 %v1210, %v1211
        %v1213 = vrot.slane %v1212, 4
        %v1214 = vadd.f32 %v1212, %v1213
        %v1215 = vrot.slane %v1214, 2
        %v1216 = vadd.f32 %v1214, %v1215
        %v1217 = vrot.slane %v1216, 1
        %v1218 = vadd.f32 %v1216, %v1217
        %1219 = vst.msk [vmem:[%s343] sm:$0x1] %vm1188, %v1218
        %s1220 = sand.u32 %s140, 1
        %s1221 = scalar_lea.sflag [#allocation5], %s1220
        %s1222 = sand.u32 %s140, 1
        %s1223 = smul.addr %s1222, 64
        %s1224 = scalar_lea.vmem [#allocation11], %s1223
        %s1225 = sand.u32 %s29, 1
        %s1226 = scalar_lea.sflag [#allocation13], %s1225
        %s1227 = sand.u32 %s168, 1
        %s1228 = scalar_lea.vmem [#allocation12], %s1227
        %s1229 = sand.u32 %s29, 1
        %s1230 = scalar_lea.sflag [#allocation13], %s1229
        %s1231 = sand.u32 %s196, 1
        %s1232 = scalar_lea.vmem [#allocation14], %s1231
        // Predicated region
        $region57: #{_lambda_.5} parent=35 // pred_check
          %p1233 = pneg %p150
        $region58: #{_lambda_.5} parent=35 // pred_check_branch
          %1235 = sbr.rel (%p1233) target = $region60
        $region59: #{_lambda_.5} parent=35 // pred_region
          %s1236 = sadd.s32 %s33, %s34
          %s1238 = ssub.s32 1024, 1024
          %1239 = vsyncadd %s1221, %s1238
          %s1240 = smul.addr %s1236, 8
          %s1241 = smul.addr %s1240, 128
          %s1242 = scalar_lea.hbm %s4, %s1241
          %s1243 = sshll.u32 %s1224, 4
          %s1244 = int_to_ptr.vmem [resolvable:$true] %s1243
          %1249 = dma.vmem_to_hbm [thread:$0]  %s1244, 1024, %s1242, %s1221, 128, 128, 8
        $region60: #{_lambda_.5} parent=35 // pred_fallthru
          _
        // Predicated region
        $region61: #{_lambda_.5} parent=35 // pred_check
          %p1250 = pneg %p178
        $region62: #{_lambda_.5} parent=35 // pred_check_branch
          %1252 = sbr.rel (%p1250) target = $region64
        $region63: #{_lambda_.5} parent=35 // pred_region
          %s1253 = sadd.s32 %s33, %s34
          %s1255 = ssub.s32 16, 16
          %1256 = vsyncadd %s1226, %s1255
          %s1257 = smul.addr %s1253, 16
          %s1258 = scalar_lea.hbm %s5, %s1257
          %s1260 = sshll.u32 %s1228, 4
          %s1261 = int_to_ptr.vmem [resolvable:$true] %s1260
          %1263 = dma.vmem_to_hbm [thread:$0]  %s1261, 16, %s1258, %s1226
        $region64: #{_lambda_.5} parent=35 // pred_fallthru
          _
        // Predicated region
        $region65: #{_lambda_.5} parent=35 // pred_check
          %p1264 = pneg %p206
        $region66: #{_lambda_.5} parent=35 // pred_check_branch
          %1266 = sbr.rel (%p1264) target = $region68
        $region67: #{_lambda_.5} parent=35 // pred_region
          %s1267 = sadd.s32 %s33, %s34
          %s1269 = ssub.s32 16, 16
          %1270 = vsyncadd %s1230, %s1269
          %s1271 = smul.addr %s1267, 16
          %s1272 = scalar_lea.hbm %s6, %s1271
          %s1274 = sshll.u32 %s1232, 4
          %s1275 = int_to_ptr.vmem [resolvable:$true] %s1274
          %1277 = dma.vmem_to_hbm [thread:$0]  %s1275, 16, %s1272, %s1230
        $region68: #{_lambda_.5} parent=35 // pred_fallthru
          _
      $region36: #{_lambda_.5} parent=5 // pred_fallthru
        _
      %p1278 = scmp.le.s32.totalorder 2, %s24
      // Predicated region
      $region69: #{_lambda_.5} parent=5 // pred_check
        %p1279 = pneg %p1278
      $region70: #{_lambda_.5} parent=5 // pred_check_branch
        %1281 = sbr.rel (%p1279) target = $region72
      $region71: #{_lambda_.5} parent=5 // pred_region
        %s1282 = ssub.s32 %s24, 2
        // Predicated region
        $region73: #{_lambda_.5} parent=71 // pred_check
          %p1283 = pneg %p156
        $region74: #{_lambda_.5} parent=71 // pred_check_branch
          %1285 = sbr.rel (%p1283) target = $region76
        $region75: #{_lambda_.5} parent=71 // pred_region
          %s1286 = sand.u32 %s141, 1
          %s1287 = scalar_lea.sflag [#allocation5], %s1286
          %s1288 = sand.u32 %s141, 1
          %s1289 = smul.addr %s1288, 64
          %s1290 = scalar_lea.vmem [#allocation11], %s1289
          %1291 = dma.done %s1287, 1024
        $region76: #{_lambda_.5} parent=71 // pred_fallthru
          _
        // Predicated region
        $region77: #{_lambda_.5} parent=71 // pred_check
          %p1292 = pneg %p184
        $region78: #{_lambda_.5} parent=71 // pred_check_branch
          %1294 = sbr.rel (%p1292) target = $region80
        $region79: #{_lambda_.5} parent=71 // pred_region
          %s1295 = sand.u32 %s30, 1
          %s1296 = scalar_lea.sflag [#allocation13], %s1295
          %s1297 = sand.u32 %s169, 1
          %s1298 = scalar_lea.vmem [#allocation12], %s1297
          %1299 = dma.done %s1296, 16
        $region80: #{_lambda_.5} parent=71 // pred_fallthru
          _
        // Predicated region
        $region81: #{_lambda_.5} parent=71 // pred_check
          %p1300 = pneg %p212
        $region82: #{_lambda_.5} parent=71 // pred_check_branch
          %1302 = sbr.rel (%p1300) target = $region84
        $region83: #{_lambda_.5} parent=71 // pred_region
          %s1303 = sand.u32 %s30, 1
          %s1304 = scalar_lea.sflag [#allocation13], %s1303
          %s1305 = sand.u32 %s197, 1
          %s1306 = scalar_lea.vmem [#allocation14], %s1305
          %1307 = dma.done %s1304, 16
        $region84: #{_lambda_.5} parent=71 // pred_fallthru
          _
      $region72: #{_lambda_.5} parent=5 // pred_fallthru
        _
    $region6: #{_lambda_.5} parent=1 // loop_footer
      %s28 = sadd.s32 1, %s24
    $region7: #{_lambda_.5} parent=1 // loop_footer_branch
      %23 = sbr.rel target = $region3
    $region8: #{_lambda_.5} parent=1 // loop_exit
      _
    %1308 = vsyncpa [#allocation4], 1
    %s1309 = scalar_lea.sflag [#allocation4], 1
    %1310 = vsyncpa %s1309, 1
    %1311 = vsyncpa [#allocation7], 1
    %1312 = vsyncpa [#allocation10], 1
    %1313 = vsyncpa [#allocation5], 1
    %s1314 = scalar_lea.sflag [#allocation5], 1
    %1315 = vsyncpa %s1314, 1
    %1316 = vsyncpa [#allocation13], 1
    %s1317 = scalar_lea.sflag [#allocation13], 1
    %1318 = vsyncpa %s1317, 1

// kernel: _lambda_.4
$region0: #{_lambda_.4}
  #allocation0 [shape = 'u32[]', space=smem, size = 0x4, offset = 0x4, fixed_abs, tag = 'smem constant byte address 0x4 - core index']
  #allocation1 [shape = 'u32[144,128]{1,0:T(1,128)}', space=vmem, size = 0x12000, scoped, tag = 'internal scratch']
  %s0 = inlined_call_operand.hbm [shape: f32[512,4], index: 0, kind: input, shape index: {}]
  %s1 = inlined_call_operand.hbm [shape: f32[4,4], index: 1, kind: input, shape index: {}]
  %s2 = inlined_call_operand.hbm [shape: f32[512,4], index: 2, kind: output, shape index: {0}]
  %s3 = inlined_call_operand.hbm [shape: f32[1,1,4], index: 3, kind: output, shape index: {1}]
  %s4 = inlined_call_operand.hbm [shape: f32[1,1,4], index: 4, kind: output, shape index: {2}]
  %5 = xla_tuple %s2, %s3, %s4
  %s6 = sld [smem:[#allocation0]]
  $region42: #{_lambda_.4} parent=0
    _
  %s8 = ssub.s32 1, %s6
  %s9 = scalar_select 0, %s8, %s6
  $region1: #{_lambda_.4} parent=0
    #allocation2 [shape = 'u8[262144]{0}', space=vmem, size = 0x40000, scoped, tag = 'input window, operand 0, single buffered']
    #allocation3 [shape = 's32[1]{0}', space=sflag, size = 0x4, scoped, tag = 'scoped memory for _lambda_.4']
    #allocation4 [shape = 's32[1]{0}', space=sflag, size = 0x4, scoped, tag = 'scoped memory for _lambda_.4']
    #allocation5 [shape = 'u8[2048]{0}', space=vmem, size = 0x800, scoped, tag = 'input window, operand 1, single buffered']
    #allocation6 [shape = 's32[1]{0}', space=sflag, size = 0x4, scoped, tag = 'scoped memory for _lambda_.4']
    #allocation7 [shape = 'u8[262144]{0}', space=vmem, size = 0x40000, scoped, tag = 'output window, operand 0, single buffered']
    #allocation8 [shape = 'u8[512]{0}', space=vmem, size = 0x400, scoped, tag = 'output window, operand 1, single buffered']
    #allocation9 [shape = 's32[1]{0}', space=sflag, size = 0x4, scoped, tag = 'scoped memory for _lambda_.4']
    #allocation10 [shape = 'u8[512]{0}', space=vmem, size = 0x400, scoped, tag = 'output window, operand 2, single buffered']
    %10 = vsyncpa [#allocation3], 0
    %11 = vsyncpa [#allocation6], 0
    %12 = vsyncpa [#allocation4], 0
    %13 = vsyncpa [#allocation9], 0
    // Predicated region
    $region2: #{_lambda_.4} parent=1 // pred_check
      _
    $region3: #{_lambda_.4} parent=1 // pred_check_branch
      %15 = sbr.rel (0) target = $region5
    $region4: #{_lambda_.4} parent=1 // pred_region
      %s17 = ssub.s32 8192, 8192
      %18 = vsyncadd [#allocation3], %s17
      %s19 = sshll.u32 [#allocation2], 4
      %s20 = int_to_ptr.vmem [resolvable:$true] %s19
      %25 = dma.hbm_to_vmem [thread:$0]  %s0, 8192, %s20, [#allocation3], 128, 128, 8
    $region5: #{_lambda_.4} parent=1 // pred_fallthru
      _
    // Predicated region
    $region6: #{_lambda_.4} parent=1 // pred_check
      _
    $region7: #{_lambda_.4} parent=1 // pred_check_branch
      %27 = sbr.rel (0) target = $region9
    $region8: #{_lambda_.4} parent=1 // pred_region
      %s29 = ssub.s32 64, 64
      %30 = vsyncadd [#allocation6], %s29
      %s32 = sshll.u32 [#allocation5], 4
      %s33 = int_to_ptr.vmem [resolvable:$true] %s32
      %35 = dma.hbm_to_vmem [thread:$0]  %s1, 64, %s33, [#allocation6]
    $region9: #{_lambda_.4} parent=1 // pred_fallthru
      _
    // Predicated region
    $region10: #{_lambda_.4} parent=1 // pred_check
      _
    $region11: #{_lambda_.4} parent=1 // pred_check_branch
      %37 = sbr.rel (0) target = $region13
    $region12: #{_lambda_.4} parent=1 // pred_region
      %38 = dma.done [#allocation3], 8192
    $region13: #{_lambda_.4} parent=1 // pred_fallthru
      _
    // Predicated region
    $region14: #{_lambda_.4} parent=1 // pred_check
      _
    $region15: #{_lambda_.4} parent=1 // pred_check_branch
      %40 = sbr.rel (0) target = $region17
    $region16: #{_lambda_.4} parent=1 // pred_region
      %41 = dma.done [#allocation6], 64
    $region17: #{_lambda_.4} parent=1 // pred_fallthru
      _
    %v42 = vld [vmem:[#allocation2] sm:$0xff]
    %v43 = vld [vmem:[#allocation2 + $0x8] sm:$0xff]
    %v44 = vld [vmem:[#allocation2 + $0x10] sm:$0xff]
    %v45 = vld [vmem:[#allocation2 + $0x18] sm:$0xff]
    %v46 = vld [vmem:[#allocation2 + $0x20] sm:$0xff]
    %v47 = vld [vmem:[#allocation2 + $0x28] sm:$0xff]
    %v48 = vld [vmem:[#allocation2 + $0x30] sm:$0xff]
    %v49 = vld [vmem:[#allocation2 + $0x38] sm:$0xff]
    %v50 = vld [vmem:[#allocation2 + $0x40] sm:$0xff]
    %v51 = vld [vmem:[#allocation2 + $0x48] sm:$0xff]
    %v52 = vld [vmem:[#allocation2 + $0x50] sm:$0xff]
    %v53 = vld [vmem:[#allocation2 + $0x58] sm:$0xff]
    %v54 = vld [vmem:[#allocation2 + $0x60] sm:$0xff]
    %v55 = vld [vmem:[#allocation2 + $0x68] sm:$0xff]
    %v56 = vld [vmem:[#allocation2 + $0x70] sm:$0xff]
    %v57 = vld [vmem:[#allocation2 + $0x78] sm:$0xff]
    %v58 = vld [vmem:[#allocation2 + $0x80] sm:$0xff]
    %v59 = vld [vmem:[#allocation2 + $0x88] sm:$0xff]
    %v60 = vld [vmem:[#allocation2 + $0x90] sm:$0xff]
    %v61 = vld [vmem:[#allocation2 + $0x98] sm:$0xff]
    %v62 = vld [vmem:[#allocation2 + $0xa0] sm:$0xff]
    %v63 = vld [vmem:[#allocation2 + $0xa8] sm:$0xff]
    %v64 = vld [vmem:[#allocation2 + $0xb0] sm:$0xff]
    %v65 = vld [vmem:[#allocation2 + $0xb8] sm:$0xff]
    %v66 = vld [vmem:[#allocation2 + $0xc0] sm:$0xff]
    %v67 = vld [vmem:[#allocation2 + $0xc8] sm:$0xff]
    %v68 = vld [vmem:[#allocation2 + $0xd0] sm:$0xff]
    %v69 = vld [vmem:[#allocation2 + $0xd8] sm:$0xff]
    %v70 = vld [vmem:[#allocation2 + $0xe0] sm:$0xff]
    %v71 = vld [vmem:[#allocation2 + $0xe8] sm:$0xff]
    %v72 = vld [vmem:[#allocation2 + $0xf0] sm:$0xff]
    %v73 = vld [vmem:[#allocation2 + $0xf8] sm:$0xff]
    %v74 = vld [vmem:[#allocation2 + $0x100] sm:$0xff]
    %v75 = vld [vmem:[#allocation2 + $0x108] sm:$0xff]
    %v76 = vld [vmem:[#allocation2 + $0x110] sm:$0xff]
    %v77 = vld [vmem:[#allocation2 + $0x118] sm:$0xff]
    %v78 = vld [vmem:[#allocation2 + $0x120] sm:$0xff]
    %v79 = vld [vmem:[#allocation2 + $0x128] sm:$0xff]
    %v80 = vld [vmem:[#allocation2 + $0x130] sm:$0xff]
    %v81 = vld [vmem:[#allocation2 + $0x138] sm:$0xff]
    %v82 = vld [vmem:[#allocation2 + $0x140] sm:$0xff]
    %v83 = vld [vmem:[#allocation2 + $0x148] sm:$0xff]
    %v84 = vld [vmem:[#allocation2 + $0x150] sm:$0xff]
    %v85 = vld [vmem:[#allocation2 + $0x158] sm:$0xff]
    %v86 = vld [vmem:[#allocation2 + $0x160] sm:$0xff]
    %v87 = vld [vmem:[#allocation2 + $0x168] sm:$0xff]
    %v88 = vld [vmem:[#allocation2 + $0x170] sm:$0xff]
    %v89 = vld [vmem:[#allocation2 + $0x178] sm:$0xff]
    %v90 = vld [vmem:[#allocation2 + $0x180] sm:$0xff]
    %v91 = vld [vmem:[#allocation2 + $0x188] sm:$0xff]
    %v92 = vld [vmem:[#allocation2 + $0x190] sm:$0xff]
    %v93 = vld [vmem:[#allocation2 + $0x198] sm:$0xff]
    %v94 = vld [vmem:[#allocation2 + $0x1a0] sm:$0xff]
    %v95 = vld [vmem:[#allocation2 + $0x1a8] sm:$0xff]
    %v96 = vld [vmem:[#allocation2 + $0x1b0] sm:$0xff]
    %v97 = vld [vmem:[#allocation2 + $0x1b8] sm:$0xff]
    %v98 = vld [vmem:[#allocation2 + $0x1c0] sm:$0xff]
    %v99 = vld [vmem:[#allocation2 + $0x1c8] sm:$0xff]
    %v100 = vld [vmem:[#allocation2 + $0x1d0] sm:$0xff]
    %v101 = vld [vmem:[#allocation2 + $0x1d8] sm:$0xff]
    %v102 = vld [vmem:[#allocation2 + $0x1e0] sm:$0xff]
    %v103 = vld [vmem:[#allocation2 + $0x1e8] sm:$0xff]
    %v104 = vld [vmem:[#allocation2 + $0x1f0] sm:$0xff]
    %v105 = vld [vmem:[#allocation2 + $0x1f8] sm:$0xff]
    %v106 = vld [vmem:[#allocation5] sm:$0xf]
    %vm107 = vcmask 31744
    %v109 = vsel %vm107, %v42, 0
    %v112 = vsel %vm107, %v43, 0
    %v115 = vsel %vm107, %v44, 0
    %v118 = vsel %vm107, %v45, 0
    %v121 = vsel %vm107, %v46, 0
    %v124 = vsel %vm107, %v47, 0
    %v127 = vsel %vm107, %v48, 0
    %v130 = vsel %vm107, %v49, 0
    %v133 = vsel %vm107, %v50, 0
    %v136 = vsel %vm107, %v51, 0
    %v139 = vsel %vm107, %v52, 0
    %v142 = vsel %vm107, %v53, 0
    %v145 = vsel %vm107, %v54, 0
    %v148 = vsel %vm107, %v55, 0
    %v151 = vsel %vm107, %v56, 0
    %v154 = vsel %vm107, %v57, 0
    %v157 = vsel %vm107, %v58, 0
    %v160 = vsel %vm107, %v59, 0
    %v163 = vsel %vm107, %v60, 0
    %v166 = vsel %vm107, %v61, 0
    %v169 = vsel %vm107, %v62, 0
    %v172 = vsel %vm107, %v63, 0
    %v175 = vsel %vm107, %v64, 0
    %v178 = vsel %vm107, %v65, 0
    %v181 = vsel %vm107, %v66, 0
    %v184 = vsel %vm107, %v67, 0
    %v187 = vsel %vm107, %v68, 0
    %v190 = vsel %vm107, %v69, 0
    %v193 = vsel %vm107, %v70, 0
    %v196 = vsel %vm107, %v71, 0
    %v199 = vsel %vm107, %v72, 0
    %v202 = vsel %vm107, %v73, 0
    %v205 = vsel %vm107, %v74, 0
    %v208 = vsel %vm107, %v75, 0
    %v211 = vsel %vm107, %v76, 0
    %v214 = vsel %vm107, %v77, 0
    %v217 = vsel %vm107, %v78, 0
    %v220 = vsel %vm107, %v79, 0
    %v223 = vsel %vm107, %v80, 0
    %v226 = vsel %vm107, %v81, 0
    %v229 = vsel %vm107, %v82, 0
    %v232 = vsel %vm107, %v83, 0
    %v235 = vsel %vm107, %v84, 0
    %v238 = vsel %vm107, %v85, 0
    %v241 = vsel %vm107, %v86, 0
    %v244 = vsel %vm107, %v87, 0
    %v247 = vsel %vm107, %v88, 0
    %v250 = vsel %vm107, %v89, 0
    %v253 = vsel %vm107, %v90, 0
    %v256 = vsel %vm107, %v91, 0
    %v259 = vsel %vm107, %v92, 0
    %v262 = vsel %vm107, %v93, 0
    %v265 = vsel %vm107, %v94, 0
    %v268 = vsel %vm107, %v95, 0
    %v271 = vsel %vm107, %v96, 0
    %v274 = vsel %vm107, %v97, 0
    %v277 = vsel %vm107, %v98, 0
    %v280 = vsel %vm107, %v99, 0
    %v283 = vsel %vm107, %v100, 0
    %v286 = vsel %vm107, %v101, 0
    %v289 = vsel %vm107, %v102, 0
    %v292 = vsel %vm107, %v103, 0
    %v295 = vsel %vm107, %v104, 0
    %v298 = vsel %vm107, %v105, 0
    %vm300 = vcmask 1043456
    %v302 = vsel %vm300, %v106, 0
    %304 = vmatprep.subr.mxu0 0.0
    %305 = vmatpush1.msra.mxu0 %v302
    %306 = vmatprep.subr.mxu0 0.0
    %307 = vmatpush1.msra.mxu0 0.0
    %308 = vmatprep.subr.mxu0 0.0
    %309 = vmatpush1.msra.mxu0 0.0
    %310 = vmatprep.subr.mxu0 0.0
    %311 = vmatpush1.msra.mxu0 0.0
    %312 = vmatprep.subr.mxu0 0.0
    %313 = vmatpush1.msra.mxu0 0.0
    %314 = vmatprep.subr.mxu0 0.0
    %315 = vmatpush1.msra.mxu0 0.0
    %316 = vmatprep.subr.mxu0 0.0
    %317 = vmatpush1.msra.mxu0 0.0
    %318 = vmatprep.subr.mxu0 0.0
    %319 = vmatpush1.msra.mxu0 0.0
    %320 = vmatprep.subr.mxu0 0.0
    %321 = vmatpush1.msra.mxu0 0.0
    %322 = vmatprep.subr.mxu0 0.0
    %323 = vmatpush1.msra.mxu0 0.0
    %324 = vmatprep.subr.mxu0 0.0
    %325 = vmatpush1.msra.mxu0 0.0
    %326 = vmatprep.subr.mxu0 0.0
    %327 = vmatpush1.msra.mxu0 0.0
    %328 = vmatprep.subr.mxu0 0.0
    %329 = vmatpush1.msra.mxu0 0.0
    %330 = vmatprep.subr.mxu0 0.0
    %331 = vmatpush1.msra.mxu0 0.0
    %332 = vmatprep.subr.mxu0 0.0
    %333 = vmatpush1.msra.mxu0 0.0
    %334 = vmatprep.subr.mxu0 0.0
    %335 = vmatpush1.msra.mxu0 0.0
    %336 = vmatprep.subr.mxu0 0.0
    %337 = vmatpush1.msra.mxu0 0.0
    %338 = vmatprep.subr.mxu0 0.0
    %339 = vmatpush1.msra.mxu0 0.0
    %340 = vmatprep.subr.mxu0 0.0
    %341 = vmatpush1.msra.mxu0 0.0
    %342 = vmatprep.subr.mxu0 0.0
    %343 = vmatpush1.msra.mxu0 0.0
    %344 = vmatprep.subr.mxu0 0.0
    %345 = vmatpush1.msra.mxu0 0.0
    %346 = vmatprep.subr.mxu0 0.0
    %347 = vmatpush1.msra.mxu0 0.0
    %348 = vmatprep.subr.mxu0 0.0
    %349 = vmatpush1.msra.mxu0 0.0
    %350 = vmatprep.subr.mxu0 0.0
    %351 = vmatpush1.msra.mxu0 0.0
    %352 = vmatprep.subr.mxu0 0.0
    %353 = vmatpush1.msra.mxu0 0.0
    %354 = vmatprep.subr.mxu0 0.0
    %355 = vmatpush1.msra.mxu0 0.0
    %356 = vmatprep.subr.mxu0 0.0
    %357 = vmatpush1.msra.mxu0 0.0
    %358 = vmatprep.subr.mxu0 0.0
    %359 = vmatpush1.msra.mxu0 0.0
    %360 = vmatprep.subr.mxu0 0.0
    %361 = vmatpush1.msra.mxu0 0.0
    %362 = vmatprep.subr.mxu0 0.0
    %363 = vmatpush1.msra.mxu0 0.0
    %364 = vmatprep.subr.mxu0 0.0
    %365 = vmatpush1.msra.mxu0 0.0
    %366 = vmatprep.subr.mxu0 0.0
    %367 = vmatpush1.msra.mxu0 0.0
    %368 = vmatprep.mubr.f32.mxu0 0.0
    %369 = vmatmul.mubr.f32.gmra.mrb[0].mxu0 %v109
    %v370 = vpop.f32.mrb[0].mxu0
    %v371 = vadd.f32 0.0, %v370
    %v372 = vpop.f32.mrb[0].mxu0
    %373 = vmatprep.mubr.f32.mxu0 0.0
    %374 = vmatmul.mubr.f32.gmra.mrb[0].mxu0 %v112
    %v375 = vpop.f32.mrb[0].mxu0
    %v376 = vadd.f32 0.0, %v375
    %v377 = vpop.f32.mrb[0].mxu0
    %378 = vmatprep.mubr.f32.mxu0 0.0
    %379 = vmatmul.mubr.f32.gmra.mrb[0].mxu0 %v115
    %v380 = vpop.f32.mrb[0].mxu0
    %v381 = vadd.f32 0.0, %v380
    %v382 = vpop.f32.mrb[0].mxu0
    %383 = vmatprep.mubr.f32.mxu0 0.0
    %384 = vmatmul.mubr.f32.gmra.mrb[0].mxu0 %v118
    %v385 = vpop.f32.mrb[0].mxu0
    %v386 = vadd.f32 0.0, %v385
    %v387 = vpop.f32.mrb[0].mxu0
    %388 = vmatprep.mubr.f32.mxu0 0.0
    %389 = vmatmul.mubr.f32.gmra.mrb[0].mxu0 %v121
    %v390 = vpop.f32.mrb[0].mxu0
    %v391 = vadd.f32 0.0, %v390
    %v392 = vpop.f32.mrb[0].mxu0
    %393 = vmatprep.mubr.f32.mxu0 0.0
    %394 = vmatmul.mubr.f32.gmra.mrb[0].mxu0 %v124
    %v395 = vpop.f32.mrb[0].mxu0
    %v396 = vadd.f32 0.0, %v395
    %v397 = vpop.f32.mrb[0].mxu0
    %398 = vmatprep.mubr.f32.mxu0 0.0
    %399 = vmatmul.mubr.f32.gmra.mrb[0].mxu0 %v127
    %v400 = vpop.f32.mrb[0].mxu0
    %v401 = vadd.f32 0.0, %v400
    %v402 = vpop.f32.mrb[0].mxu0
    %403 = vmatprep.mubr.f32.mxu0 0.0
    %404 = vmatmul.mubr.f32.gmra.mrb[0].mxu0 %v130
    %v405 = vpop.f32.mrb[0].mxu0
    %v406 = vadd.f32 0.0, %v405
    %v407 = vpop.f32.mrb[0].mxu0
    %408 = vmatprep.mubr.f32.mxu0 0.0
    %409 = vmatmul.mubr.f32.gmra.mrb[0].mxu0 %v133
    %v410 = vpop.f32.mrb[0].mxu0
    %v411 = vadd.f32 0.0, %v410
    %v412 = vpop.f32.mrb[0].mxu0
    %413 = vmatprep.mubr.f32.mxu0 0.0
    %414 = vmatmul.mubr.f32.gmra.mrb[0].mxu0 %v136
    %v415 = vpop.f32.mrb[0].mxu0
    %v416 = vadd.f32 0.0, %v415
    %v417 = vpop.f32.mrb[0].mxu0
    %418 = vmatprep.mubr.f32.mxu0 0.0
    %419 = vmatmul.mubr.f32.gmra.mrb[0].mxu0 %v139
    %v420 = vpop.f32.mrb[0].mxu0
    %v421 = vadd.f32 0.0, %v420
    %v422 = vpop.f32.mrb[0].mxu0
    %423 = vmatprep.mubr.f32.mxu0 0.0
    %424 = vmatmul.mubr.f32.gmra.mrb[0].mxu0 %v142
    %v425 = vpop.f32.mrb[0].mxu0
    %v426 = vadd.f32 0.0, %v425
    %v427 = vpop.f32.mrb[0].mxu0
    %428 = vmatprep.mubr.f32.mxu0 0.0
    %429 = vmatmul.mubr.f32.gmra.mrb[0].mxu0 %v145
    %v430 = vpop.f32.mrb[0].mxu0
    %v431 = vadd.f32 0.0, %v430
    %v432 = vpop.f32.mrb[0].mxu0
    %433 = vmatprep.mubr.f32.mxu0 0.0
    %434 = vmatmul.mubr.f32.gmra.mrb[0].mxu0 %v148
    %v435 = vpop.f32.mrb[0].mxu0
    %v436 = vadd.f32 0.0, %v435
    %v437 = vpop.f32.mrb[0].mxu0
    %438 = vmatprep.mubr.f32.mxu0 0.0
    %439 = vmatmul.mubr.f32.gmra.mrb[0].mxu0 %v151
    %v440 = vpop.f32.mrb[0].mxu0
    %v441 = vadd.f32 0.0, %v440
    %v442 = vpop.f32.mrb[0].mxu0
    %443 = vmatprep.mubr.f32.mxu0 0.0
    %444 = vmatmul.mubr.f32.gmra.mrb[0].mxu0 %v154
    %v445 = vpop.f32.mrb[0].mxu0
    %v446 = vadd.f32 0.0, %v445
    %v447 = vpop.f32.mrb[0].mxu0
    %448 = vmatprep.mubr.f32.mxu0 0.0
    %449 = vmatmul.mubr.f32.gmra.mrb[0].mxu0 %v157
    %v450 = vpop.f32.mrb[0].mxu0
    %v451 = vadd.f32 0.0, %v450
    %v452 = vpop.f32.mrb[0].mxu0
    %453 = vmatprep.mubr.f32.mxu0 0.0
    %454 = vmatmul.mubr.f32.gmra.mrb[0].mxu0 %v160
    %v455 = vpop.f32.mrb[0].mxu0
    %v456 = vadd.f32 0.0, %v455
    %v457 = vpop.f32.mrb[0].mxu0
    %458 = vmatprep.mubr.f32.mxu0 0.0
    %459 = vmatmul.mubr.f32.gmra.mrb[0].mxu0 %v163
    %v460 = vpop.f32.mrb[0].mxu0
    %v461 = vadd.f32 0.0, %v460
    %v462 = vpop.f32.mrb[0].mxu0
    %463 = vmatprep.mubr.f32.mxu0 0.0
    %464 = vmatmul.mubr.f32.gmra.mrb[0].mxu0 %v166
    %v465 = vpop.f32.mrb[0].mxu0
    %v466 = vadd.f32 0.0, %v465
    %v467 = vpop.f32.mrb[0].mxu0
    %468 = vmatprep.mubr.f32.mxu0 0.0
    %469 = vmatmul.mubr.f32.gmra.mrb[0].mxu0 %v169
    %v470 = vpop.f32.mrb[0].mxu0
    %v471 = vadd.f32 0.0, %v470
    %v472 = vpop.f32.mrb[0].mxu0
    %473 = vmatprep.mubr.f32.mxu0 0.0
    %474 = vmatmul.mubr.f32.gmra.mrb[0].mxu0 %v172
    %v475 = vpop.f32.mrb[0].mxu0
    %v476 = vadd.f32 0.0, %v475
    %v477 = vpop.f32.mrb[0].mxu0
    %478 = vmatprep.mubr.f32.mxu0 0.0
    %479 = vmatmul.mubr.f32.gmra.mrb[0].mxu0 %v175
    %v480 = vpop.f32.mrb[0].mxu0
    %v481 = vadd.f32 0.0, %v480
    %v482 = vpop.f32.mrb[0].mxu0
    %483 = vmatprep.mubr.f32.mxu0 0.0
    %484 = vmatmul.mubr.f32.gmra.mrb[0].mxu0 %v178
    %v485 = vpop.f32.mrb[0].mxu0
    %v486 = vadd.f32 0.0, %v485
    %v487 = vpop.f32.mrb[0].mxu0
    %488 = vmatprep.mubr.f32.mxu0 0.0
    %489 = vmatmul.mubr.f32.gmra.mrb[0].mxu0 %v181
    %v490 = vpop.f32.mrb[0].mxu0
    %v491 = vadd.f32 0.0, %v490
    %v492 = vpop.f32.mrb[0].mxu0
    %493 = vmatprep.mubr.f32.mxu0 0.0
    %494 = vmatmul.mubr.f32.gmra.mrb[0].mxu0 %v184
    %v495 = vpop.f32.mrb[0].mxu0
    %v496 = vadd.f32 0.0, %v495
    %v497 = vpop.f32.mrb[0].mxu0
    %498 = vmatprep.mubr.f32.mxu0 0.0
    %499 = vmatmul.mubr.f32.gmra.mrb[0].mxu0 %v187
    %v500 = vpop.f32.mrb[0].mxu0
    %v501 = vadd.f32 0.0, %v500
    %v502 = vpop.f32.mrb[0].mxu0
    %503 = vmatprep.mubr.f32.mxu0 0.0
    %504 = vmatmul.mubr.f32.gmra.mrb[0].mxu0 %v190
    %v505 = vpop.f32.mrb[0].mxu0
    %v506 = vadd.f32 0.0, %v505
    %v507 = vpop.f32.mrb[0].mxu0
    %508 = vmatprep.mubr.f32.mxu0 0.0
    %509 = vmatmul.mubr.f32.gmra.mrb[0].mxu0 %v193
    %v510 = vpop.f32.mrb[0].mxu0
    %v511 = vadd.f32 0.0, %v510
    %v512 = vpop.f32.mrb[0].mxu0
    %513 = vmatprep.mubr.f32.mxu0 0.0
    %514 = vmatmul.mubr.f32.gmra.mrb[0].mxu0 %v196
    %v515 = vpop.f32.mrb[0].mxu0
    %v516 = vadd.f32 0.0, %v515
    %v517 = vpop.f32.mrb[0].mxu0
    %518 = vmatprep.mubr.f32.mxu0 0.0
    %519 = vmatmul.mubr.f32.gmra.mrb[0].mxu0 %v199
    %v520 = vpop.f32.mrb[0].mxu0
    %v521 = vadd.f32 0.0, %v520
    %v522 = vpop.f32.mrb[0].mxu0
    %523 = vmatprep.mubr.f32.mxu0 0.0
    %524 = vmatmul.mubr.f32.gmra.mrb[0].mxu0 %v202
    %v525 = vpop.f32.mrb[0].mxu0
    %v526 = vadd.f32 0.0, %v525
    %v527 = vpop.f32.mrb[0].mxu0
    %528 = vmatprep.mubr.f32.mxu0 0.0
    %529 = vmatmul.mubr.f32.gmra.mrb[0].mxu0 %v205
    %v530 = vpop.f32.mrb[0].mxu0
    %v531 = vadd.f32 0.0, %v530
    %v532 = vpop.f32.mrb[0].mxu0
    %533 = vmatprep.mubr.f32.mxu0 0.0
    %534 = vmatmul.mubr.f32.gmra.mrb[0].mxu0 %v208
    %v535 = vpop.f32.mrb[0].mxu0
    %v536 = vadd.f32 0.0, %v535
    %v537 = vpop.f32.mrb[0].mxu0
    %538 = vmatprep.mubr.f32.mxu0 0.0
    %539 = vmatmul.mubr.f32.gmra.mrb[0].mxu0 %v211
    %v540 = vpop.f32.mrb[0].mxu0
    %v541 = vadd.f32 0.0, %v540
    %v542 = vpop.f32.mrb[0].mxu0
    %543 = vmatprep.mubr.f32.mxu0 0.0
    %544 = vmatmul.mubr.f32.gmra.mrb[0].mxu0 %v214
    %v545 = vpop.f32.mrb[0].mxu0
    %v546 = vadd.f32 0.0, %v545
    %v547 = vpop.f32.mrb[0].mxu0
    %548 = vmatprep.mubr.f32.mxu0 0.0
    %549 = vmatmul.mubr.f32.gmra.mrb[0].mxu0 %v217
    %v550 = vpop.f32.mrb[0].mxu0
    %v551 = vadd.f32 0.0, %v550
    %v552 = vpop.f32.mrb[0].mxu0
    %553 = vmatprep.mubr.f32.mxu0 0.0
    %554 = vmatmul.mubr.f32.gmra.mrb[0].mxu0 %v220
    %v555 = vpop.f32.mrb[0].mxu0
    %v556 = vadd.f32 0.0, %v555
    %v557 = vpop.f32.mrb[0].mxu0
    %558 = vmatprep.mubr.f32.mxu0 0.0
    %559 = vmatmul.mubr.f32.gmra.mrb[0].mxu0 %v223
    %v560 = vpop.f32.mrb[0].mxu0
    %v561 = vadd.f32 0.0, %v560
    %v562 = vpop.f32.mrb[0].mxu0
    %563 = vmatprep.mubr.f32.mxu0 0.0
    %564 = vmatmul.mubr.f32.gmra.mrb[0].mxu0 %v226
    %v565 = vpop.f32.mrb[0].mxu0
    %v566 = vadd.f32 0.0, %v565
    %v567 = vpop.f32.mrb[0].mxu0
    %568 = vmatprep.mubr.f32.mxu0 0.0
    %569 = vmatmul.mubr.f32.gmra.mrb[0].mxu0 %v229
    %v570 = vpop.f32.mrb[0].mxu0
    %v571 = vadd.f32 0.0, %v570
    %v572 = vpop.f32.mrb[0].mxu0
    %573 = vmatprep.mubr.f32.mxu0 0.0
    %574 = vmatmul.mubr.f32.gmra.mrb[0].mxu0 %v232
    %v575 = vpop.f32.mrb[0].mxu0
    %v576 = vadd.f32 0.0, %v575
    %v577 = vpop.f32.mrb[0].mxu0
    %578 = vmatprep.mubr.f32.mxu0 0.0
    %579 = vmatmul.mubr.f32.gmra.mrb[0].mxu0 %v235
    %v580 = vpop.f32.mrb[0].mxu0
    %v581 = vadd.f32 0.0, %v580
    %v582 = vpop.f32.mrb[0].mxu0
    %583 = vmatprep.mubr.f32.mxu0 0.0
    %584 = vmatmul.mubr.f32.gmra.mrb[0].mxu0 %v238
    %v585 = vpop.f32.mrb[0].mxu0
    %v586 = vadd.f32 0.0, %v585
    %v587 = vpop.f32.mrb[0].mxu0
    %588 = vmatprep.mubr.f32.mxu0 0.0
    %589 = vmatmul.mubr.f32.gmra.mrb[0].mxu0 %v241
    %v590 = vpop.f32.mrb[0].mxu0
    %v591 = vadd.f32 0.0, %v590
    %v592 = vpop.f32.mrb[0].mxu0
    %593 = vmatprep.mubr.f32.mxu0 0.0
    %594 = vmatmul.mubr.f32.gmra.mrb[0].mxu0 %v244
    %v595 = vpop.f32.mrb[0].mxu0
    %v596 = vadd.f32 0.0, %v595
    %v597 = vpop.f32.mrb[0].mxu0
    %598 = vmatprep.mubr.f32.mxu0 0.0
    %599 = vmatmul.mubr.f32.gmra.mrb[0].mxu0 %v247
    %v600 = vpop.f32.mrb[0].mxu0
    %v601 = vadd.f32 0.0, %v600
    %v602 = vpop.f32.mrb[0].mxu0
    %603 = vmatprep.mubr.f32.mxu0 0.0
    %604 = vmatmul.mubr.f32.gmra.mrb[0].mxu0 %v250
    %v605 = vpop.f32.mrb[0].mxu0
    %v606 = vadd.f32 0.0, %v605
    %v607 = vpop.f32.mrb[0].mxu0
    %608 = vmatprep.mubr.f32.mxu0 0.0
    %609 = vmatmul.mubr.f32.gmra.mrb[0].mxu0 %v253
    %v610 = vpop.f32.mrb[0].mxu0
    %v611 = vadd.f32 0.0, %v610
    %v612 = vpop.f32.mrb[0].mxu0
    %613 = vmatprep.mubr.f32.mxu0 0.0
    %614 = vmatmul.mubr.f32.gmra.mrb[0].mxu0 %v256
    %v615 = vpop.f32.mrb[0].mxu0
    %v616 = vadd.f32 0.0, %v615
    %v617 = vpop.f32.mrb[0].mxu0
    %618 = vmatprep.mubr.f32.mxu0 0.0
    %619 = vmatmul.mubr.f32.gmra.mrb[0].mxu0 %v259
    %v620 = vpop.f32.mrb[0].mxu0
    %v621 = vadd.f32 0.0, %v620
    %v622 = vpop.f32.mrb[0].mxu0
    %623 = vmatprep.mubr.f32.mxu0 0.0
    %624 = vmatmul.mubr.f32.gmra.mrb[0].mxu0 %v262
    %v625 = vpop.f32.mrb[0].mxu0
    %v626 = vadd.f32 0.0, %v625
    %v627 = vpop.f32.mrb[0].mxu0
    %628 = vmatprep.mubr.f32.mxu0 0.0
    %629 = vmatmul.mubr.f32.gmra.mrb[0].mxu0 %v265
    %v630 = vpop.f32.mrb[0].mxu0
    %v631 = vadd.f32 0.0, %v630
    %v632 = vpop.f32.mrb[0].mxu0
    %633 = vmatprep.mubr.f32.mxu0 0.0
    %634 = vmatmul.mubr.f32.gmra.mrb[0].mxu0 %v268
    %v635 = vpop.f32.mrb[0].mxu0
    %v636 = vadd.f32 0.0, %v635
    %v637 = vpop.f32.mrb[0].mxu0
    %638 = vmatprep.mubr.f32.mxu0 0.0
    %639 = vmatmul.mubr.f32.gmra.mrb[0].mxu0 %v271
    %v640 = vpop.f32.mrb[0].mxu0
    %v641 = vadd.f32 0.0, %v640
    %v642 = vpop.f32.mrb[0].mxu0
    %643 = vmatprep.mubr.f32.mxu0 0.0
    %644 = vmatmul.mubr.f32.gmra.mrb[0].mxu0 %v274
    %v645 = vpop.f32.mrb[0].mxu0
    %v646 = vadd.f32 0.0, %v645
    %v647 = vpop.f32.mrb[0].mxu0
    %648 = vmatprep.mubr.f32.mxu0 0.0
    %649 = vmatmul.mubr.f32.gmra.mrb[0].mxu0 %v277
    %v650 = vpop.f32.mrb[0].mxu0
    %v651 = vadd.f32 0.0, %v650
    %v652 = vpop.f32.mrb[0].mxu0
    %653 = vmatprep.mubr.f32.mxu0 0.0
    %654 = vmatmul.mubr.f32.gmra.mrb[0].mxu0 %v280
    %v655 = vpop.f32.mrb[0].mxu0
    %v656 = vadd.f32 0.0, %v655
    %v657 = vpop.f32.mrb[0].mxu0
    %658 = vmatprep.mubr.f32.mxu0 0.0
    %659 = vmatmul.mubr.f32.gmra.mrb[0].mxu0 %v283
    %v660 = vpop.f32.mrb[0].mxu0
    %v661 = vadd.f32 0.0, %v660
    %v662 = vpop.f32.mrb[0].mxu0
    %663 = vmatprep.mubr.f32.mxu0 0.0
    %664 = vmatmul.mubr.f32.gmra.mrb[0].mxu0 %v286
    %v665 = vpop.f32.mrb[0].mxu0
    %v666 = vadd.f32 0.0, %v665
    %v667 = vpop.f32.mrb[0].mxu0
    %668 = vmatprep.mubr.f32.mxu0 0.0
    %669 = vmatmul.mubr.f32.gmra.mrb[0].mxu0 %v289
    %v670 = vpop.f32.mrb[0].mxu0
    %v671 = vadd.f32 0.0, %v670
    %v672 = vpop.f32.mrb[0].mxu0
    %673 = vmatprep.mubr.f32.mxu0 0.0
    %674 = vmatmul.mubr.f32.gmra.mrb[0].mxu0 %v292
    %v675 = vpop.f32.mrb[0].mxu0
    %v676 = vadd.f32 0.0, %v675
    %v677 = vpop.f32.mrb[0].mxu0
    %678 = vmatprep.mubr.f32.mxu0 0.0
    %679 = vmatmul.mubr.f32.gmra.mrb[0].mxu0 %v295
    %v680 = vpop.f32.mrb[0].mxu0
    %v681 = vadd.f32 0.0, %v680
    %v682 = vpop.f32.mrb[0].mxu0
    %683 = vmatprep.mubr.f32.mxu0 0.0
    %684 = vmatmul.mubr.f32.gmra.mrb[0].mxu0 %v298
    %v685 = vpop.f32.mrb[0].mxu0
    %v686 = vadd.f32 0.0, %v685
    %v687 = vpop.f32.mrb[0].mxu0
    %688 = vdwg.mxu0
    %689 = vst.msk [vmem:[#allocation7] sm:$0xff] %vm107, %v371
    %690 = vst.msk [vmem:[#allocation7 + $0x8] sm:$0xff] %vm107, %v376
    %691 = vst.msk [vmem:[#allocation7 + $0x10] sm:$0xff] %vm107, %v381
    %692 = vst.msk [vmem:[#allocation7 + $0x18] sm:$0xff] %vm107, %v386
    %693 = vst.msk [vmem:[#allocation7 + $0x20] sm:$0xff] %vm107, %v391
    %694 = vst.msk [vmem:[#allocation7 + $0x28] sm:$0xff] %vm107, %v396
    %695 = vst.msk [vmem:[#allocation7 + $0x30] sm:$0xff] %vm107, %v401
    %696 = vst.msk [vmem:[#allocation7 + $0x38] sm:$0xff] %vm107, %v406
    %697 = vst.msk [vmem:[#allocation7 + $0x40] sm:$0xff] %vm107, %v411
    %698 = vst.msk [vmem:[#allocation7 + $0x48] sm:$0xff] %vm107, %v416
    %699 = vst.msk [vmem:[#allocation7 + $0x50] sm:$0xff] %vm107, %v421
    %700 = vst.msk [vmem:[#allocation7 + $0x58] sm:$0xff] %vm107, %v426
    %701 = vst.msk [vmem:[#allocation7 + $0x60] sm:$0xff] %vm107, %v431
    %702 = vst.msk [vmem:[#allocation7 + $0x68] sm:$0xff] %vm107, %v436
    %703 = vst.msk [vmem:[#allocation7 + $0x70] sm:$0xff] %vm107, %v441
    %704 = vst.msk [vmem:[#allocation7 + $0x78] sm:$0xff] %vm107, %v446
    %705 = vst.msk [vmem:[#allocation7 + $0x80] sm:$0xff] %vm107, %v451
    %706 = vst.msk [vmem:[#allocation7 + $0x88] sm:$0xff] %vm107, %v456
    %707 = vst.msk [vmem:[#allocation7 + $0x90] sm:$0xff] %vm107, %v461
    %708 = vst.msk [vmem:[#allocation7 + $0x98] sm:$0xff] %vm107, %v466
    %709 = vst.msk [vmem:[#allocation7 + $0xa0] sm:$0xff] %vm107, %v471
    %710 = vst.msk [vmem:[#allocation7 + $0xa8] sm:$0xff] %vm107, %v476
    %711 = vst.msk [vmem:[#allocation7 + $0xb0] sm:$0xff] %vm107, %v481
    %712 = vst.msk [vmem:[#allocation7 + $0xb8] sm:$0xff] %vm107, %v486
    %713 = vst.msk [vmem:[#allocation7 + $0xc0] sm:$0xff] %vm107, %v491
    %714 = vst.msk [vmem:[#allocation7 + $0xc8] sm:$0xff] %vm107, %v496
    %715 = vst.msk [vmem:[#allocation7 + $0xd0] sm:$0xff] %vm107, %v501
    %716 = vst.msk [vmem:[#allocation7 + $0xd8] sm:$0xff] %vm107, %v506
    %717 = vst.msk [vmem:[#allocation7 + $0xe0] sm:$0xff] %vm107, %v511
    %718 = vst.msk [vmem:[#allocation7 + $0xe8] sm:$0xff] %vm107, %v516
    %719 = vst.msk [vmem:[#allocation7 + $0xf0] sm:$0xff] %vm107, %v521
    %720 = vst.msk [vmem:[#allocation7 + $0xf8] sm:$0xff] %vm107, %v526
    %721 = vst.msk [vmem:[#allocation7 + $0x100] sm:$0xff] %vm107, %v531
    %722 = vst.msk [vmem:[#allocation7 + $0x108] sm:$0xff] %vm107, %v536
    %723 = vst.msk [vmem:[#allocation7 + $0x110] sm:$0xff] %vm107, %v541
    %724 = vst.msk [vmem:[#allocation7 + $0x118] sm:$0xff] %vm107, %v546
    %725 = vst.msk [vmem:[#allocation7 + $0x120] sm:$0xff] %vm107, %v551
    %726 = vst.msk [vmem:[#allocation7 + $0x128] sm:$0xff] %vm107, %v556
    %727 = vst.msk [vmem:[#allocation7 + $0x130] sm:$0xff] %vm107, %v561
    %728 = vst.msk [vmem:[#allocation7 + $0x138] sm:$0xff] %vm107, %v566
    %729 = vst.msk [vmem:[#allocation7 + $0x140] sm:$0xff] %vm107, %v571
    %730 = vst.msk [vmem:[#allocation7 + $0x148] sm:$0xff] %vm107, %v576
    %731 = vst.msk [vmem:[#allocation7 + $0x150] sm:$0xff] %vm107, %v581
    %732 = vst.msk [vmem:[#allocation7 + $0x158] sm:$0xff] %vm107, %v586
    %733 = vst.msk [vmem:[#allocation7 + $0x160] sm:$0xff] %vm107, %v591
    %734 = vst.msk [vmem:[#allocation7 + $0x168] sm:$0xff] %vm107, %v596
    %735 = vst.msk [vmem:[#allocation7 + $0x170] sm:$0xff] %vm107, %v601
    %736 = vst.msk [vmem:[#allocation7 + $0x178] sm:$0xff] %vm107, %v606
    %737 = vst.msk [vmem:[#allocation7 + $0x180] sm:$0xff] %vm107, %v611
    %738 = vst.msk [vmem:[#allocation7 + $0x188] sm:$0xff] %vm107, %v616
    %739 = vst.msk [vmem:[#allocation7 + $0x190] sm:$0xff] %vm107, %v621
    %740 = vst.msk [vmem:[#allocation7 + $0x198] sm:$0xff] %vm107, %v626
    %741 = vst.msk [vmem:[#allocation7 + $0x1a0] sm:$0xff] %vm107, %v631
    %742 = vst.msk [vmem:[#allocation7 + $0x1a8] sm:$0xff] %vm107, %v636
    %743 = vst.msk [vmem:[#allocation7 + $0x1b0] sm:$0xff] %vm107, %v641
    %744 = vst.msk [vmem:[#allocation7 + $0x1b8] sm:$0xff] %vm107, %v646
    %745 = vst.msk [vmem:[#allocation7 + $0x1c0] sm:$0xff] %vm107, %v651
    %746 = vst.msk [vmem:[#allocation7 + $0x1c8] sm:$0xff] %vm107, %v656
    %747 = vst.msk [vmem:[#allocation7 + $0x1d0] sm:$0xff] %vm107, %v661
    %748 = vst.msk [vmem:[#allocation7 + $0x1d8] sm:$0xff] %vm107, %v666
    %749 = vst.msk [vmem:[#allocation7 + $0x1e0] sm:$0xff] %vm107, %v671
    %750 = vst.msk [vmem:[#allocation7 + $0x1e8] sm:$0xff] %vm107, %v676
    %751 = vst.msk [vmem:[#allocation7 + $0x1f0] sm:$0xff] %vm107, %v681
    %752 = vst.msk [vmem:[#allocation7 + $0x1f8] sm:$0xff] %vm107, %v686
    %v753 = vsel %vm107, %v371, 0.0
    %v754 = vsel %vm107, %v376, 0.0
    %v755 = vadd.f32 %v753, %v754
    %v756 = vsel %vm107, %v381, 0.0
    %v757 = vadd.f32 %v755, %v756
    %v758 = vsel %vm107, %v386, 0.0
    %v759 = vadd.f32 %v757, %v758
    %v760 = vsel %vm107, %v391, 0.0
    %v761 = vadd.f32 %v759, %v760
    %v762 = vsel %vm107, %v396, 0.0
    %v763 = vadd.f32 %v761, %v762
    %v764 = vsel %vm107, %v401, 0.0
    %v765 = vadd.f32 %v763, %v764
    %v766 = vsel %vm107, %v406, 0.0
    %v767 = vadd.f32 %v765, %v766
    %v768 = vsel %vm107, %v411, 0.0
    %v769 = vadd.f32 %v767, %v768
    %v770 = vsel %vm107, %v416, 0.0
    %v771 = vadd.f32 %v769, %v770
    %v772 = vsel %vm107, %v421, 0.0
    %v773 = vadd.f32 %v771, %v772
    %v774 = vsel %vm107, %v426, 0.0
    %v775 = vadd.f32 %v773, %v774
    %v776 = vsel %vm107, %v431, 0.0
    %v777 = vadd.f32 %v775, %v776
    %v778 = vsel %vm107, %v436, 0.0
    %v779 = vadd.f32 %v777, %v778
    %v780 = vsel %vm107, %v441, 0.0
    %v781 = vadd.f32 %v779, %v780
    %v782 = vsel %vm107, %v446, 0.0
    %v783 = vadd.f32 %v781, %v782
    %v784 = vsel %vm107, %v451, 0.0
    %v785 = vadd.f32 %v783, %v784
    %v786 = vsel %vm107, %v456, 0.0
    %v787 = vadd.f32 %v785, %v786
    %v788 = vsel %vm107, %v461, 0.0
    %v789 = vadd.f32 %v787, %v788
    %v790 = vsel %vm107, %v466, 0.0
    %v791 = vadd.f32 %v789, %v790
    %v792 = vsel %vm107, %v471, 0.0
    %v793 = vadd.f32 %v791, %v792
    %v794 = vsel %vm107, %v476, 0.0
    %v795 = vadd.f32 %v793, %v794
    %v796 = vsel %vm107, %v481, 0.0
    %v797 = vadd.f32 %v795, %v796
    %v798 = vsel %vm107, %v486, 0.0
    %v799 = vadd.f32 %v797, %v798
    %v800 = vsel %vm107, %v491, 0.0
    %v801 = vadd.f32 %v799, %v800
    %v802 = vsel %vm107, %v496, 0.0
    %v803 = vadd.f32 %v801, %v802
    %v804 = vsel %vm107, %v501, 0.0
    %v805 = vadd.f32 %v803, %v804
    %v806 = vsel %vm107, %v506, 0.0
    %v807 = vadd.f32 %v805, %v806
    %v808 = vsel %vm107, %v511, 0.0
    %v809 = vadd.f32 %v807, %v808
    %v810 = vsel %vm107, %v516, 0.0
    %v811 = vadd.f32 %v809, %v810
    %v812 = vsel %vm107, %v521, 0.0
    %v813 = vadd.f32 %v811, %v812
    %v814 = vsel %vm107, %v526, 0.0
    %v815 = vadd.f32 %v813, %v814
    %v816 = vsel %vm107, %v531, 0.0
    %v817 = vadd.f32 %v815, %v816
    %v818 = vsel %vm107, %v536, 0.0
    %v819 = vadd.f32 %v817, %v818
    %v820 = vsel %vm107, %v541, 0.0
    %v821 = vadd.f32 %v819, %v820
    %v822 = vsel %vm107, %v546, 0.0
    %v823 = vadd.f32 %v821, %v822
    %v824 = vsel %vm107, %v551, 0.0
    %v825 = vadd.f32 %v823, %v824
    %v826 = vsel %vm107, %v556, 0.0
    %v827 = vadd.f32 %v825, %v826
    %v828 = vsel %vm107, %v561, 0.0
    %v829 = vadd.f32 %v827, %v828
    %v830 = vsel %vm107, %v566, 0.0
    %v831 = vadd.f32 %v829, %v830
    %v832 = vsel %vm107, %v571, 0.0
    %v833 = vadd.f32 %v831, %v832
    %v834 = vsel %vm107, %v576, 0.0
    %v835 = vadd.f32 %v833, %v834
    %v836 = vsel %vm107, %v581, 0.0
    %v837 = vadd.f32 %v835, %v836
    %v838 = vsel %vm107, %v586, 0.0
    %v839 = vadd.f32 %v837, %v838
    %v840 = vsel %vm107, %v591, 0.0
    %v841 = vadd.f32 %v839, %v840
    %v842 = vsel %vm107, %v596, 0.0
    %v843 = vadd.f32 %v841, %v842
    %v844 = vsel %vm107, %v601, 0.0
    %v845 = vadd.f32 %v843, %v844
    %v846 = vsel %vm107, %v606, 0.0
    %v847 = vadd.f32 %v845, %v846
    %v848 = vsel %vm107, %v611, 0.0
    %v849 = vadd.f32 %v847, %v848
    %v850 = vsel %vm107, %v616, 0.0
    %v851 = vadd.f32 %v849, %v850
    %v852 = vsel %vm107, %v621, 0.0
    %v853 = vadd.f32 %v851, %v852
    %v854 = vsel %vm107, %v626, 0.0
    %v855 = vadd.f32 %v853, %v854
    %v856 = vsel %vm107, %v631, 0.0
    %v857 = vadd.f32 %v855, %v856
    %v858 = vsel %vm107, %v636, 0.0
    %v859 = vadd.f32 %v857, %v858
    %v860 = vsel %vm107, %v641, 0.0
    %v861 = vadd.f32 %v859, %v860
    %v862 = vsel %vm107, %v646, 0.0
    %v863 = vadd.f32 %v861, %v862
    %v864 = vsel %vm107, %v651, 0.0
    %v865 = vadd.f32 %v863, %v864
    %v866 = vsel %vm107, %v656, 0.0
    %v867 = vadd.f32 %v865, %v866
    %v868 = vsel %vm107, %v661, 0.0
    %v869 = vadd.f32 %v867, %v868
    %v870 = vsel %vm107, %v666, 0.0
    %v871 = vadd.f32 %v869, %v870
    %v872 = vsel %vm107, %v671, 0.0
    %v873 = vadd.f32 %v871, %v872
    %v874 = vsel %vm107, %v676, 0.0
    %v875 = vadd.f32 %v873, %v874
    %v876 = vsel %vm107, %v681, 0.0
    %v877 = vadd.f32 %v875, %v876
    %v878 = vsel %vm107, %v686, 0.0
    %v879 = vadd.f32 %v877, %v878
    %v880 = vrot.slane %v879, 4
    %v881 = vadd.f32 %v879, %v880
    %v882 = vrot.slane %v881, 2
    %v883 = vadd.f32 %v881, %v882
    %v884 = vrot.slane %v883, 1
    %v885 = vadd.f32 %v883, %v884
    %vm886 = vcmask 24576
    %887 = vst.msk [vmem:[#allocation8] sm:$0x1] %vm886, %v885
    %v888 = vmul.f32 %v371, %v371
    %v889 = vmul.f32 %v376, %v376
    %v890 = vmul.f32 %v381, %v381
    %v891 = vmul.f32 %v386, %v386
    %v892 = vmul.f32 %v391, %v391
    %v893 = vmul.f32 %v396, %v396
    %v894 = vmul.f32 %v401, %v401
    %v895 = vmul.f32 %v406, %v406
    %v896 = vmul.f32 %v411, %v411
    %v897 = vmul.f32 %v416, %v416
    %v898 = vmul.f32 %v421, %v421
    %v899 = vmul.f32 %v426, %v426
    %v900 = vmul.f32 %v431, %v431
    %v901 = vmul.f32 %v436, %v436
    %v902 = vmul.f32 %v441, %v441
    %v903 = vmul.f32 %v446, %v446
    %v904 = vmul.f32 %v451, %v451
    %v905 = vmul.f32 %v456, %v456
    %v906 = vmul.f32 %v461, %v461
    %v907 = vmul.f32 %v466, %v466
    %v908 = vmul.f32 %v471, %v471
    %v909 = vmul.f32 %v476, %v476
    %v910 = vmul.f32 %v481, %v481
    %v911 = vmul.f32 %v486, %v486
    %v912 = vmul.f32 %v491, %v491
    %v913 = vmul.f32 %v496, %v496
    %v914 = vmul.f32 %v501, %v501
    %v915 = vmul.f32 %v506, %v506
    %v916 = vmul.f32 %v511, %v511
    %v917 = vmul.f32 %v516, %v516
    %v918 = vmul.f32 %v521, %v521
    %v919 = vmul.f32 %v526, %v526
    %v920 = vmul.f32 %v531, %v531
    %v921 = vmul.f32 %v536, %v536
    %v922 = vmul.f32 %v541, %v541
    %v923 = vmul.f32 %v546, %v546
    %v924 = vmul.f32 %v551, %v551
    %v925 = vmul.f32 %v556, %v556
    %v926 = vmul.f32 %v561, %v561
    %v927 = vmul.f32 %v566, %v566
    %v928 = vmul.f32 %v571, %v571
    %v929 = vmul.f32 %v576, %v576
    %v930 = vmul.f32 %v581, %v581
    %v931 = vmul.f32 %v586, %v586
    %v932 = vmul.f32 %v591, %v591
    %v933 = vmul.f32 %v596, %v596
    %v934 = vmul.f32 %v601, %v601
    %v935 = vmul.f32 %v606, %v606
    %v936 = vmul.f32 %v611, %v611
    %v937 = vmul.f32 %v616, %v616
    %v938 = vmul.f32 %v621, %v621
    %v939 = vmul.f32 %v626, %v626
    %v940 = vmul.f32 %v631, %v631
    %v941 = vmul.f32 %v636, %v636
    %v942 = vmul.f32 %v641, %v641
    %v943 = vmul.f32 %v646, %v646
    %v944 = vmul.f32 %v651, %v651
    %v945 = vmul.f32 %v656, %v656
    %v946 = vmul.f32 %v661, %v661
    %v947 = vmul.f32 %v666, %v666
    %v948 = vmul.f32 %v671, %v671
    %v949 = vmul.f32 %v676, %v676
    %v950 = vmul.f32 %v681, %v681
    %v951 = vmul.f32 %v686, %v686
    %v952 = vsel %vm107, %v888, 0.0
    %v953 = vsel %vm107, %v889, 0.0
    %v954 = vadd.f32 %v952, %v953
    %v955 = vsel %vm107, %v890, 0.0
    %v956 = vadd.f32 %v954, %v955
    %v957 = vsel %vm107, %v891, 0.0
    %v958 = vadd.f32 %v956, %v957
    %v959 = vsel %vm107, %v892, 0.0
    %v960 = vadd.f32 %v958, %v959
    %v961 = vsel %vm107, %v893, 0.0
    %v962 = vadd.f32 %v960, %v961
    %v963 = vsel %vm107, %v894, 0.0
    %v964 = vadd.f32 %v962, %v963
    %v965 = vsel %vm107, %v895, 0.0
    %v966 = vadd.f32 %v964, %v965
    %v967 = vsel %vm107, %v896, 0.0
    %v968 = vadd.f32 %v966, %v967
    %v969 = vsel %vm107, %v897, 0.0
    %v970 = vadd.f32 %v968, %v969
    %v971 = vsel %vm107, %v898, 0.0
    %v972 = vadd.f32 %v970, %v971
    %v973 = vsel %vm107, %v899, 0.0
    %v974 = vadd.f32 %v972, %v973
    %v975 = vsel %vm107, %v900, 0.0
    %v976 = vadd.f32 %v974, %v975
    %v977 = vsel %vm107, %v901, 0.0
    %v978 = vadd.f32 %v976, %v977
    %v979 = vsel %vm107, %v902, 0.0
    %v980 = vadd.f32 %v978, %v979
    %v981 = vsel %vm107, %v903, 0.0
    %v982 = vadd.f32 %v980, %v981
    %v983 = vsel %vm107, %v904, 0.0
    %v984 = vadd.f32 %v982, %v983
    %v985 = vsel %vm107, %v905, 0.0
    %v986 = vadd.f32 %v984, %v985
    %v987 = vsel %vm107, %v906, 0.0
    %v988 = vadd.f32 %v986, %v987
    %v989 = vsel %vm107, %v907, 0.0
    %v990 = vadd.f32 %v988, %v989
    %v991 = vsel %vm107, %v908, 0.0
    %v992 = vadd.f32 %v990, %v991
    %v993 = vsel %vm107, %v909, 0.0
    %v994 = vadd.f32 %v992, %v993
    %v995 = vsel %vm107, %v910, 0.0
    %v996 = vadd.f32 %v994, %v995
    %v997 = vsel %vm107, %v911, 0.0
    %v998 = vadd.f32 %v996, %v997
    %v999 = vsel %vm107, %v912, 0.0
    %v1000 = vadd.f32 %v998, %v999
    %v1001 = vsel %vm107, %v913, 0.0
    %v1002 = vadd.f32 %v1000, %v1001
    %v1003 = vsel %vm107, %v914, 0.0
    %v1004 = vadd.f32 %v1002, %v1003
    %v1005 = vsel %vm107, %v915, 0.0
    %v1006 = vadd.f32 %v1004, %v1005
    %v1007 = vsel %vm107, %v916, 0.0
    %v1008 = vadd.f32 %v1006, %v1007
    %v1009 = vsel %vm107, %v917, 0.0
    %v1010 = vadd.f32 %v1008, %v1009
    %v1011 = vsel %vm107, %v918, 0.0
    %v1012 = vadd.f32 %v1010, %v1011
    %v1013 = vsel %vm107, %v919, 0.0
    %v1014 = vadd.f32 %v1012, %v1013
    %v1015 = vsel %vm107, %v920, 0.0
    %v1016 = vadd.f32 %v1014, %v1015
    %v1017 = vsel %vm107, %v921, 0.0
    %v1018 = vadd.f32 %v1016, %v1017
    %v1019 = vsel %vm107, %v922, 0.0
    %v1020 = vadd.f32 %v1018, %v1019
    %v1021 = vsel %vm107, %v923, 0.0
    %v1022 = vadd.f32 %v1020, %v1021
    %v1023 = vsel %vm107, %v924, 0.0
    %v1024 = vadd.f32 %v1022, %v1023
    %v1025 = vsel %vm107, %v925, 0.0
    %v1026 = vadd.f32 %v1024, %v1025
    %v1027 = vsel %vm107, %v926, 0.0
    %v1028 = vadd.f32 %v1026, %v1027
    %v1029 = vsel %vm107, %v927, 0.0
    %v1030 = vadd.f32 %v1028, %v1029
    %v1031 = vsel %vm107, %v928, 0.0
    %v1032 = vadd.f32 %v1030, %v1031
    %v1033 = vsel %vm107, %v929, 0.0
    %v1034 = vadd.f32 %v1032, %v1033
    %v1035 = vsel %vm107, %v930, 0.0
    %v1036 = vadd.f32 %v1034, %v1035
    %v1037 = vsel %vm107, %v931, 0.0
    %v1038 = vadd.f32 %v1036, %v1037
    %v1039 = vsel %vm107, %v932, 0.0
    %v1040 = vadd.f32 %v1038, %v1039
    %v1041 = vsel %vm107, %v933, 0.0
    %v1042 = vadd.f32 %v1040, %v1041
    %v1043 = vsel %vm107, %v934, 0.0
    %v1044 = vadd.f32 %v1042, %v1043
    %v1045 = vsel %vm107, %v935, 0.0
    %v1046 = vadd.f32 %v1044, %v1045
    %v1047 = vsel %vm107, %v936, 0.0
    %v1048 = vadd.f32 %v1046, %v1047
    %v1049 = vsel %vm107, %v937, 0.0
    %v1050 = vadd.f32 %v1048, %v1049
    %v1051 = vsel %vm107, %v938, 0.0
    %v1052 = vadd.f32 %v1050, %v1051
    %v1053 = vsel %vm107, %v939, 0.0
    %v1054 = vadd.f32 %v1052, %v1053
    %v1055 = vsel %vm107, %v940, 0.0
    %v1056 = vadd.f32 %v1054, %v1055
    %v1057 = vsel %vm107, %v941, 0.0
    %v1058 = vadd.f32 %v1056, %v1057
    %v1059 = vsel %vm107, %v942, 0.0
    %v1060 = vadd.f32 %v1058, %v1059
    %v1061 = vsel %vm107, %v943, 0.0
    %v1062 = vadd.f32 %v1060, %v1061
    %v1063 = vsel %vm107, %v944, 0.0
    %v1064 = vadd.f32 %v1062, %v1063
    %v1065 = vsel %vm107, %v945, 0.0
    %v1066 = vadd.f32 %v1064, %v1065
    %v1067 = vsel %vm107, %v946, 0.0
    %v1068 = vadd.f32 %v1066, %v1067
    %v1069 = vsel %vm107, %v947, 0.0
    %v1070 = vadd.f32 %v1068, %v1069
    %v1071 = vsel %vm107, %v948, 0.0
    %v1072 = vadd.f32 %v1070, %v1071
    %v1073 = vsel %vm107, %v949, 0.0
    %v1074 = vadd.f32 %v1072, %v1073
    %v1075 = vsel %vm107, %v950, 0.0
    %v1076 = vadd.f32 %v1074, %v1075
    %v1077 = vsel %vm107, %v951, 0.0
    %v1078 = vadd.f32 %v1076, %v1077
    %v1079 = vrot.slane %v1078, 4
    %v1080 = vadd.f32 %v1078, %v1079
    %v1081 = vrot.slane %v1080, 2
    %v1082 = vadd.f32 %v1080, %v1081
    %v1083 = vrot.slane %v1082, 1
    %v1084 = vadd.f32 %v1082, %v1083
    %1085 = vst.msk [vmem:[#allocation10] sm:$0x1] %vm886, %v1084
    // Predicated region
    $region18: #{_lambda_.4} parent=1 // pred_check
      _
    $region19: #{_lambda_.4} parent=1 // pred_check_branch
      %1087 = sbr.rel (0) target = $region21
    $region20: #{_lambda_.4} parent=1 // pred_region
      %s1089 = ssub.s32 8192, 8192
      %1090 = vsyncadd [#allocation4], %s1089
      %s1091 = sshll.u32 [#allocation7], 4
      %s1092 = int_to_ptr.vmem [resolvable:$true] %s1091
      %1097 = dma.vmem_to_hbm [thread:$0]  %s1092, 8192, %s2, [#allocation4], 128, 128, 8
    $region21: #{_lambda_.4} parent=1 // pred_fallthru
      _
    // Predicated region
    $region22: #{_lambda_.4} parent=1 // pred_check
      _
    $region23: #{_lambda_.4} parent=1 // pred_check_branch
      %1099 = sbr.rel (0) target = $region25
    $region24: #{_lambda_.4} parent=1 // pred_region
      %s1101 = ssub.s32 16, 16
      %1102 = vsyncadd [#allocation9], %s1101
      %s1104 = sshll.u32 [#allocation8], 4
      %s1105 = int_to_ptr.vmem [resolvable:$true] %s1104
      %1107 = dma.vmem_to_hbm [thread:$0]  %s1105, 16, %s3, [#allocation9]
    $region25: #{_lambda_.4} parent=1 // pred_fallthru
      _
    // Predicated region
    $region26: #{_lambda_.4} parent=1 // pred_check
      _
    $region27: #{_lambda_.4} parent=1 // pred_check_branch
      %1109 = sbr.rel (0) target = $region29
    $region28: #{_lambda_.4} parent=1 // pred_region
      %s1111 = ssub.s32 16, 16
      %1112 = vsyncadd [#allocation9], %s1111
      %s1114 = sshll.u32 [#allocation10], 4
      %s1115 = int_to_ptr.vmem [resolvable:$true] %s1114
      %1117 = dma.vmem_to_hbm [thread:$0]  %s1115, 16, %s4, [#allocation9]
    $region29: #{_lambda_.4} parent=1 // pred_fallthru
      _
    // Predicated region
    $region30: #{_lambda_.4} parent=1 // pred_check
      _
    $region31: #{_lambda_.4} parent=1 // pred_check_branch
      %1119 = sbr.rel (0) target = $region33
    $region32: #{_lambda_.4} parent=1 // pred_region
      %1120 = dma.done [#allocation4], 8192
    $region33: #{_lambda_.4} parent=1 // pred_fallthru
      _
    // Predicated region
    $region34: #{_lambda_.4} parent=1 // pred_check
      _
    $region35: #{_lambda_.4} parent=1 // pred_check_branch
      %1122 = sbr.rel (0) target = $region37
    $region36: #{_lambda_.4} parent=1 // pred_region
      %1123 = dma.done [#allocation9], 16
    $region37: #{_lambda_.4} parent=1 // pred_fallthru
      _
    // Predicated region
    $region38: #{_lambda_.4} parent=1 // pred_check
      _
    $region39: #{_lambda_.4} parent=1 // pred_check_branch
      %1125 = sbr.rel (0) target = $region41
    $region40: #{_lambda_.4} parent=1 // pred_region
      %1126 = dma.done [#allocation9], 16
    $region41: #{_lambda_.4} parent=1 // pred_fallthru
      _
    %1127 = vsyncpa [#allocation3], 1
    %1128 = vsyncpa [#allocation6], 1
    %1129 = vsyncpa [#allocation4], 1
    %1130 = vsyncpa [#allocation9], 1

// kernel: _lambda_.6
$region0: #{_lambda_.6}
  #allocation0 [shape = 'u32[]', space=smem, size = 0x4, offset = 0x4, fixed_abs, tag = 'smem constant byte address 0x4 - core index']
  #allocation1 [shape = 'u32[144,128]{1,0:T(1,128)}', space=vmem, size = 0x12000, scoped, tag = 'internal scratch']
  %s0 = inlined_call_operand.hbm [shape: f32[128,4], index: 0, kind: input, shape index: {}]
  %s1 = inlined_call_operand.hbm [shape: f32[4,16], index: 1, kind: input, shape index: {}]
  %s2 = inlined_call_operand.hbm [shape: f32[1,4], index: 2, kind: input, shape index: {}]
  %s3 = inlined_call_operand.hbm [shape: f32[1,4], index: 3, kind: input, shape index: {}]
  %s4 = inlined_call_operand.hbm [shape: f32[128,16], index: 4, kind: output, shape index: {0}]
  %s5 = inlined_call_operand.hbm [shape: f32[1,1,16], index: 5, kind: output, shape index: {1}]
  %s6 = inlined_call_operand.hbm [shape: f32[1,1,16], index: 6, kind: output, shape index: {2}]
  %7 = xla_tuple %s4, %s5, %s6
  %s8 = sld [smem:[#allocation0]]
  $region58: #{_lambda_.6} parent=0
    _
  %s10 = ssub.s32 1, %s8
  %s11 = scalar_select 0, %s10, %s8
  $region1: #{_lambda_.6} parent=0
    #allocation2 [shape = 'u8[65536]{0}', space=vmem, size = 0x10000, scoped, tag = 'input window, operand 0, single buffered']
    #allocation3 [shape = 's32[1]{0}', space=sflag, size = 0x4, scoped, tag = 'scoped memory for _lambda_.6']
    #allocation4 [shape = 's32[1]{0}', space=sflag, size = 0x4, scoped, tag = 'scoped memory for _lambda_.6']
    #allocation5 [shape = 'u8[2048]{0}', space=vmem, size = 0x800, scoped, tag = 'input window, operand 1, single buffered']
    #allocation6 [shape = 's32[1]{0}', space=sflag, size = 0x4, scoped, tag = 'scoped memory for _lambda_.6']
    #allocation7 [shape = 'u8[512]{0}', space=vmem, size = 0x400, scoped, tag = 'input window, operand 2, single buffered']
    #allocation8 [shape = 'u8[512]{0}', space=vmem, size = 0x400, scoped, tag = 'input window, operand 3, single buffered']
    #allocation9 [shape = 's32[1]{0}', space=sflag, size = 0x4, scoped, tag = 'scoped memory for _lambda_.6']
    #allocation10 [shape = 'u8[65536]{0}', space=vmem, size = 0x10000, scoped, tag = 'output window, operand 0, single buffered']
    #allocation11 [shape = 'u8[512]{0}', space=vmem, size = 0x400, scoped, tag = 'output window, operand 1, single buffered']
    #allocation12 [shape = 's32[1]{0}', space=sflag, size = 0x4, scoped, tag = 'scoped memory for _lambda_.6']
    #allocation13 [shape = 'u8[512]{0}', space=vmem, size = 0x400, scoped, tag = 'output window, operand 2, single buffered']
    %12 = vsyncpa [#allocation3], 0
    %13 = vsyncpa [#allocation6], 0
    %14 = vsyncpa [#allocation9], 0
    %15 = vsyncpa [#allocation4], 0
    %16 = vsyncpa [#allocation12], 0
    // Predicated region
    $region2: #{_lambda_.6} parent=1 // pred_check
      _
    $region3: #{_lambda_.6} parent=1 // pred_check_branch
      %18 = sbr.rel (0) target = $region5
    $region4: #{_lambda_.6} parent=1 // pred_region
      %s20 = ssub.s32 2048, 2048
      %21 = vsyncadd [#allocation3], %s20
      %s22 = sshll.u32 [#allocation2], 4
      %s23 = int_to_ptr.vmem [resolvable:$true] %s22
      %28 = dma.hbm_to_vmem [thread:$0]  %s0, 2048, %s23, [#allocation3], 128, 128, 8
    $region5: #{_lambda_.6} parent=1 // pred_fallthru
      _
    // Predicated region
    $region6: #{_lambda_.6} parent=1 // pred_check
      _
    $region7: #{_lambda_.6} parent=1 // pred_check_branch
      %30 = sbr.rel (0) target = $region9
    $region8: #{_lambda_.6} parent=1 // pred_region
      %s32 = ssub.s32 64, 64
      %33 = vsyncadd [#allocation6], %s32
      %s35 = sshll.u32 [#allocation5], 4
      %s36 = int_to_ptr.vmem [resolvable:$true] %s35
      %38 = dma.hbm_to_vmem [thread:$0]  %s1, 64, %s36, [#allocation6]
    $region9: #{_lambda_.6} parent=1 // pred_fallthru
      _
    // Predicated region
    $region10: #{_lambda_.6} parent=1 // pred_check
      _
    $region11: #{_lambda_.6} parent=1 // pred_check_branch
      %40 = sbr.rel (0) target = $region13
    $region12: #{_lambda_.6} parent=1 // pred_region
      %s42 = ssub.s32 16, 16
      %43 = vsyncadd [#allocation6], %s42
      %s45 = sshll.u32 [#allocation7], 4
      %s46 = int_to_ptr.vmem [resolvable:$true] %s45
      %48 = dma.hbm_to_vmem [thread:$0]  %s2, 16, %s46, [#allocation6]
    $region13: #{_lambda_.6} parent=1 // pred_fallthru
      _
    // Predicated region
    $region14: #{_lambda_.6} parent=1 // pred_check
      _
    $region15: #{_lambda_.6} parent=1 // pred_check_branch
      %50 = sbr.rel (0) target = $region17
    $region16: #{_lambda_.6} parent=1 // pred_region
      %s52 = ssub.s32 16, 16
      %53 = vsyncadd [#allocation9], %s52
      %s55 = sshll.u32 [#allocation8], 4
      %s56 = int_to_ptr.vmem [resolvable:$true] %s55
      %58 = dma.hbm_to_vmem [thread:$0]  %s3, 16, %s56, [#allocation9]
    $region17: #{_lambda_.6} parent=1 // pred_fallthru
      _
    // Predicated region
    $region18: #{_lambda_.6} parent=1 // pred_check
      _
    $region19: #{_lambda_.6} parent=1 // pred_check_branch
      %60 = sbr.rel (0) target = $region21
    $region20: #{_lambda_.6} parent=1 // pred_region
      %61 = dma.done [#allocation3], 2048
    $region21: #{_lambda_.6} parent=1 // pred_fallthru
      _
    // Predicated region
    $region22: #{_lambda_.6} parent=1 // pred_check
      _
    $region23: #{_lambda_.6} parent=1 // pred_check_branch
      %63 = sbr.rel (0) target = $region25
    $region24: #{_lambda_.6} parent=1 // pred_region
      %64 = dma.done [#allocation6], 64
    $region25: #{_lambda_.6} parent=1 // pred_fallthru
      _
    // Predicated region
    $region26: #{_lambda_.6} parent=1 // pred_check
      _
    $region27: #{_lambda_.6} parent=1 // pred_check_branch
      %66 = sbr.rel (0) target = $region29
    $region28: #{_lambda_.6} parent=1 // pred_region
      %67 = dma.done [#allocation6], 16
    $region29: #{_lambda_.6} parent=1 // pred_fallthru
      _
    // Predicated region
    $region30: #{_lambda_.6} parent=1 // pred_check
      _
    $region31: #{_lambda_.6} parent=1 // pred_check_branch
      %69 = sbr.rel (0) target = $region33
    $region32: #{_lambda_.6} parent=1 // pred_region
      %70 = dma.done [#allocation9], 16
    $region33: #{_lambda_.6} parent=1 // pred_fallthru
      _
    %v71 = vld [vmem:[#allocation2] sm:$0xff]
    %v72 = vld [vmem:[#allocation2 + $0x8] sm:$0xff]
    %v73 = vld [vmem:[#allocation2 + $0x10] sm:$0xff]
    %v74 = vld [vmem:[#allocation2 + $0x18] sm:$0xff]
    %v75 = vld [vmem:[#allocation2 + $0x20] sm:$0xff]
    %v76 = vld [vmem:[#allocation2 + $0x28] sm:$0xff]
    %v77 = vld [vmem:[#allocation2 + $0x30] sm:$0xff]
    %v78 = vld [vmem:[#allocation2 + $0x38] sm:$0xff]
    %v79 = vld [vmem:[#allocation2 + $0x40] sm:$0xff]
    %v80 = vld [vmem:[#allocation2 + $0x48] sm:$0xff]
    %v81 = vld [vmem:[#allocation2 + $0x50] sm:$0xff]
    %v82 = vld [vmem:[#allocation2 + $0x58] sm:$0xff]
    %v83 = vld [vmem:[#allocation2 + $0x60] sm:$0xff]
    %v84 = vld [vmem:[#allocation2 + $0x68] sm:$0xff]
    %v85 = vld [vmem:[#allocation2 + $0x70] sm:$0xff]
    %v86 = vld [vmem:[#allocation2 + $0x78] sm:$0xff]
    %v87 = vld [vmem:[#allocation7] sm:$0x1]
    %v89 = vlaneseq
    %v90 = vshrl.u32 %v89, 7
    %v91 = vsub.s32 0, %v90
    %v92 = vrot.slane %v87, %v91
    %v94 = vmul.f32 %v71, %v92
    %v95 = vmul.f32 %v72, %v92
    %v96 = vmul.f32 %v73, %v92
    %v97 = vmul.f32 %v74, %v92
    %v98 = vmul.f32 %v75, %v92
    %v99 = vmul.f32 %v76, %v92
    %v100 = vmul.f32 %v77, %v92
    %v101 = vmul.f32 %v78, %v92
    %v102 = vmul.f32 %v79, %v92
    %v103 = vmul.f32 %v80, %v92
    %v104 = vmul.f32 %v81, %v92
    %v105 = vmul.f32 %v82, %v92
    %v106 = vmul.f32 %v83, %v92
    %v107 = vmul.f32 %v84, %v92
    %v108 = vmul.f32 %v85, %v92
    %v109 = vmul.f32 %v86, %v92
    %v110 = vld [vmem:[#allocation8] sm:$0x1]
    %v112 = vlaneseq
    %v113 = vshrl.u32 %v112, 7
    %v114 = vsub.s32 0, %v113
    %v115 = vrot.slane %v110, %v114
    %v117 = vadd.f32 %v94, %v115
    %v118 = vadd.f32 %v95, %v115
    %v119 = vadd.f32 %v96, %v115
    %v120 = vadd.f32 %v97, %v115
    %v121 = vadd.f32 %v98, %v115
    %v122 = vadd.f32 %v99, %v115
    %v123 = vadd.f32 %v100, %v115
    %v124 = vadd.f32 %v101, %v115
    %v125 = vadd.f32 %v102, %v115
    %v126 = vadd.f32 %v103, %v115
    %v127 = vadd.f32 %v104, %v115
    %v128 = vadd.f32 %v105, %v115
    %v129 = vadd.f32 %v106, %v115
    %v130 = vadd.f32 %v107, %v115
    %v131 = vadd.f32 %v108, %v115
    %v132 = vadd.f32 %v109, %v115
    %v133 = vmax.f32 %v117, 0.0
    %v134 = vmax.f32 %v118, 0.0
    %v135 = vmax.f32 %v119, 0.0
    %v136 = vmax.f32 %v120, 0.0
    %v137 = vmax.f32 %v121, 0.0
    %v138 = vmax.f32 %v122, 0.0
    %v139 = vmax.f32 %v123, 0.0
    %v140 = vmax.f32 %v124, 0.0
    %v141 = vmax.f32 %v125, 0.0
    %v142 = vmax.f32 %v126, 0.0
    %v143 = vmax.f32 %v127, 0.0
    %v144 = vmax.f32 %v128, 0.0
    %v145 = vmax.f32 %v129, 0.0
    %v146 = vmax.f32 %v130, 0.0
    %v147 = vmax.f32 %v131, 0.0
    %v148 = vmax.f32 %v132, 0.0
    %v149 = vld [vmem:[#allocation5] sm:$0xf]
    %vm150 = vcmask 31744
    %v152 = vsel %vm150, %v133, 0
    %v155 = vsel %vm150, %v134, 0
    %v158 = vsel %vm150, %v135, 0
    %v161 = vsel %vm150, %v136, 0
    %v164 = vsel %vm150, %v137, 0
    %v167 = vsel %vm150, %v138, 0
    %v170 = vsel %vm150, %v139, 0
    %v173 = vsel %vm150, %v140, 0
    %v176 = vsel %vm150, %v141, 0
    %v179 = vsel %vm150, %v142, 0
    %v182 = vsel %vm150, %v143, 0
    %v185 = vsel %vm150, %v144, 0
    %v188 = vsel %vm150, %v145, 0
    %v191 = vsel %vm150, %v146, 0
    %v194 = vsel %vm150, %v147, 0
    %v197 = vsel %vm150, %v148, 0
    %vm199 = vcmask 1043456
    %v201 = vsel %vm199, %v149, 0
    %203 = vmatprep.subr.mxu0 0.0
    %204 = vmatpush1.msra.mxu0 %v201
    %205 = vmatprep.subr.mxu0 0.0
    %206 = vmatpush1.msra.mxu0 0.0
    %207 = vmatprep.subr.mxu0 0.0
    %208 = vmatpush1.msra.mxu0 0.0
    %209 = vmatprep.subr.mxu0 0.0
    %210 = vmatpush1.msra.mxu0 0.0
    %211 = vmatprep.subr.mxu0 0.0
    %212 = vmatpush1.msra.mxu0 0.0
    %213 = vmatprep.subr.mxu0 0.0
    %214 = vmatpush1.msra.mxu0 0.0
    %215 = vmatprep.subr.mxu0 0.0
    %216 = vmatpush1.msra.mxu0 0.0
    %217 = vmatprep.subr.mxu0 0.0
    %218 = vmatpush1.msra.mxu0 0.0
    %219 = vmatprep.subr.mxu0 0.0
    %220 = vmatpush1.msra.mxu0 0.0
    %221 = vmatprep.subr.mxu0 0.0
    %222 = vmatpush1.msra.mxu0 0.0
    %223 = vmatprep.subr.mxu0 0.0
    %224 = vmatpush1.msra.mxu0 0.0
    %225 = vmatprep.subr.mxu0 0.0
    %226 = vmatpush1.msra.mxu0 0.0
    %227 = vmatprep.subr.mxu0 0.0
    %228 = vmatpush1.msra.mxu0 0.0
    %229 = vmatprep.subr.mxu0 0.0
    %230 = vmatpush1.msra.mxu0 0.0
    %231 = vmatprep.subr.mxu0 0.0
    %232 = vmatpush1.msra.mxu0 0.0
    %233 = vmatprep.subr.mxu0 0.0
    %234 = vmatpush1.msra.mxu0 0.0
    %235 = vmatprep.subr.mxu0 0.0
    %236 = vmatpush1.msra.mxu0 0.0
    %237 = vmatprep.subr.mxu0 0.0
    %238 = vmatpush1.msra.mxu0 0.0
    %239 = vmatprep.subr.mxu0 0.0
    %240 = vmatpush1.msra.mxu0 0.0
    %241 = vmatprep.subr.mxu0 0.0
    %242 = vmatpush1.msra.mxu0 0.0
    %243 = vmatprep.subr.mxu0 0.0
    %244 = vmatpush1.msra.mxu0 0.0
    %245 = vmatprep.subr.mxu0 0.0
    %246 = vmatpush1.msra.mxu0 0.0
    %247 = vmatprep.subr.mxu0 0.0
    %248 = vmatpush1.msra.mxu0 0.0
    %249 = vmatprep.subr.mxu0 0.0
    %250 = vmatpush1.msra.mxu0 0.0
    %251 = vmatprep.subr.mxu0 0.0
    %252 = vmatpush1.msra.mxu0 0.0
    %253 = vmatprep.subr.mxu0 0.0
    %254 = vmatpush1.msra.mxu0 0.0
    %255 = vmatprep.subr.mxu0 0.0
    %256 = vmatpush1.msra.mxu0 0.0
    %257 = vmatprep.subr.mxu0 0.0
    %258 = vmatpush1.msra.mxu0 0.0
    %259 = vmatprep.subr.mxu0 0.0
    %260 = vmatpush1.msra.mxu0 0.0
    %261 = vmatprep.subr.mxu0 0.0
    %262 = vmatpush1.msra.mxu0 0.0
    %263 = vmatprep.subr.mxu0 0.0
    %264 = vmatpush1.msra.mxu0 0.0
    %265 = vmatprep.subr.mxu0 0.0
    %266 = vmatpush1.msra.mxu0 0.0
    %267 = vmatprep.mubr.f32.mxu0 0.0
    %268 = vmatmul.mubr.f32.gmra.mrb[0].mxu0 %v152
    %v269 = vpop.f32.mrb[0].mxu0
    %v270 = vadd.f32 0.0, %v269
    %v271 = vpop.f32.mrb[0].mxu0
    %272 = vmatprep.mubr.f32.mxu0 0.0
    %273 = vmatmul.mubr.f32.gmra.mrb[0].mxu0 %v155
    %v274 = vpop.f32.mrb[0].mxu0
    %v275 = vadd.f32 0.0, %v274
    %v276 = vpop.f32.mrb[0].mxu0
    %277 = vmatprep.mubr.f32.mxu0 0.0
    %278 = vmatmul.mubr.f32.gmra.mrb[0].mxu0 %v158
    %v279 = vpop.f32.mrb[0].mxu0
    %v280 = vadd.f32 0.0, %v279
    %v281 = vpop.f32.mrb[0].mxu0
    %282 = vmatprep.mubr.f32.mxu0 0.0
    %283 = vmatmul.mubr.f32.gmra.mrb[0].mxu0 %v161
    %v284 = vpop.f32.mrb[0].mxu0
    %v285 = vadd.f32 0.0, %v284
    %v286 = vpop.f32.mrb[0].mxu0
    %287 = vmatprep.mubr.f32.mxu0 0.0
    %288 = vmatmul.mubr.f32.gmra.mrb[0].mxu0 %v164
    %v289 = vpop.f32.mrb[0].mxu0
    %v290 = vadd.f32 0.0, %v289
    %v291 = vpop.f32.mrb[0].mxu0
    %292 = vmatprep.mubr.f32.mxu0 0.0
    %293 = vmatmul.mubr.f32.gmra.mrb[0].mxu0 %v167
    %v294 = vpop.f32.mrb[0].mxu0
    %v295 = vadd.f32 0.0, %v294
    %v296 = vpop.f32.mrb[0].mxu0
    %297 = vmatprep.mubr.f32.mxu0 0.0
    %298 = vmatmul.mubr.f32.gmra.mrb[0].mxu0 %v170
    %v299 = vpop.f32.mrb[0].mxu0
    %v300 = vadd.f32 0.0, %v299
    %v301 = vpop.f32.mrb[0].mxu0
    %302 = vmatprep.mubr.f32.mxu0 0.0
    %303 = vmatmul.mubr.f32.gmra.mrb[0].mxu0 %v173
    %v304 = vpop.f32.mrb[0].mxu0
    %v305 = vadd.f32 0.0, %v304
    %v306 = vpop.f32.mrb[0].mxu0
    %307 = vmatprep.mubr.f32.mxu0 0.0
    %308 = vmatmul.mubr.f32.gmra.mrb[0].mxu0 %v176
    %v309 = vpop.f32.mrb[0].mxu0
    %v310 = vadd.f32 0.0, %v309
    %v311 = vpop.f32.mrb[0].mxu0
    %312 = vmatprep.mubr.f32.mxu0 0.0
    %313 = vmatmul.mubr.f32.gmra.mrb[0].mxu0 %v179
    %v314 = vpop.f32.mrb[0].mxu0
    %v315 = vadd.f32 0.0, %v314
    %v316 = vpop.f32.mrb[0].mxu0
    %317 = vmatprep.mubr.f32.mxu0 0.0
    %318 = vmatmul.mubr.f32.gmra.mrb[0].mxu0 %v182
    %v319 = vpop.f32.mrb[0].mxu0
    %v320 = vadd.f32 0.0, %v319
    %v321 = vpop.f32.mrb[0].mxu0
    %322 = vmatprep.mubr.f32.mxu0 0.0
    %323 = vmatmul.mubr.f32.gmra.mrb[0].mxu0 %v185
    %v324 = vpop.f32.mrb[0].mxu0
    %v325 = vadd.f32 0.0, %v324
    %v326 = vpop.f32.mrb[0].mxu0
    %327 = vmatprep.mubr.f32.mxu0 0.0
    %328 = vmatmul.mubr.f32.gmra.mrb[0].mxu0 %v188
    %v329 = vpop.f32.mrb[0].mxu0
    %v330 = vadd.f32 0.0, %v329
    %v331 = vpop.f32.mrb[0].mxu0
    %332 = vmatprep.mubr.f32.mxu0 0.0
    %333 = vmatmul.mubr.f32.gmra.mrb[0].mxu0 %v191
    %v334 = vpop.f32.mrb[0].mxu0
    %v335 = vadd.f32 0.0, %v334
    %v336 = vpop.f32.mrb[0].mxu0
    %337 = vmatprep.mubr.f32.mxu0 0.0
    %338 = vmatmul.mubr.f32.gmra.mrb[0].mxu0 %v194
    %v339 = vpop.f32.mrb[0].mxu0
    %v340 = vadd.f32 0.0, %v339
    %v341 = vpop.f32.mrb[0].mxu0
    %342 = vmatprep.mubr.f32.mxu0 0.0
    %343 = vmatmul.mubr.f32.gmra.mrb[0].mxu0 %v197
    %v344 = vpop.f32.mrb[0].mxu0
    %v345 = vadd.f32 0.0, %v344
    %v346 = vpop.f32.mrb[0].mxu0
    %347 = vdwg.mxu0
    %vm348 = vcmask 130048
    %349 = vst.msk [vmem:[#allocation10] sm:$0xff] %vm348, %v270
    %350 = vst.msk [vmem:[#allocation10 + $0x8] sm:$0xff] %vm348, %v275
    %351 = vst.msk [vmem:[#allocation10 + $0x10] sm:$0xff] %vm348, %v280
    %352 = vst.msk [vmem:[#allocation10 + $0x18] sm:$0xff] %vm348, %v285
    %353 = vst.msk [vmem:[#allocation10 + $0x20] sm:$0xff] %vm348, %v290
    %354 = vst.msk [vmem:[#allocation10 + $0x28] sm:$0xff] %vm348, %v295
    %355 = vst.msk [vmem:[#allocation10 + $0x30] sm:$0xff] %vm348, %v300
    %356 = vst.msk [vmem:[#allocation10 + $0x38] sm:$0xff] %vm348, %v305
    %357 = vst.msk [vmem:[#allocation10 + $0x40] sm:$0xff] %vm348, %v310
    %358 = vst.msk [vmem:[#allocation10 + $0x48] sm:$0xff] %vm348, %v315
    %359 = vst.msk [vmem:[#allocation10 + $0x50] sm:$0xff] %vm348, %v320
    %360 = vst.msk [vmem:[#allocation10 + $0x58] sm:$0xff] %vm348, %v325
    %361 = vst.msk [vmem:[#allocation10 + $0x60] sm:$0xff] %vm348, %v330
    %362 = vst.msk [vmem:[#allocation10 + $0x68] sm:$0xff] %vm348, %v335
    %363 = vst.msk [vmem:[#allocation10 + $0x70] sm:$0xff] %vm348, %v340
    %364 = vst.msk [vmem:[#allocation10 + $0x78] sm:$0xff] %vm348, %v345
    %v365 = vsel %vm348, %v270, 0.0
    %v366 = vsel %vm348, %v275, 0.0
    %v367 = vadd.f32 %v365, %v366
    %v368 = vsel %vm348, %v280, 0.0
    %v369 = vadd.f32 %v367, %v368
    %v370 = vsel %vm348, %v285, 0.0
    %v371 = vadd.f32 %v369, %v370
    %v372 = vsel %vm348, %v290, 0.0
    %v373 = vadd.f32 %v371, %v372
    %v374 = vsel %vm348, %v295, 0.0
    %v375 = vadd.f32 %v373, %v374
    %v376 = vsel %vm348, %v300, 0.0
    %v377 = vadd.f32 %v375, %v376
    %v378 = vsel %vm348, %v305, 0.0
    %v379 = vadd.f32 %v377, %v378
    %v380 = vsel %vm348, %v310, 0.0
    %v381 = vadd.f32 %v379, %v380
    %v382 = vsel %vm348, %v315, 0.0
    %v383 = vadd.f32 %v381, %v382
    %v384 = vsel %vm348, %v320, 0.0
    %v385 = vadd.f32 %v383, %v384
    %v386 = vsel %vm348, %v325, 0.0
    %v387 = vadd.f32 %v385, %v386
    %v388 = vsel %vm348, %v330, 0.0
    %v389 = vadd.f32 %v387, %v388
    %v390 = vsel %vm348, %v335, 0.0
    %v391 = vadd.f32 %v389, %v390
    %v392 = vsel %vm348, %v340, 0.0
    %v393 = vadd.f32 %v391, %v392
    %v394 = vsel %vm348, %v345, 0.0
    %v395 = vadd.f32 %v393, %v394
    %v396 = vrot.slane %v395, 4
    %v397 = vadd.f32 %v395, %v396
    %v398 = vrot.slane %v397, 2
    %v399 = vadd.f32 %v397, %v398
    %v400 = vrot.slane %v399, 1
    %v401 = vadd.f32 %v399, %v400
    %vm402 = vcmask 122880
    %403 = vst.msk [vmem:[#allocation11] sm:$0x1] %vm402, %v401
    %v404 = vmul.f32 %v270, %v270
    %v405 = vmul.f32 %v275, %v275
    %v406 = vmul.f32 %v280, %v280
    %v407 = vmul.f32 %v285, %v285
    %v408 = vmul.f32 %v290, %v290
    %v409 = vmul.f32 %v295, %v295
    %v410 = vmul.f32 %v300, %v300
    %v411 = vmul.f32 %v305, %v305
    %v412 = vmul.f32 %v310, %v310
    %v413 = vmul.f32 %v315, %v315
    %v414 = vmul.f32 %v320, %v320
    %v415 = vmul.f32 %v325, %v325
    %v416 = vmul.f32 %v330, %v330
    %v417 = vmul.f32 %v335, %v335
    %v418 = vmul.f32 %v340, %v340
    %v419 = vmul.f32 %v345, %v345
    %v420 = vsel %vm348, %v404, 0.0
    %v421 = vsel %vm348, %v405, 0.0
    %v422 = vadd.f32 %v420, %v421
    %v423 = vsel %vm348, %v406, 0.0
    %v424 = vadd.f32 %v422, %v423
    %v425 = vsel %vm348, %v407, 0.0
    %v426 = vadd.f32 %v424, %v425
    %v427 = vsel %vm348, %v408, 0.0
    %v428 = vadd.f32 %v426, %v427
    %v429 = vsel %vm348, %v409, 0.0
    %v430 = vadd.f32 %v428, %v429
    %v431 = vsel %vm348, %v410, 0.0
    %v432 = vadd.f32 %v430, %v431
    %v433 = vsel %vm348, %v411, 0.0
    %v434 = vadd.f32 %v432, %v433
    %v435 = vsel %vm348, %v412, 0.0
    %v436 = vadd.f32 %v434, %v435
    %v437 = vsel %vm348, %v413, 0.0
    %v438 = vadd.f32 %v436, %v437
    %v439 = vsel %vm348, %v414, 0.0
    %v440 = vadd.f32 %v438, %v439
    %v441 = vsel %vm348, %v415, 0.0
    %v442 = vadd.f32 %v440, %v441
    %v443 = vsel %vm348, %v416, 0.0
    %v444 = vadd.f32 %v442, %v443
    %v445 = vsel %vm348, %v417, 0.0
    %v446 = vadd.f32 %v444, %v445
    %v447 = vsel %vm348, %v418, 0.0
    %v448 = vadd.f32 %v446, %v447
    %v449 = vsel %vm348, %v419, 0.0
    %v450 = vadd.f32 %v448, %v449
    %v451 = vrot.slane %v450, 4
    %v452 = vadd.f32 %v450, %v451
    %v453 = vrot.slane %v452, 2
    %v454 = vadd.f32 %v452, %v453
    %v455 = vrot.slane %v454, 1
    %v456 = vadd.f32 %v454, %v455
    %457 = vst.msk [vmem:[#allocation13] sm:$0x1] %vm402, %v456
    // Predicated region
    $region34: #{_lambda_.6} parent=1 // pred_check
      _
    $region35: #{_lambda_.6} parent=1 // pred_check_branch
      %459 = sbr.rel (0) target = $region37
    $region36: #{_lambda_.6} parent=1 // pred_region
      %s461 = ssub.s32 2048, 2048
      %462 = vsyncadd [#allocation4], %s461
      %s463 = sshll.u32 [#allocation10], 4
      %s464 = int_to_ptr.vmem [resolvable:$true] %s463
      %469 = dma.vmem_to_hbm [thread:$0]  %s464, 2048, %s4, [#allocation4], 128, 128, 8
    $region37: #{_lambda_.6} parent=1 // pred_fallthru
      _
    // Predicated region
    $region38: #{_lambda_.6} parent=1 // pred_check
      _
    $region39: #{_lambda_.6} parent=1 // pred_check_branch
      %471 = sbr.rel (0) target = $region41
    $region40: #{_lambda_.6} parent=1 // pred_region
      %s473 = ssub.s32 16, 16
      %474 = vsyncadd [#allocation12], %s473
      %s476 = sshll.u32 [#allocation11], 4
      %s477 = int_to_ptr.vmem [resolvable:$true] %s476
      %479 = dma.vmem_to_hbm [thread:$0]  %s477, 16, %s5, [#allocation12]
    $region41: #{_lambda_.6} parent=1 // pred_fallthru
      _
    // Predicated region
    $region42: #{_lambda_.6} parent=1 // pred_check
      _
    $region43: #{_lambda_.6} parent=1 // pred_check_branch
      %481 = sbr.rel (0) target = $region45
    $region44: #{_lambda_.6} parent=1 // pred_region
      %s483 = ssub.s32 16, 16
      %484 = vsyncadd [#allocation12], %s483
      %s486 = sshll.u32 [#allocation13], 4
      %s487 = int_to_ptr.vmem [resolvable:$true] %s486
      %489 = dma.vmem_to_hbm [thread:$0]  %s487, 16, %s6, [#allocation12]
    $region45: #{_lambda_.6} parent=1 // pred_fallthru
      _
    // Predicated region
    $region46: #{_lambda_.6} parent=1 // pred_check
      _
    $region47: #{_lambda_.6} parent=1 // pred_check_branch
      %491 = sbr.rel (0) target = $region49
    $region48: #{_lambda_.6} parent=1 // pred_region
      %492 = dma.done [#allocation4], 2048
    $region49: #{_lambda_.6} parent=1 // pred_fallthru
      _
    // Predicated region
    $region50: #{_lambda_.6} parent=1 // pred_check
      _
    $region51: #{_lambda_.6} parent=1 // pred_check_branch
      %494 = sbr.rel (0) target = $region53
    $region52: #{_lambda_.6} parent=1 // pred_region
      %495 = dma.done [#allocation12], 16
    $region53: #{_lambda_.6} parent=1 // pred_fallthru
      _
    // Predicated region
    $region54: #{_lambda_.6} parent=1 // pred_check
      _
    $region55: #{_lambda_.6} parent=1 // pred_check_branch
      %497 = sbr.rel (0) target = $region57
    $region56: #{_lambda_.6} parent=1 // pred_region
      %498 = dma.done [#allocation12], 16
    $region57: #{_lambda_.6} parent=1 // pred_fallthru
      _
    %499 = vsyncpa [#allocation3], 1
    %500 = vsyncpa [#allocation6], 1
    %501 = vsyncpa [#allocation9], 1
    %502 = vsyncpa [#allocation4], 1
    %503 = vsyncpa [#allocation12], 1

// kernel: _lambda_.7
$region0: #{_lambda_.7}
  #allocation0 [shape = 'u32[]', space=smem, size = 0x4, offset = 0x4, fixed_abs, tag = 'smem constant byte address 0x4 - core index']
  #allocation1 [shape = 'u32[144,128]{1,0:T(1,128)}', space=vmem, size = 0x12000, scoped, tag = 'internal scratch']
  %s0 = inlined_call_operand.hbm [shape: f32[128,16], index: 0, kind: input, shape index: {}]
  %s1 = inlined_call_operand.hbm [shape: f32[1,16], index: 1, kind: input, shape index: {}]
  %s2 = inlined_call_operand.hbm [shape: f32[1,16], index: 2, kind: input, shape index: {}]
  %s3 = inlined_call_operand.hbm [shape: f32[128,4], index: 3, kind: input, shape index: {}]
  %s4 = inlined_call_operand.hbm [shape: f32[4,16], index: 4, kind: input, shape index: {}]
  %s5 = inlined_call_operand.hbm [shape: f32[128,16], index: 5, kind: output, shape index: {}]
  %s6 = sld [smem:[#allocation0]]
  $region50: #{_lambda_.7} parent=0
    _
  %s8 = ssub.s32 1, %s6
  %s9 = scalar_select 0, %s8, %s6
  $region1: #{_lambda_.7} parent=0
    #allocation2 [shape = 'u8[65536]{0}', space=vmem, size = 0x10000, scoped, tag = 'input window, operand 0, single buffered']
    #allocation3 [shape = 's32[1]{0}', space=sflag, size = 0x4, scoped, tag = 'scoped memory for _lambda_.7']
    #allocation4 [shape = 's32[1]{0}', space=sflag, size = 0x4, scoped, tag = 'scoped memory for _lambda_.7']
    #allocation5 [shape = 'u8[512]{0}', space=vmem, size = 0x400, scoped, tag = 'input window, operand 1, single buffered']
    #allocation6 [shape = 's32[1]{0}', space=sflag, size = 0x4, scoped, tag = 'scoped memory for _lambda_.7']
    #allocation7 [shape = 'u8[512]{0}', space=vmem, size = 0x400, scoped, tag = 'input window, operand 2, single buffered']
    #allocation8 [shape = 'u8[65536]{0}', space=vmem, size = 0x10000, scoped, tag = 'input window, operand 3, single buffered']
    #allocation9 [shape = 's32[1]{0}', space=sflag, size = 0x4, scoped, tag = 'scoped memory for _lambda_.7']
    #allocation10 [shape = 'u8[2048]{0}', space=vmem, size = 0x800, scoped, tag = 'input window, operand 4, single buffered']
    #allocation11 [shape = 'u8[65536]{0}', space=vmem, size = 0x10000, scoped, tag = 'output window, operand 0, single buffered']
    %10 = vsyncpa [#allocation3], 0
    %11 = vsyncpa [#allocation6], 0
    %12 = vsyncpa [#allocation9], 0
    %13 = vsyncpa [#allocation4], 0
    // Predicated region
    $region2: #{_lambda_.7} parent=1 // pred_check
      _
    $region3: #{_lambda_.7} parent=1 // pred_check_branch
      %15 = sbr.rel (0) target = $region5
    $region4: #{_lambda_.7} parent=1 // pred_region
      %s17 = ssub.s32 2048, 2048
      %18 = vsyncadd [#allocation3], %s17
      %s19 = sshll.u32 [#allocation2], 4
      %s20 = int_to_ptr.vmem [resolvable:$true] %s19
      %25 = dma.hbm_to_vmem [thread:$0]  %s0, 2048, %s20, [#allocation3], 128, 128, 8
    $region5: #{_lambda_.7} parent=1 // pred_fallthru
      _
    // Predicated region
    $region6: #{_lambda_.7} parent=1 // pred_check
      _
    $region7: #{_lambda_.7} parent=1 // pred_check_branch
      %27 = sbr.rel (0) target = $region9
    $region8: #{_lambda_.7} parent=1 // pred_region
      %s29 = ssub.s32 16, 16
      %30 = vsyncadd [#allocation6], %s29
      %s32 = sshll.u32 [#allocation5], 4
      %s33 = int_to_ptr.vmem [resolvable:$true] %s32
      %35 = dma.hbm_to_vmem [thread:$0]  %s1, 16, %s33, [#allocation6]
    $region9: #{_lambda_.7} parent=1 // pred_fallthru
      _
    // Predicated region
    $region10: #{_lambda_.7} parent=1 // pred_check
      _
    $region11: #{_lambda_.7} parent=1 // pred_check_branch
      %37 = sbr.rel (0) target = $region13
    $region12: #{_lambda_.7} parent=1 // pred_region
      %s39 = ssub.s32 16, 16
      %40 = vsyncadd [#allocation6], %s39
      %s42 = sshll.u32 [#allocation7], 4
      %s43 = int_to_ptr.vmem [resolvable:$true] %s42
      %45 = dma.hbm_to_vmem [thread:$0]  %s2, 16, %s43, [#allocation6]
    $region13: #{_lambda_.7} parent=1 // pred_fallthru
      _
    // Predicated region
    $region14: #{_lambda_.7} parent=1 // pred_check
      _
    $region15: #{_lambda_.7} parent=1 // pred_check_branch
      %47 = sbr.rel (0) target = $region17
    $region16: #{_lambda_.7} parent=1 // pred_region
      %s49 = ssub.s32 2048, 2048
      %50 = vsyncadd [#allocation9], %s49
      %s51 = sshll.u32 [#allocation8], 4
      %s52 = int_to_ptr.vmem [resolvable:$true] %s51
      %57 = dma.hbm_to_vmem [thread:$0]  %s3, 2048, %s52, [#allocation9], 128, 128, 8
    $region17: #{_lambda_.7} parent=1 // pred_fallthru
      _
    // Predicated region
    $region18: #{_lambda_.7} parent=1 // pred_check
      _
    $region19: #{_lambda_.7} parent=1 // pred_check_branch
      %59 = sbr.rel (0) target = $region21
    $region20: #{_lambda_.7} parent=1 // pred_region
      %s61 = ssub.s32 64, 64
      %62 = vsyncadd [#allocation9], %s61
      %s64 = sshll.u32 [#allocation10], 4
      %s65 = int_to_ptr.vmem [resolvable:$true] %s64
      %67 = dma.hbm_to_vmem [thread:$0]  %s4, 64, %s65, [#allocation9]
    $region21: #{_lambda_.7} parent=1 // pred_fallthru
      _
    // Predicated region
    $region22: #{_lambda_.7} parent=1 // pred_check
      _
    $region23: #{_lambda_.7} parent=1 // pred_check_branch
      %69 = sbr.rel (0) target = $region25
    $region24: #{_lambda_.7} parent=1 // pred_region
      %70 = dma.done [#allocation3], 2048
    $region25: #{_lambda_.7} parent=1 // pred_fallthru
      _
    // Predicated region
    $region26: #{_lambda_.7} parent=1 // pred_check
      _
    $region27: #{_lambda_.7} parent=1 // pred_check_branch
      %72 = sbr.rel (0) target = $region29
    $region28: #{_lambda_.7} parent=1 // pred_region
      %73 = dma.done [#allocation6], 16
    $region29: #{_lambda_.7} parent=1 // pred_fallthru
      _
    // Predicated region
    $region30: #{_lambda_.7} parent=1 // pred_check
      _
    $region31: #{_lambda_.7} parent=1 // pred_check_branch
      %75 = sbr.rel (0) target = $region33
    $region32: #{_lambda_.7} parent=1 // pred_region
      %76 = dma.done [#allocation6], 16
    $region33: #{_lambda_.7} parent=1 // pred_fallthru
      _
    // Predicated region
    $region34: #{_lambda_.7} parent=1 // pred_check
      _
    $region35: #{_lambda_.7} parent=1 // pred_check_branch
      %78 = sbr.rel (0) target = $region37
    $region36: #{_lambda_.7} parent=1 // pred_region
      %79 = dma.done [#allocation9], 2048
    $region37: #{_lambda_.7} parent=1 // pred_fallthru
      _
    // Predicated region
    $region38: #{_lambda_.7} parent=1 // pred_check
      _
    $region39: #{_lambda_.7} parent=1 // pred_check_branch
      %81 = sbr.rel (0) target = $region41
    $region40: #{_lambda_.7} parent=1 // pred_region
      %82 = dma.done [#allocation9], 64
    $region41: #{_lambda_.7} parent=1 // pred_fallthru
      _
    %v83 = vld [vmem:[#allocation2] sm:$0xff]
    %v84 = vld [vmem:[#allocation2 + $0x8] sm:$0xff]
    %v85 = vld [vmem:[#allocation2 + $0x10] sm:$0xff]
    %v86 = vld [vmem:[#allocation2 + $0x18] sm:$0xff]
    %v87 = vld [vmem:[#allocation2 + $0x20] sm:$0xff]
    %v88 = vld [vmem:[#allocation2 + $0x28] sm:$0xff]
    %v89 = vld [vmem:[#allocation2 + $0x30] sm:$0xff]
    %v90 = vld [vmem:[#allocation2 + $0x38] sm:$0xff]
    %v91 = vld [vmem:[#allocation2 + $0x40] sm:$0xff]
    %v92 = vld [vmem:[#allocation2 + $0x48] sm:$0xff]
    %v93 = vld [vmem:[#allocation2 + $0x50] sm:$0xff]
    %v94 = vld [vmem:[#allocation2 + $0x58] sm:$0xff]
    %v95 = vld [vmem:[#allocation2 + $0x60] sm:$0xff]
    %v96 = vld [vmem:[#allocation2 + $0x68] sm:$0xff]
    %v97 = vld [vmem:[#allocation2 + $0x70] sm:$0xff]
    %v98 = vld [vmem:[#allocation2 + $0x78] sm:$0xff]
    %v99 = vld [vmem:[#allocation5] sm:$0x1]
    %v101 = vlaneseq
    %v102 = vshrl.u32 %v101, 7
    %v103 = vsub.s32 0, %v102
    %v104 = vrot.slane %v99, %v103
    %v106 = vmul.f32 %v83, %v104
    %v107 = vmul.f32 %v84, %v104
    %v108 = vmul.f32 %v85, %v104
    %v109 = vmul.f32 %v86, %v104
    %v110 = vmul.f32 %v87, %v104
    %v111 = vmul.f32 %v88, %v104
    %v112 = vmul.f32 %v89, %v104
    %v113 = vmul.f32 %v90, %v104
    %v114 = vmul.f32 %v91, %v104
    %v115 = vmul.f32 %v92, %v104
    %v116 = vmul.f32 %v93, %v104
    %v117 = vmul.f32 %v94, %v104
    %v118 = vmul.f32 %v95, %v104
    %v119 = vmul.f32 %v96, %v104
    %v120 = vmul.f32 %v97, %v104
    %v121 = vmul.f32 %v98, %v104
    %v122 = vld [vmem:[#allocation7] sm:$0x1]
    %v124 = vlaneseq
    %v125 = vshrl.u32 %v124, 7
    %v126 = vsub.s32 0, %v125
    %v127 = vrot.slane %v122, %v126
    %v129 = vadd.f32 %v106, %v127
    %v130 = vadd.f32 %v107, %v127
    %v131 = vadd.f32 %v108, %v127
    %v132 = vadd.f32 %v109, %v127
    %v133 = vadd.f32 %v110, %v127
    %v134 = vadd.f32 %v111, %v127
    %v135 = vadd.f32 %v112, %v127
    %v136 = vadd.f32 %v113, %v127
    %v137 = vadd.f32 %v114, %v127
    %v138 = vadd.f32 %v115, %v127
    %v139 = vadd.f32 %v116, %v127
    %v140 = vadd.f32 %v117, %v127
    %v141 = vadd.f32 %v118, %v127
    %v142 = vadd.f32 %v119, %v127
    %v143 = vadd.f32 %v120, %v127
    %v144 = vadd.f32 %v121, %v127
    %v145 = vld [vmem:[#allocation8] sm:$0xff]
    %v146 = vld [vmem:[#allocation8 + $0x8] sm:$0xff]
    %v147 = vld [vmem:[#allocation8 + $0x10] sm:$0xff]
    %v148 = vld [vmem:[#allocation8 + $0x18] sm:$0xff]
    %v149 = vld [vmem:[#allocation8 + $0x20] sm:$0xff]
    %v150 = vld [vmem:[#allocation8 + $0x28] sm:$0xff]
    %v151 = vld [vmem:[#allocation8 + $0x30] sm:$0xff]
    %v152 = vld [vmem:[#allocation8 + $0x38] sm:$0xff]
    %v153 = vld [vmem:[#allocation8 + $0x40] sm:$0xff]
    %v154 = vld [vmem:[#allocation8 + $0x48] sm:$0xff]
    %v155 = vld [vmem:[#allocation8 + $0x50] sm:$0xff]
    %v156 = vld [vmem:[#allocation8 + $0x58] sm:$0xff]
    %v157 = vld [vmem:[#allocation8 + $0x60] sm:$0xff]
    %v158 = vld [vmem:[#allocation8 + $0x68] sm:$0xff]
    %v159 = vld [vmem:[#allocation8 + $0x70] sm:$0xff]
    %v160 = vld [vmem:[#allocation8 + $0x78] sm:$0xff]
    %v161 = vld [vmem:[#allocation10] sm:$0xf]
    %vm162 = vcmask 31744
    %v164 = vsel %vm162, %v145, 0
    %v167 = vsel %vm162, %v146, 0
    %v170 = vsel %vm162, %v147, 0
    %v173 = vsel %vm162, %v148, 0
    %v176 = vsel %vm162, %v149, 0
    %v179 = vsel %vm162, %v150, 0
    %v182 = vsel %vm162, %v151, 0
    %v185 = vsel %vm162, %v152, 0
    %v188 = vsel %vm162, %v153, 0
    %v191 = vsel %vm162, %v154, 0
    %v194 = vsel %vm162, %v155, 0
    %v197 = vsel %vm162, %v156, 0
    %v200 = vsel %vm162, %v157, 0
    %v203 = vsel %vm162, %v158, 0
    %v206 = vsel %vm162, %v159, 0
    %v209 = vsel %vm162, %v160, 0
    %vm211 = vcmask 1043456
    %v213 = vsel %vm211, %v161, 0
    %215 = vmatprep.subr.mxu0 0.0
    %216 = vmatpush1.msra.mxu0 %v213
    %217 = vmatprep.subr.mxu0 0.0
    %218 = vmatpush1.msra.mxu0 0.0
    %219 = vmatprep.subr.mxu0 0.0
    %220 = vmatpush1.msra.mxu0 0.0
    %221 = vmatprep.subr.mxu0 0.0
    %222 = vmatpush1.msra.mxu0 0.0
    %223 = vmatprep.subr.mxu0 0.0
    %224 = vmatpush1.msra.mxu0 0.0
    %225 = vmatprep.subr.mxu0 0.0
    %226 = vmatpush1.msra.mxu0 0.0
    %227 = vmatprep.subr.mxu0 0.0
    %228 = vmatpush1.msra.mxu0 0.0
    %229 = vmatprep.subr.mxu0 0.0
    %230 = vmatpush1.msra.mxu0 0.0
    %231 = vmatprep.subr.mxu0 0.0
    %232 = vmatpush1.msra.mxu0 0.0
    %233 = vmatprep.subr.mxu0 0.0
    %234 = vmatpush1.msra.mxu0 0.0
    %235 = vmatprep.subr.mxu0 0.0
    %236 = vmatpush1.msra.mxu0 0.0
    %237 = vmatprep.subr.mxu0 0.0
    %238 = vmatpush1.msra.mxu0 0.0
    %239 = vmatprep.subr.mxu0 0.0
    %240 = vmatpush1.msra.mxu0 0.0
    %241 = vmatprep.subr.mxu0 0.0
    %242 = vmatpush1.msra.mxu0 0.0
    %243 = vmatprep.subr.mxu0 0.0
    %244 = vmatpush1.msra.mxu0 0.0
    %245 = vmatprep.subr.mxu0 0.0
    %246 = vmatpush1.msra.mxu0 0.0
    %247 = vmatprep.subr.mxu0 0.0
    %248 = vmatpush1.msra.mxu0 0.0
    %249 = vmatprep.subr.mxu0 0.0
    %250 = vmatpush1.msra.mxu0 0.0
    %251 = vmatprep.subr.mxu0 0.0
    %252 = vmatpush1.msra.mxu0 0.0
    %253 = vmatprep.subr.mxu0 0.0
    %254 = vmatpush1.msra.mxu0 0.0
    %255 = vmatprep.subr.mxu0 0.0
    %256 = vmatpush1.msra.mxu0 0.0
    %257 = vmatprep.subr.mxu0 0.0
    %258 = vmatpush1.msra.mxu0 0.0
    %259 = vmatprep.subr.mxu0 0.0
    %260 = vmatpush1.msra.mxu0 0.0
    %261 = vmatprep.subr.mxu0 0.0
    %262 = vmatpush1.msra.mxu0 0.0
    %263 = vmatprep.subr.mxu0 0.0
    %264 = vmatpush1.msra.mxu0 0.0
    %265 = vmatprep.subr.mxu0 0.0
    %266 = vmatpush1.msra.mxu0 0.0
    %267 = vmatprep.subr.mxu0 0.0
    %268 = vmatpush1.msra.mxu0 0.0
    %269 = vmatprep.subr.mxu0 0.0
    %270 = vmatpush1.msra.mxu0 0.0
    %271 = vmatprep.subr.mxu0 0.0
    %272 = vmatpush1.msra.mxu0 0.0
    %273 = vmatprep.subr.mxu0 0.0
    %274 = vmatpush1.msra.mxu0 0.0
    %275 = vmatprep.subr.mxu0 0.0
    %276 = vmatpush1.msra.mxu0 0.0
    %277 = vmatprep.subr.mxu0 0.0
    %278 = vmatpush1.msra.mxu0 0.0
    %279 = vmatprep.mubr.f32.mxu0 0.0
    %280 = vmatmul.mubr.f32.gmra.mrb[0].mxu0 %v164
    %v281 = vpop.f32.mrb[0].mxu0
    %v282 = vadd.f32 0.0, %v281
    %v283 = vpop.f32.mrb[0].mxu0
    %284 = vmatprep.mubr.f32.mxu0 0.0
    %285 = vmatmul.mubr.f32.gmra.mrb[0].mxu0 %v167
    %v286 = vpop.f32.mrb[0].mxu0
    %v287 = vadd.f32 0.0, %v286
    %v288 = vpop.f32.mrb[0].mxu0
    %289 = vmatprep.mubr.f32.mxu0 0.0
    %290 = vmatmul.mubr.f32.gmra.mrb[0].mxu0 %v170
    %v291 = vpop.f32.mrb[0].mxu0
    %v292 = vadd.f32 0.0, %v291
    %v293 = vpop.f32.mrb[0].mxu0
    %294 = vmatprep.mubr.f32.mxu0 0.0
    %295 = vmatmul.mubr.f32.gmra.mrb[0].mxu0 %v173
    %v296 = vpop.f32.mrb[0].mxu0
    %v297 = vadd.f32 0.0, %v296
    %v298 = vpop.f32.mrb[0].mxu0
    %299 = vmatprep.mubr.f32.mxu0 0.0
    %300 = vmatmul.mubr.f32.gmra.mrb[0].mxu0 %v176
    %v301 = vpop.f32.mrb[0].mxu0
    %v302 = vadd.f32 0.0, %v301
    %v303 = vpop.f32.mrb[0].mxu0
    %304 = vmatprep.mubr.f32.mxu0 0.0
    %305 = vmatmul.mubr.f32.gmra.mrb[0].mxu0 %v179
    %v306 = vpop.f32.mrb[0].mxu0
    %v307 = vadd.f32 0.0, %v306
    %v308 = vpop.f32.mrb[0].mxu0
    %309 = vmatprep.mubr.f32.mxu0 0.0
    %310 = vmatmul.mubr.f32.gmra.mrb[0].mxu0 %v182
    %v311 = vpop.f32.mrb[0].mxu0
    %v312 = vadd.f32 0.0, %v311
    %v313 = vpop.f32.mrb[0].mxu0
    %314 = vmatprep.mubr.f32.mxu0 0.0
    %315 = vmatmul.mubr.f32.gmra.mrb[0].mxu0 %v185
    %v316 = vpop.f32.mrb[0].mxu0
    %v317 = vadd.f32 0.0, %v316
    %v318 = vpop.f32.mrb[0].mxu0
    %319 = vmatprep.mubr.f32.mxu0 0.0
    %320 = vmatmul.mubr.f32.gmra.mrb[0].mxu0 %v188
    %v321 = vpop.f32.mrb[0].mxu0
    %v322 = vadd.f32 0.0, %v321
    %v323 = vpop.f32.mrb[0].mxu0
    %324 = vmatprep.mubr.f32.mxu0 0.0
    %325 = vmatmul.mubr.f32.gmra.mrb[0].mxu0 %v191
    %v326 = vpop.f32.mrb[0].mxu0
    %v327 = vadd.f32 0.0, %v326
    %v328 = vpop.f32.mrb[0].mxu0
    %329 = vmatprep.mubr.f32.mxu0 0.0
    %330 = vmatmul.mubr.f32.gmra.mrb[0].mxu0 %v194
    %v331 = vpop.f32.mrb[0].mxu0
    %v332 = vadd.f32 0.0, %v331
    %v333 = vpop.f32.mrb[0].mxu0
    %334 = vmatprep.mubr.f32.mxu0 0.0
    %335 = vmatmul.mubr.f32.gmra.mrb[0].mxu0 %v197
    %v336 = vpop.f32.mrb[0].mxu0
    %v337 = vadd.f32 0.0, %v336
    %v338 = vpop.f32.mrb[0].mxu0
    %339 = vmatprep.mubr.f32.mxu0 0.0
    %340 = vmatmul.mubr.f32.gmra.mrb[0].mxu0 %v200
    %v341 = vpop.f32.mrb[0].mxu0
    %v342 = vadd.f32 0.0, %v341
    %v343 = vpop.f32.mrb[0].mxu0
    %344 = vmatprep.mubr.f32.mxu0 0.0
    %345 = vmatmul.mubr.f32.gmra.mrb[0].mxu0 %v203
    %v346 = vpop.f32.mrb[0].mxu0
    %v347 = vadd.f32 0.0, %v346
    %v348 = vpop.f32.mrb[0].mxu0
    %349 = vmatprep.mubr.f32.mxu0 0.0
    %350 = vmatmul.mubr.f32.gmra.mrb[0].mxu0 %v206
    %v351 = vpop.f32.mrb[0].mxu0
    %v352 = vadd.f32 0.0, %v351
    %v353 = vpop.f32.mrb[0].mxu0
    %354 = vmatprep.mubr.f32.mxu0 0.0
    %355 = vmatmul.mubr.f32.gmra.mrb[0].mxu0 %v209
    %v356 = vpop.f32.mrb[0].mxu0
    %v357 = vadd.f32 0.0, %v356
    %v358 = vpop.f32.mrb[0].mxu0
    %359 = vdwg.mxu0
    %v360 = vadd.f32 %v129, %v282
    %v361 = vadd.f32 %v130, %v287
    %v362 = vadd.f32 %v131, %v292
    %v363 = vadd.f32 %v132, %v297
    %v364 = vadd.f32 %v133, %v302
    %v365 = vadd.f32 %v134, %v307
    %v366 = vadd.f32 %v135, %v312
    %v367 = vadd.f32 %v136, %v317
    %v368 = vadd.f32 %v137, %v322
    %v369 = vadd.f32 %v138, %v327
    %v370 = vadd.f32 %v139, %v332
    %v371 = vadd.f32 %v140, %v337
    %v372 = vadd.f32 %v141, %v342
    %v373 = vadd.f32 %v142, %v347
    %v374 = vadd.f32 %v143, %v352
    %v375 = vadd.f32 %v144, %v357
    %v376 = vmax.f32 %v360, 0.0
    %v377 = vmax.f32 %v361, 0.0
    %v378 = vmax.f32 %v362, 0.0
    %v379 = vmax.f32 %v363, 0.0
    %v380 = vmax.f32 %v364, 0.0
    %v381 = vmax.f32 %v365, 0.0
    %v382 = vmax.f32 %v366, 0.0
    %v383 = vmax.f32 %v367, 0.0
    %v384 = vmax.f32 %v368, 0.0
    %v385 = vmax.f32 %v369, 0.0
    %v386 = vmax.f32 %v370, 0.0
    %v387 = vmax.f32 %v371, 0.0
    %v388 = vmax.f32 %v372, 0.0
    %v389 = vmax.f32 %v373, 0.0
    %v390 = vmax.f32 %v374, 0.0
    %v391 = vmax.f32 %v375, 0.0
    %vm392 = vcmask 130048
    %393 = vst.msk [vmem:[#allocation11] sm:$0xff] %vm392, %v376
    %394 = vst.msk [vmem:[#allocation11 + $0x8] sm:$0xff] %vm392, %v377
    %395 = vst.msk [vmem:[#allocation11 + $0x10] sm:$0xff] %vm392, %v378
    %396 = vst.msk [vmem:[#allocation11 + $0x18] sm:$0xff] %vm392, %v379
    %397 = vst.msk [vmem:[#allocation11 + $0x20] sm:$0xff] %vm392, %v380
    %398 = vst.msk [vmem:[#allocation11 + $0x28] sm:$0xff] %vm392, %v381
    %399 = vst.msk [vmem:[#allocation11 + $0x30] sm:$0xff] %vm392, %v382
    %400 = vst.msk [vmem:[#allocation11 + $0x38] sm:$0xff] %vm392, %v383
    %401 = vst.msk [vmem:[#allocation11 + $0x40] sm:$0xff] %vm392, %v384
    %402 = vst.msk [vmem:[#allocation11 + $0x48] sm:$0xff] %vm392, %v385
    %403 = vst.msk [vmem:[#allocation11 + $0x50] sm:$0xff] %vm392, %v386
    %404 = vst.msk [vmem:[#allocation11 + $0x58] sm:$0xff] %vm392, %v387
    %405 = vst.msk [vmem:[#allocation11 + $0x60] sm:$0xff] %vm392, %v388
    %406 = vst.msk [vmem:[#allocation11 + $0x68] sm:$0xff] %vm392, %v389
    %407 = vst.msk [vmem:[#allocation11 + $0x70] sm:$0xff] %vm392, %v390
    %408 = vst.msk [vmem:[#allocation11 + $0x78] sm:$0xff] %vm392, %v391
    // Predicated region
    $region42: #{_lambda_.7} parent=1 // pred_check
      _
    $region43: #{_lambda_.7} parent=1 // pred_check_branch
      %410 = sbr.rel (0) target = $region45
    $region44: #{_lambda_.7} parent=1 // pred_region
      %s412 = ssub.s32 2048, 2048
      %413 = vsyncadd [#allocation4], %s412
      %s414 = sshll.u32 [#allocation11], 4
      %s415 = int_to_ptr.vmem [resolvable:$true] %s414
      %420 = dma.vmem_to_hbm [thread:$0]  %s415, 2048, %s5, [#allocation4], 128, 128, 8
    $region45: #{_lambda_.7} parent=1 // pred_fallthru
      _
    // Predicated region
    $region46: #{_lambda_.7} parent=1 // pred_check
      _
    $region47: #{_lambda_.7} parent=1 // pred_check_branch
      %422 = sbr.rel (0) target = $region49
    $region48: #{_lambda_.7} parent=1 // pred_region
      %423 = dma.done [#allocation4], 2048
    $region49: #{_lambda_.7} parent=1 // pred_fallthru
      _
    %424 = vsyncpa [#allocation3], 1
    %425 = vsyncpa [#allocation6], 1
    %426 = vsyncpa [#allocation9], 1
    %427 = vsyncpa [#allocation4], 1

</llo_original>
